<compile_context>
chip_gen: v5e
topology: v5e:2x2
jax: 0.10.0
libtpu: 0.0.40
codegen_flags: <defaults>
</compile_context>

<pallas_src>
import functools

import jax
import jax.numpy as jnp
from jax.experimental import pallas as pl
from jax.experimental.pallas import tpu as pltpu

LANE = 128


def _round_up(v, m):
    return (v + m - 1) // m * m


def _make_resblock_kernel(has_proj):
    def kernel(*refs):
        if has_proj:
            (p1_ref, w1_ref, s1_ref, b1_ref, w2_ref, s2_ref, b2_ref,
             xc_ref, ws_ref, ss_ref, bs_ref, o_ref, pad_ref) = refs
        else:
            (p1_ref, w1_ref, s1_ref, b1_ref, w2_ref, s2_ref, b2_ref,
             xc_ref, o_ref, pad_ref) = refs
            ws_ref = ss_ref = bs_ref = None

        B, HW, K1 = p1_ref.shape           # (batch tile, Ho*Wo, 9*Cin)
        CP = o_ref.shape[2]                # lane-padded channel count (multiple of 128)
        Ho = pad_ref.shape[1] - 2
        Wo = pad_ref.shape[2] - 2
        M = B * HW

        # ---- conv1: one fat bf16 MXU matmul over the pre-built im2col patch ----
        acc1 = jnp.dot(p1_ref[...].reshape(M, K1), w1_ref[...],
                       preferred_element_type=jnp.float32)          # (M, CP) f32
        # BN1 + ReLU in f32 over full 128-lane rows
        out1 = jnp.maximum(acc1 * s1_ref[...] + b1_ref[...], 0.0)

        # ---- conv2: write out1 into a zero-halo scratch, build the (M, 9*CP) im2col
        #      patch with an aligned 128-lane concat, contract in a single MXU matmul ----
        # NOTE: zeroed every step (not pl.when(step==0)) so it stays correct when the
        # batch axis is sharded across TensorCores via "parallel".
        pad_ref[...] = jnp.zeros_like(pad_ref)
        pad_ref[:, 1:Ho + 1, 1:Wo + 1, :] = out1.reshape(B, Ho, Wo, CP)
        op = pad_ref[...]                                            # (B, Ho+2, Wo+2, CP) f32
        taps = [op[:, dy:dy + Ho, dx:dx + Wo, :].astype(jnp.bfloat16)
                for dy in range(3) for dx in range(3)]
        p2 = jnp.concatenate(taps, axis=-1).reshape(M, 9 * CP)       # bf16, K = 9*CP
        acc2 = jnp.dot(p2, w2_ref[...], preferred_element_type=jnp.float32)
        out2 = acc2 * s2_ref[...] + b2_ref[...]                      # BN2, no ReLU yet

        # ---- shortcut ----
        if has_proj:
            sc = jnp.dot(xc_ref[...].reshape(M, xc_ref.shape[2]), ws_ref[...],
                         preferred_element_type=jnp.float32)
            sc = sc * ss_ref[...] + bs_ref[...]
        else:
            # identity: plain pass-through, no matmul / no extra params
            sc = xc_ref[...].reshape(M, CP).astype(jnp.float32)

        # ---- residual add + final ReLU, lane-dense (CP = 128k) store ----
        res = jnp.maximum(out2 + sc, 0.0)
        o_ref[...] = res.reshape(B, HW, CP).astype(o_ref.dtype)

    return kernel


def _pick_batch_tile(n, hw, cin, cp, budget_bytes=6 * 1024 * 1024):
    """Largest divisor of n whose per-step live intermediates stay under budget."""
    per = hw * (9 * cin * 2 + 9 * cp * 2 + 6 * cp * 4)   # rough bytes per image
    bt = 1
    for c in range(1, n + 1):
        if n % c == 0 and c * per <= budget_bytes:
            bt = c
    return bt


def resblock_pallas(x_nhwc, params, stride=1):
    """x_nhwc: (N, H, W, Cin) float32.  params: folded (eval-mode) ResBlock params."""
    N, H, W, Cin = x_nhwc.shape
    Cout = params["w1"].shape[-1]
    has_proj = (stride != 1) or (Cin != Cout)
    Ho = (H + 2 - 3) // stride + 1
    Wo = (W + 2 - 3) // stride + 1
    HW = Ho * Wo
    CP = _round_up(Cout, LANE)                       # lane-dense channel padding
    bf16, f32 = jnp.bfloat16, jnp.float32

    # ---- wrapper-side layout prep (pure data movement; no compute hoisted) ----
    xb = x_nhwc.astype(bf16)                                  # bf16 activations
    xp = jnp.pad(xb, ((0, 0), (1, 1), (1, 1), (0, 0)))        # spatial zero pad
    # conv1 im2col patch (Cin is tiny -> cheap 9x duplication, one fat K=9*Cin dot)
    taps = []
    for dy in range(3):
        for dx in range(3):
            taps.append(xp[:, dy:dy + (Ho - 1) * stride + 1:stride,
                            dx:dx + (Wo - 1) * stride + 1:stride, :])
    p1 = jnp.concatenate(taps, axis=-1).reshape(N, HW, 9 * Cin)
    # center taps of the padded input == strided input (shortcut-path input)
    xc = xp[:, 1:1 + (Ho - 1) * stride + 1:stride,
            1:1 + (Wo - 1) * stride + 1:stride, :]

    padc = lambda a: jnp.pad(a, ((0, 0),) * (a.ndim - 1) + ((0, CP - Cout),))
    w1f = padc(params["w1"]).reshape(9 * Cin, CP).astype(bf16)
    s1, b1 = padc(params["s1"]).astype(f32), padc(params["b1"]).astype(f32)
    w2f = jnp.pad(params["w2"],
                  ((0, 0), (0, 0), (0, CP - Cout), (0, CP - Cout))
                  ).reshape(9 * CP, CP).astype(bf16)
    s2, b2 = padc(params["s2"]).astype(f32), padc(params["b2"]).astype(f32)

    def full(shp):
        nd = len(shp)
        return pl.BlockSpec(shp, lambda n: (0,) * nd)

    B = _pick_batch_tile(N, HW, Cin, CP)
    grid = (N // B,)

    inputs = [p1, w1f, s1, b1, w2f, s2, b2]
    in_specs = [
        pl.BlockSpec((B, HW, 9 * Cin), lambda n: (n, 0, 0)),   # conv1 im2col patches
        full((9 * Cin, CP)), full((1, CP)), full((1, CP)),     # w1, bn1 scale/bias
        full((9 * CP, CP)), full((1, CP)), full((1, CP)),      # w2, bn2 scale/bias
    ]
    if has_proj:
        xc_in = xc.reshape(N, HW, Cin)
        ws = jnp.pad(params["ws"], ((0, 0), (0, CP - Cout))).astype(bf16)
        ss, bs = padc(params["ss"]).astype(f32), padc(params["bs"]).astype(f32)
        inputs += [xc_in, ws, ss, bs]
        in_specs += [pl.BlockSpec((B, HW, Cin), lambda n: (n, 0, 0)),
                     full((Cin, CP)), full((1, CP)), full((1, CP))]
    else:
        xc_in = jnp.pad(xc, ((0, 0), (0, 0), (0, 0), (0, CP - Cin))).reshape(N, HW, CP)
        inputs += [xc_in]
        in_specs += [pl.BlockSpec((B, HW, CP), lambda n: (n, 0, 0))]

    out = pl.pallas_call(
        _make_resblock_kernel(has_proj),
        out_shape=jax.ShapeDtypeStruct((N, HW, CP), f32),
        grid_spec=pltpu.PrefetchScalarGridSpec(
            num_scalar_prefetch=0,
            grid=grid,
            in_specs=in_specs,
            out_specs=pl.BlockSpec((B, HW, CP), lambda n: (n, 0, 0)),
            scratch_shapes=[pltpu.VMEM((B, Ho + 2, Wo + 2, CP), f32)],  # conv2 zero halo
        ),
        compiler_params=pltpu.CompilerParams(
            dimension_semantics=("parallel",),       # v7x: shard batch across 2 TCs
            vmem_limit_bytes=32 * 1024 * 1024,       # explicit, safe on v5e/v6e/v7x
        ),
    )(*inputs)

    # drop the channel padding and restore NHWC
    return out[:, :, :Cout].reshape(N, Ho, Wo, Cout)


# ----------------------------- params / reference -----------------------------

def fold_bn(gamma, beta, mean, var, eps=1e-5):
    scale = gamma / jnp.sqrt(var + eps)
    bias = beta - mean * scale
    return scale[None, :], bias[None, :]


def make_params(key, in_channels, out_channels, stride):
    ks = jax.random.split(key, 12)
    p = {}
    p["w1"] = 0.1 * jax.random.normal(ks[0], (3, 3, in_channels, out_channels), jnp.float32)
    p["w2"] = 0.1 * jax.random.normal(ks[1], (3, 3, out_channels, out_channels), jnp.float32)
    g1 = 1.0 + 0.1 * jax.random.normal(ks[2], (out_channels,), jnp.float32)
    b1 = 0.1 * jax.random.normal(ks[3], (out_channels,), jnp.float32)
    m1 = 0.1 * jax.random.normal(ks[4], (out_channels,), jnp.float32)
    v1 = jnp.abs(1.0 + 0.1 * jax.random.normal(ks[5], (out_channels,), jnp.float32))
    p["s1"], p["b1"] = fold_bn(g1, b1, m1, v1)
    g2 = 1.0 + 0.1 * jax.random.normal(ks[6], (out_channels,), jnp.float32)
    b2 = 0.1 * jax.random.normal(ks[7], (out_channels,), jnp.float32)
    m2 = 0.1 * jax.random.normal(ks[8], (out_channels,), jnp.float32)
    v2 = jnp.abs(1.0 + 0.1 * jax.random.normal(ks[9], (out_channels,), jnp.float32))
    p["s2"], p["b2"] = fold_bn(g2, b2, m2, v2)
    if stride != 1 or in_channels != out_channels:   # projection shortcut
        p["ws"] = 0.1 * jax.random.normal(ks[10], (in_channels, out_channels), jnp.float32)
        gs = 1.0 + 0.1 * jax.random.normal(ks[11], (out_channels,), jnp.float32)
        p["ss"], p["bs"] = fold_bn(gs, 0.05 * gs, 0.02 * gs, jnp.abs(gs))
    return p


def resblock_reference(x_nhwc, p, stride):
    """Pure-JAX reference with the same bf16-input / f32-accumulate numerics."""
    f32 = jnp.float32
    br = lambda a: a.astype(jnp.bfloat16).astype(f32)       # bf16 rounding, math in f32
    Cin, Cout = x_nhwc.shape[-1], p["w1"].shape[-1]
    has_proj = (stride != 1) or (Cin != Cout)

    def conv(a, w, s, pad):
        return jax.lax.conv_general_dilated(
            br(a), br(w), window_strides=(s, s), padding=pad,
            dimension_numbers=("NHWC", "HWIO", "NHWC"),
            preferred_element_type=f32)

    out = conv(x_nhwc, p["w1"], stride, ((1, 1), (1, 1)))
    out = jnp.maximum(out * p["s1"][0] + p["b1"][0], 0.0)
    out = conv(out, p["w2"], 1, ((1, 1), (1, 1)))
    out = out * p["s2"][0] + p["b2"][0]
    if has_proj:
        sc = conv(x_nhwc, p["ws"][None, None], stride, "VALID")
        sc = sc * p["ss"][0] + p["bs"][0]
    else:
        sc = br(x_nhwc)[:, ::stride, ::stride, :]
    return jnp.maximum(out + sc, 0.0)


if __name__ == "__main__":
    # ResBlock(in_channels=4, out_channels=8, stride=1) -> projection shortcut path.
    N, Cin, Cout, H, W, stride = 2, 4, 8, 16, 16, 1
    key = jax.random.PRNGKey(0)
    kx, kp = jax.random.split(key)
    x_nchw = jax.random.normal(kx, (N, Cin, H, W), jnp.float32)   # PyTorch-style input
    x_nhwc = jnp.transpose(x_nchw, (0, 2, 3, 1))                  # kernel layout
    params = make_params(kp, Cin, Cout, stride)

    run = jax.jit(functools.partial(resblock_pallas, stride=stride))
    out = jax.block_until_ready(run(x_nhwc, params))

    ref = resblock_reference(x_nhwc, params, stride)
    assert out.shape == (N, H, W, Cout), out.shape
    assert jnp.allclose(out, ref, rtol=5e-3, atol=5e-3), "mismatch vs JAX reference"

    print("KERNEL_OK")
</pallas_src>

<mosaic_0001>
module attributes {stable_mosaic.version = 11 : i64} {
  func.func @kernel(%arg0: i32, %arg1: memref<2x256x36xbf16, #tpu.memory_space<vmem>>, %arg2: memref<36x128xbf16, #tpu.memory_space<vmem>>, %arg3: memref<1x128xf32, #tpu.memory_space<vmem>>, %arg4: memref<1x128xf32, #tpu.memory_space<vmem>>, %arg5: memref<1152x128xbf16, #tpu.memory_space<vmem>>, %arg6: memref<1x128xf32, #tpu.memory_space<vmem>>, %arg7: memref<1x128xf32, #tpu.memory_space<vmem>>, %arg8: memref<2x256x4xbf16, #tpu.memory_space<vmem>>, %arg9: memref<4x128xbf16, #tpu.memory_space<vmem>>, %arg10: memref<1x128xf32, #tpu.memory_space<vmem>>, %arg11: memref<1x128xf32, #tpu.memory_space<vmem>>, %arg12: memref<2x256x128xf32, #tpu.memory_space<vmem>>, %arg13: memref<2x18x18x128xf32, #tpu.memory_space<vmem>>) attributes {dimension_semantics = [#tpu.dimension_semantics<parallel>], iteration_bounds = array<i64: 1>, scalar_prefetch = 0 : i64, scratch_operands = 1 : i64, tpu.core_type = #tpu.core_type<tc>, window_params = [{transform_indices = @transform_0, window_bounds = array<i64: 2, 256, 36>}, {pipeline_mode = #tpu.pipeline_mode<synchronous>, transform_indices = @transform_1, window_bounds = array<i64: 36, 128>}, {pipeline_mode = #tpu.pipeline_mode<synchronous>, transform_indices = @transform_2, window_bounds = array<i64: 1, 128>}, {pipeline_mode = #tpu.pipeline_mode<synchronous>, transform_indices = @transform_3, window_bounds = array<i64: 1, 128>}, {pipeline_mode = #tpu.pipeline_mode<synchronous>, transform_indices = @transform_4, window_bounds = array<i64: 1152, 128>}, {pipeline_mode = #tpu.pipeline_mode<synchronous>, transform_indices = @transform_5, window_bounds = array<i64: 1, 128>}, {pipeline_mode = #tpu.pipeline_mode<synchronous>, transform_indices = @transform_6, window_bounds = array<i64: 1, 128>}, {transform_indices = @transform_7, window_bounds = array<i64: 2, 256, 4>}, {pipeline_mode = #tpu.pipeline_mode<synchronous>, transform_indices = @transform_8, window_bounds = array<i64: 4, 128>}, {pipeline_mode = #tpu.pipeline_mode<synchronous>, transform_indices = @transform_9, window_bounds = array<i64: 1, 128>}, {pipeline_mode = #tpu.pipeline_mode<synchronous>, transform_indices = @transform_10, window_bounds = array<i64: 1, 128>}, {transform_indices = @transform_11, window_bounds = array<i64: 2, 256, 128>}]} {
    %c0 = arith.constant 0 : index
    %c0_0 = arith.constant 0 : index
    %c0_1 = arith.constant 0 : index
    %0 = vector.load %arg1[%c0, %c0_0, %c0_1] : memref<2x256x36xbf16, #tpu.memory_space<vmem>>, vector<2x256x36xbf16>
    %1 = vector.shape_cast %0 : vector<2x256x36xbf16> to vector<512x36xbf16>
    %c0_2 = arith.constant 0 : index
    %c0_3 = arith.constant 0 : index
    %2 = vector.load %arg2[%c0_2, %c0_3] : memref<36x128xbf16, #tpu.memory_space<vmem>>, vector<36x128xbf16>
    %cst = arith.constant dense<0.000000e+00> : vector<512x128xf32>
    %3 = tpu.matmul %1, %2, %cst {dimension_numbers = #tpu.dot_dimension_numbers<[1], [0], [0], [1], [0, 0, 1, 1], [], []>} : vector<512x36xbf16>, vector<36x128xbf16>, vector<512x128xf32> -> vector<512x128xf32>
    %c0_4 = arith.constant 0 : index
    %c0_5 = arith.constant 0 : index
    %4 = vector.load %arg3[%c0_4, %c0_5] : memref<1x128xf32, #tpu.memory_space<vmem>>, vector<1x128xf32>
    %5 = vector.broadcast %4 : vector<1x128xf32> to vector<512x128xf32>
    %6 = arith.mulf %3, %5 : vector<512x128xf32>
    %c0_6 = arith.constant 0 : index
    %c0_7 = arith.constant 0 : index
    %7 = vector.load %arg4[%c0_6, %c0_7] : memref<1x128xf32, #tpu.memory_space<vmem>>, vector<1x128xf32>
    %8 = vector.broadcast %7 : vector<1x128xf32> to vector<512x128xf32>
    %9 = arith.addf %6, %8 : vector<512x128xf32>
    %cst_8 = arith.constant 0.000000e+00 : f32
    %10 = vector.broadcast %cst_8 : f32 to vector<512x128xf32>
    %11 = arith.maximumf %9, %10 : vector<512x128xf32>
    %cst_9 = arith.constant 0.000000e+00 : f32
    %12 = vector.broadcast %cst_9 : f32 to vector<2x18x18x128xf32>
    %c0_10 = arith.constant 0 : index
    %c0_11 = arith.constant 0 : index
    %c0_12 = arith.constant 0 : index
    %c0_13 = arith.constant 0 : index
    %13 = vector.load %arg13[%c0_10, %c0_11, %c0_12, %c0_13] : memref<2x18x18x128xf32, #tpu.memory_space<vmem>>, vector<2x18x18x128xf32>
    tpu.vector_store %arg13[%c0_10, %c0_11, %c0_12, %c0_13], %12 {strides = array<i32>} : memref<2x18x18x128xf32, #tpu.memory_space<vmem>>, vector<2x18x18x128xf32>,
    %14 = vector.shape_cast %11 : vector<512x128xf32> to vector<2x16x16x128xf32>
    %c0_14 = arith.constant 0 : index
    %c1 = arith.constant 1 : index
    %c1_15 = arith.constant 1 : index
    %c0_16 = arith.constant 0 : index
    %15 = vector.load %arg13[%c0_14, %c1, %c1_15, %c0_16] : memref<2x18x18x128xf32, #tpu.memory_space<vmem>>, vector<2x16x16x128xf32>
    tpu.vector_store %arg13[%c0_14, %c1, %c1_15, %c0_16], %14 {strides = array<i32>} : memref<2x18x18x128xf32, #tpu.memory_space<vmem>>, vector<2x16x16x128xf32>,
    %c0_17 = arith.constant 0 : index
    %c0_18 = arith.constant 0 : index
    %c0_19 = arith.constant 0 : index
    %c0_20 = arith.constant 0 : index
    %16 = vector.load %arg13[%c0_17, %c0_18, %c0_19, %c0_20] : memref<2x18x18x128xf32, #tpu.memory_space<vmem>>, vector<2x18x18x128xf32>
    %17 = vector.extract_strided_slice %16 {offsets = [0, 0, 0, 0], sizes = [2, 16, 16, 128], strides = [1, 1, 1, 1]} : vector<2x18x18x128xf32> to vector<2x16x16x128xf32>
    %18 = arith.truncf %17 : vector<2x16x16x128xf32> to vector<2x16x16x128xbf16>
    %19 = vector.extract_strided_slice %16 {offsets = [0, 0, 1, 0], sizes = [2, 16, 16, 128], strides = [1, 1, 1, 1]} : vector<2x18x18x128xf32> to vector<2x16x16x128xf32>
    %20 = arith.truncf %19 : vector<2x16x16x128xf32> to vector<2x16x16x128xbf16>
    %21 = vector.extract_strided_slice %16 {offsets = [0, 0, 2, 0], sizes = [2, 16, 16, 128], strides = [1, 1, 1, 1]} : vector<2x18x18x128xf32> to vector<2x16x16x128xf32>
    %22 = arith.truncf %21 : vector<2x16x16x128xf32> to vector<2x16x16x128xbf16>
    %23 = vector.extract_strided_slice %16 {offsets = [0, 1, 0, 0], sizes = [2, 16, 16, 128], strides = [1, 1, 1, 1]} : vector<2x18x18x128xf32> to vector<2x16x16x128xf32>
    %24 = arith.truncf %23 : vector<2x16x16x128xf32> to vector<2x16x16x128xbf16>
    %25 = vector.extract_strided_slice %16 {offsets = [0, 1, 1, 0], sizes = [2, 16, 16, 128], strides = [1, 1, 1, 1]} : vector<2x18x18x128xf32> to vector<2x16x16x128xf32>
    %26 = arith.truncf %25 : vector<2x16x16x128xf32> to vector<2x16x16x128xbf16>
    %27 = vector.extract_strided_slice %16 {offsets = [0, 1, 2, 0], sizes = [2, 16, 16, 128], strides = [1, 1, 1, 1]} : vector<2x18x18x128xf32> to vector<2x16x16x128xf32>
    %28 = arith.truncf %27 : vector<2x16x16x128xf32> to vector<2x16x16x128xbf16>
    %29 = vector.extract_strided_slice %16 {offsets = [0, 2, 0, 0], sizes = [2, 16, 16, 128], strides = [1, 1, 1, 1]} : vector<2x18x18x128xf32> to vector<2x16x16x128xf32>
    %30 = arith.truncf %29 : vector<2x16x16x128xf32> to vector<2x16x16x128xbf16>
    %31 = vector.extract_strided_slice %16 {offsets = [0, 2, 1, 0], sizes = [2, 16, 16, 128], strides = [1, 1, 1, 1]} : vector<2x18x18x128xf32> to vector<2x16x16x128xf32>
    %32 = arith.truncf %31 : vector<2x16x16x128xf32> to vector<2x16x16x128xbf16>
    %33 = vector.extract_strided_slice %16 {offsets = [0, 2, 2, 0], sizes = [2, 16, 16, 128], strides = [1, 1, 1, 1]} : vector<2x18x18x128xf32> to vector<2x16x16x128xf32>
    %34 = arith.truncf %33 : vector<2x16x16x128xf32> to vector<2x16x16x128xbf16>
    %35 = tpu.concatenate %18, %20, %22, %24, %26, %28, %30, %32, %34 in 3 : vector<2x16x16x128xbf16>, vector<2x16x16x128xbf16>, vector<2x16x16x128xbf16>, vector<2x16x16x128xbf16>, vector<2x16x16x128xbf16>, vector<2x16x16x128xbf16>, vector<2x16x16x128xbf16>, vector<2x16x16x128xbf16>, vector<2x16x16x128xbf16> -> vector<2x16x16x1152xbf16>
    %36 = vector.shape_cast %35 : vector<2x16x16x1152xbf16> to vector<512x1152xbf16>
    %c0_21 = arith.constant 0 : index
    %c0_22 = arith.constant 0 : index
    %37 = vector.load %arg5[%c0_21, %c0_22] : memref<1152x128xbf16, #tpu.memory_space<vmem>>, vector<1152x128xbf16>
    %cst_23 = arith.constant dense<0.000000e+00> : vector<512x128xf32>
    %38 = tpu.matmul %36, %37, %cst_23 {dimension_numbers = #tpu.dot_dimension_numbers<[1], [0], [0], [1], [0, 0, 1, 1], [], []>} : vector<512x1152xbf16>, vector<1152x128xbf16>, vector<512x128xf32> -> vector<512x128xf32>
    %c0_24 = arith.constant 0 : index
    %c0_25 = arith.constant 0 : index
    %39 = vector.load %arg6[%c0_24, %c0_25] : memref<1x128xf32, #tpu.memory_space<vmem>>, vector<1x128xf32>
    %40 = vector.broadcast %39 : vector<1x128xf32> to vector<512x128xf32>
    %41 = arith.mulf %38, %40 : vector<512x128xf32>
    %c0_26 = arith.constant 0 : index
    %c0_27 = arith.constant 0 : index
    %42 = vector.load %arg7[%c0_26, %c0_27] : memref<1x128xf32, #tpu.memory_space<vmem>>, vector<1x128xf32>
    %43 = vector.broadcast %42 : vector<1x128xf32> to vector<512x128xf32>
    %44 = arith.addf %41, %43 : vector<512x128xf32>
    %c0_28 = arith.constant 0 : index
    %c0_29 = arith.constant 0 : index
    %c0_30 = arith.constant 0 : index
    %45 = vector.load %arg8[%c0_28, %c0_29, %c0_30] : memref<2x256x4xbf16, #tpu.memory_space<vmem>>, vector<2x256x4xbf16>
    %46 = vector.shape_cast %45 : vector<2x256x4xbf16> to vector<512x4xbf16>
    %c0_31 = arith.constant 0 : index
    %c0_32 = arith.constant 0 : index
    %47 = vector.load %arg9[%c0_31, %c0_32] : memref<4x128xbf16, #tpu.memory_space<vmem>>, vector<4x128xbf16>
    %cst_33 = arith.constant dense<0.000000e+00> : vector<512x128xf32>
    %48 = tpu.matmul %46, %47, %cst_33 {dimension_numbers = #tpu.dot_dimension_numbers<[1], [0], [0], [1], [0, 0, 1, 1], [], []>} : vector<512x4xbf16>, vector<4x128xbf16>, vector<512x128xf32> -> vector<512x128xf32>
    %c0_34 = arith.constant 0 : index
    %c0_35 = arith.constant 0 : index
    %49 = vector.load %arg10[%c0_34, %c0_35] : memref<1x128xf32, #tpu.memory_space<vmem>>, vector<1x128xf32>
    %50 = vector.broadcast %49 : vector<1x128xf32> to vector<512x128xf32>
    %51 = arith.mulf %48, %50 : vector<512x128xf32>
    %c0_36 = arith.constant 0 : index
    %c0_37 = arith.constant 0 : index
    %52 = vector.load %arg11[%c0_36, %c0_37] : memref<1x128xf32, #tpu.memory_space<vmem>>, vector<1x128xf32>
    %53 = vector.broadcast %52 : vector<1x128xf32> to vector<512x128xf32>
    %54 = arith.addf %51, %53 : vector<512x128xf32>
    %55 = arith.addf %44, %54 : vector<512x128xf32>
    %cst_38 = arith.constant 0.000000e+00 : f32
    %56 = vector.broadcast %cst_38 : f32 to vector<512x128xf32>
    %57 = arith.maximumf %55, %56 : vector<512x128xf32>
    %58 = vector.shape_cast %57 : vector<512x128xf32> to vector<2x256x128xf32>
    %c0_39 = arith.constant 0 : index
    %c0_40 = arith.constant 0 : index
    %c0_41 = arith.constant 0 : index
    %59 = vector.load %arg12[%c0_39, %c0_40, %c0_41] : memref<2x256x128xf32, #tpu.memory_space<vmem>>, vector<2x256x128xf32>
    tpu.vector_store %arg12[%c0_39, %c0_40, %c0_41], %58 {strides = array<i32>} : memref<2x256x128xf32, #tpu.memory_space<vmem>>, vector<2x256x128xf32>,
    return
  }
  func.func @transform_0(%arg0: i32) -> (i32, i32, i32) {
    %c0_i32 = arith.constant 0 : i32
    %c0_i32_0 = arith.constant 0 : i32
    %c0_i32_1 = arith.constant 0 : i32
    return %arg0, %c0_i32, %c0_i32_0 : i32, i32, i32
  }
  func.func @transform_1(%arg0: i32) -> (i32, i32) {
    %c0_i32 = arith.constant 0 : i32
    %c0_i32_0 = arith.constant 0 : i32
    %c0_i32_1 = arith.constant 0 : i32
    return %c0_i32, %c0_i32_0 : i32, i32
  }
  func.func @transform_2(%arg0: i32) -> (i32, i32) {
    %c0_i32 = arith.constant 0 : i32
    %c0_i32_0 = arith.constant 0 : i32
    %c0_i32_1 = arith.constant 0 : i32
    return %c0_i32, %c0_i32_0 : i32, i32
  }
  func.func @transform_3(%arg0: i32) -> (i32, i32) {
    %c0_i32 = arith.constant 0 : i32
    %c0_i32_0 = arith.constant 0 : i32
    %c0_i32_1 = arith.constant 0 : i32
    return %c0_i32, %c0_i32_0 : i32, i32
  }
  func.func @transform_4(%arg0: i32) -> (i32, i32) {
    %c0_i32 = arith.constant 0 : i32
    %c0_i32_0 = arith.constant 0 : i32
    %c0_i32_1 = arith.constant 0 : i32
    return %c0_i32, %c0_i32_0 : i32, i32
  }
  func.func @transform_5(%arg0: i32) -> (i32, i32) {
    %c0_i32 = arith.constant 0 : i32
    %c0_i32_0 = arith.constant 0 : i32
    %c0_i32_1 = arith.constant 0 : i32
    return %c0_i32, %c0_i32_0 : i32, i32
  }
  func.func @transform_6(%arg0: i32) -> (i32, i32) {
    %c0_i32 = arith.constant 0 : i32
    %c0_i32_0 = arith.constant 0 : i32
    %c0_i32_1 = arith.constant 0 : i32
    return %c0_i32, %c0_i32_0 : i32, i32
  }
  func.func @transform_7(%arg0: i32) -> (i32, i32, i32) {
    %c0_i32 = arith.constant 0 : i32
    %c0_i32_0 = arith.constant 0 : i32
    %c0_i32_1 = arith.constant 0 : i32
    return %arg0, %c0_i32, %c0_i32_0 : i32, i32, i32
  }
  func.func @transform_8(%arg0: i32) -> (i32, i32) {
    %c0_i32 = arith.constant 0 : i32
    %c0_i32_0 = arith.constant 0 : i32
    %c0_i32_1 = arith.constant 0 : i32
    return %c0_i32, %c0_i32_0 : i32, i32
  }
  func.func @transform_9(%arg0: i32) -> (i32, i32) {
    %c0_i32 = arith.constant 0 : i32
    %c0_i32_0 = arith.constant 0 : i32
    %c0_i32_1 = arith.constant 0 : i32
    return %c0_i32, %c0_i32_0 : i32, i32
  }
  func.func @transform_10(%arg0: i32) -> (i32, i32) {
    %c0_i32 = arith.constant 0 : i32
    %c0_i32_0 = arith.constant 0 : i32
    %c0_i32_1 = arith.constant 0 : i32
    return %c0_i32, %c0_i32_0 : i32, i32
  }
  func.func @transform_11(%arg0: i32) -> (i32, i32, i32) {
    %c0_i32 = arith.constant 0 : i32
    %c0_i32_0 = arith.constant 0 : i32
    %c0_i32_1 = arith.constant 0 : i32
    return %arg0, %c0_i32, %c0_i32_0 : i32, i32, i32
  }
}

</mosaic_0001>

<llo_original>
// kernel: resblock_pallas.1
$region0: #{resblock_pallas.1}
  #allocation0 [shape = 'u32[]', space=smem, size = 0x4, offset = 0x4, fixed_abs, tag = 'smem constant byte address 0x4 - core index']
  #allocation1 [shape = 'u32[72,128]{1,0:T(1,128)}', space=vmem, size = 0x9000, scoped, tag = 'internal scratch']
  #allocation2 [shape = 'f32[2,18,18,128]{3,2,1,0:T(8,128)}', space=vmem, size = 0x6c000, scoped, tag = 'scratch operand']
  %s0 = inlined_call_operand.vmem [shape: bf16[2,256,36], index: 0, kind: input, shape index: {}]
  %s1 = inlined_call_operand.vmem [shape: bf16[36,128], index: 1, kind: input, shape index: {}]
  %s2 = inlined_call_operand.vmem [shape: f32[1,128], index: 2, kind: input, shape index: {}]
  %s3 = inlined_call_operand.vmem [shape: f32[1,128], index: 3, kind: input, shape index: {}]
  %s4 = inlined_call_operand.vmem [shape: bf16[1152,128], index: 4, kind: input, shape index: {}]
  %s5 = inlined_call_operand.vmem [shape: f32[1,128], index: 5, kind: input, shape index: {}]
  %s6 = inlined_call_operand.vmem [shape: f32[1,128], index: 6, kind: input, shape index: {}]
  %s7 = inlined_call_operand.vmem [shape: bf16[2,256,4], index: 7, kind: input, shape index: {}]
  %s8 = inlined_call_operand.vmem [shape: bf16[4,128], index: 8, kind: input, shape index: {}]
  %s9 = inlined_call_operand.vmem [shape: f32[1,128], index: 9, kind: input, shape index: {}]
  %s10 = inlined_call_operand.vmem [shape: f32[1,128], index: 10, kind: input, shape index: {}]
  %s11 = inlined_call_operand.vmem [shape: f32[2,256,128], index: 11, kind: output, shape index: {}]
  %s12 = sld [smem:[#allocation0]]
  $region54: #{resblock_pallas.1} parent=0
    _
  %s14 = ssub.s32 1, %s12
  %s15 = scalar_select 0, %s14, %s12
  // Predicated region
  $region2: #{resblock_pallas.1} parent=0 // pred_check
    _
  $region3: #{resblock_pallas.1} parent=0 // pred_check_branch
    %17 = sbr.rel (0) target = $region5
  $region4: #{resblock_pallas.1} parent=0 // pred_region
    _
  $region5: #{resblock_pallas.1} parent=0 // pred_fallthru
    _
  // Predicated region
  $region6: #{resblock_pallas.1} parent=0 // pred_check
    _
  $region7: #{resblock_pallas.1} parent=0 // pred_check_branch
    %19 = sbr.rel (0) target = $region9
  $region8: #{resblock_pallas.1} parent=0 // pred_region
    _
  $region9: #{resblock_pallas.1} parent=0 // pred_fallthru
    _
  // Predicated region
  $region10: #{resblock_pallas.1} parent=0 // pred_check
    _
  $region11: #{resblock_pallas.1} parent=0 // pred_check_branch
    %21 = sbr.rel (0) target = $region13
  $region12: #{resblock_pallas.1} parent=0 // pred_region
    _
  $region13: #{resblock_pallas.1} parent=0 // pred_fallthru
    _
  // Predicated region
  $region14: #{resblock_pallas.1} parent=0 // pred_check
    _
  $region15: #{resblock_pallas.1} parent=0 // pred_check_branch
    %23 = sbr.rel (0) target = $region17
  $region16: #{resblock_pallas.1} parent=0 // pred_region
    _
  $region17: #{resblock_pallas.1} parent=0 // pred_fallthru
    _
  // Predicated region
  $region18: #{resblock_pallas.1} parent=0 // pred_check
    _
  $region19: #{resblock_pallas.1} parent=0 // pred_check_branch
    %25 = sbr.rel (0) target = $region21
  $region20: #{resblock_pallas.1} parent=0 // pred_region
    _
  $region21: #{resblock_pallas.1} parent=0 // pred_fallthru
    _
  // Predicated region
  $region22: #{resblock_pallas.1} parent=0 // pred_check
    _
  $region23: #{resblock_pallas.1} parent=0 // pred_check_branch
    %27 = sbr.rel (0) target = $region25
  $region24: #{resblock_pallas.1} parent=0 // pred_region
    _
  $region25: #{resblock_pallas.1} parent=0 // pred_fallthru
    _
  // Predicated region
  $region26: #{resblock_pallas.1} parent=0 // pred_check
    _
  $region27: #{resblock_pallas.1} parent=0 // pred_check_branch
    %29 = sbr.rel (0) target = $region29
  $region28: #{resblock_pallas.1} parent=0 // pred_region
    _
  $region29: #{resblock_pallas.1} parent=0 // pred_fallthru
    _
  // Predicated region
  $region30: #{resblock_pallas.1} parent=0 // pred_check
    _
  $region31: #{resblock_pallas.1} parent=0 // pred_check_branch
    %31 = sbr.rel (0) target = $region33
  $region32: #{resblock_pallas.1} parent=0 // pred_region
    _
  $region33: #{resblock_pallas.1} parent=0 // pred_fallthru
    _
  // Predicated region
  $region34: #{resblock_pallas.1} parent=0 // pred_check
    _
  $region35: #{resblock_pallas.1} parent=0 // pred_check_branch
    %33 = sbr.rel (0) target = $region37
  $region36: #{resblock_pallas.1} parent=0 // pred_region
    _
  $region37: #{resblock_pallas.1} parent=0 // pred_fallthru
    _
  // Predicated region
  $region38: #{resblock_pallas.1} parent=0 // pred_check
    _
  $region39: #{resblock_pallas.1} parent=0 // pred_check_branch
    %35 = sbr.rel (0) target = $region41
  $region40: #{resblock_pallas.1} parent=0 // pred_region
    _
  $region41: #{resblock_pallas.1} parent=0 // pred_fallthru
    _
  // Predicated region
  $region42: #{resblock_pallas.1} parent=0 // pred_check
    _
  $region43: #{resblock_pallas.1} parent=0 // pred_check_branch
    %37 = sbr.rel (0) target = $region45
  $region44: #{resblock_pallas.1} parent=0 // pred_region
    _
  $region45: #{resblock_pallas.1} parent=0 // pred_fallthru
    _
  %v39 = vld [vmem:[%s0] sm:$0xf]
  %v40 = vld [vmem:[%s0 + $0x4] sm:$0xf]
  %v41 = vld [vmem:[%s0 + $0x8] sm:$0xf]
  %v42 = vld [vmem:[%s0 + $0xc] sm:$0xf]
  %v43 = vld [vmem:[%s0 + $0x10] sm:$0xf]
  %v44 = vld [vmem:[%s0 + $0x14] sm:$0xf]
  %v45 = vld [vmem:[%s0 + $0x18] sm:$0xf]
  %v46 = vld [vmem:[%s0 + $0x1c] sm:$0xf]
  %v47 = vld [vmem:[%s0 + $0x20] sm:$0xf]
  %v48 = vld [vmem:[%s0 + $0x24] sm:$0xf]
  %v49 = vld [vmem:[%s0 + $0x28] sm:$0xf]
  %v50 = vld [vmem:[%s0 + $0x2c] sm:$0xf]
  %v51 = vld [vmem:[%s0 + $0x30] sm:$0xf]
  %v52 = vld [vmem:[%s0 + $0x34] sm:$0xf]
  %v53 = vld [vmem:[%s0 + $0x38] sm:$0xf]
  %v54 = vld [vmem:[%s0 + $0x3c] sm:$0xf]
  %v55 = vld [vmem:[%s0 + $0x40] sm:$0xf]
  %v56 = vld [vmem:[%s0 + $0x44] sm:$0xf]
  %v57 = vld [vmem:[%s0 + $0x48] sm:$0xf]
  %v58 = vld [vmem:[%s0 + $0x4c] sm:$0xf]
  %v59 = vld [vmem:[%s0 + $0x50] sm:$0xf]
  %v60 = vld [vmem:[%s0 + $0x54] sm:$0xf]
  %v61 = vld [vmem:[%s0 + $0x58] sm:$0xf]
  %v62 = vld [vmem:[%s0 + $0x5c] sm:$0xf]
  %v63 = vld [vmem:[%s0 + $0x60] sm:$0xf]
  %v64 = vld [vmem:[%s0 + $0x64] sm:$0xf]
  %v65 = vld [vmem:[%s0 + $0x68] sm:$0xf]
  %v66 = vld [vmem:[%s0 + $0x6c] sm:$0xf]
  %v67 = vld [vmem:[%s0 + $0x70] sm:$0xf]
  %v68 = vld [vmem:[%s0 + $0x74] sm:$0xf]
  %v69 = vld [vmem:[%s0 + $0x78] sm:$0xf]
  %v70 = vld [vmem:[%s0 + $0x7c] sm:$0xf]
  %v71 = vld [vmem:[%s0 + $0x80] sm:$0xf]
  %v72 = vld [vmem:[%s0 + $0x84] sm:$0xf]
  %v73 = vld [vmem:[%s0 + $0x88] sm:$0xf]
  %v74 = vld [vmem:[%s0 + $0x8c] sm:$0xf]
  %v75 = vld [vmem:[%s0 + $0x90] sm:$0xf]
  %v76 = vld [vmem:[%s0 + $0x94] sm:$0xf]
  %v77 = vld [vmem:[%s0 + $0x98] sm:$0xf]
  %v78 = vld [vmem:[%s0 + $0x9c] sm:$0xf]
  %v79 = vld [vmem:[%s0 + $0xa0] sm:$0xf]
  %v80 = vld [vmem:[%s0 + $0xa4] sm:$0xf]
  %v81 = vld [vmem:[%s0 + $0xa8] sm:$0xf]
  %v82 = vld [vmem:[%s0 + $0xac] sm:$0xf]
  %v83 = vld [vmem:[%s0 + $0xb0] sm:$0xf]
  %v84 = vld [vmem:[%s0 + $0xb4] sm:$0xf]
  %v85 = vld [vmem:[%s0 + $0xb8] sm:$0xf]
  %v86 = vld [vmem:[%s0 + $0xbc] sm:$0xf]
  %v87 = vld [vmem:[%s0 + $0xc0] sm:$0xf]
  %v88 = vld [vmem:[%s0 + $0xc4] sm:$0xf]
  %v89 = vld [vmem:[%s0 + $0xc8] sm:$0xf]
  %v90 = vld [vmem:[%s0 + $0xcc] sm:$0xf]
  %v91 = vld [vmem:[%s0 + $0xd0] sm:$0xf]
  %v92 = vld [vmem:[%s0 + $0xd4] sm:$0xf]
  %v93 = vld [vmem:[%s0 + $0xd8] sm:$0xf]
  %v94 = vld [vmem:[%s0 + $0xdc] sm:$0xf]
  %v95 = vld [vmem:[%s0 + $0xe0] sm:$0xf]
  %v96 = vld [vmem:[%s0 + $0xe4] sm:$0xf]
  %v97 = vld [vmem:[%s0 + $0xe8] sm:$0xf]
  %v98 = vld [vmem:[%s0 + $0xec] sm:$0xf]
  %v99 = vld [vmem:[%s0 + $0xf0] sm:$0xf]
  %v100 = vld [vmem:[%s0 + $0xf4] sm:$0xf]
  %v101 = vld [vmem:[%s0 + $0xf8] sm:$0xf]
  %v102 = vld [vmem:[%s0 + $0xfc] sm:$0xf]
  %v103 = vld [vmem:[%s1] sm:$0xf]
  %v104 = vld [vmem:[%s1 + $0x4] sm:$0xf]
  %v105 = vld [vmem:[%s1 + $0x8] sm:$0xf]
  %v106 = vld [vmem:[%s1 + $0xc] sm:$0xf]
  %v107 = vld [vmem:[%s1 + $0x10] sm:$0x3]
  %v172 = vunpack.c.l.b16 %v39
  %v173 = vunpack.c.l.b16 %v40
  %v174 = vunpack.c.l.b16 %v41
  %v175 = vunpack.c.l.b16 %v42
  %v176 = vunpack.c.l.b16 %v43
  %v177 = vunpack.c.l.b16 %v44
  %v178 = vunpack.c.l.b16 %v45
  %v179 = vunpack.c.l.b16 %v46
  %v180 = vunpack.c.l.b16 %v47
  %v181 = vunpack.c.l.b16 %v48
  %v182 = vunpack.c.l.b16 %v49
  %v183 = vunpack.c.l.b16 %v50
  %v184 = vunpack.c.l.b16 %v51
  %v185 = vunpack.c.l.b16 %v52
  %v186 = vunpack.c.l.b16 %v53
  %v187 = vunpack.c.l.b16 %v54
  %v188 = vunpack.c.l.b16 %v55
  %v189 = vunpack.c.l.b16 %v56
  %v190 = vunpack.c.l.b16 %v57
  %v191 = vunpack.c.l.b16 %v58
  %v192 = vunpack.c.l.b16 %v59
  %v193 = vunpack.c.l.b16 %v60
  %v194 = vunpack.c.l.b16 %v61
  %v195 = vunpack.c.l.b16 %v62
  %v196 = vunpack.c.l.b16 %v63
  %v197 = vunpack.c.l.b16 %v64
  %v198 = vunpack.c.l.b16 %v65
  %v199 = vunpack.c.l.b16 %v66
  %v200 = vunpack.c.l.b16 %v67
  %v201 = vunpack.c.l.b16 %v68
  %v202 = vunpack.c.l.b16 %v69
  %v203 = vunpack.c.l.b16 %v70
  %v204 = vunpack.c.l.b16 %v71
  %v205 = vunpack.c.l.b16 %v72
  %v206 = vunpack.c.l.b16 %v73
  %v207 = vunpack.c.l.b16 %v74
  %v208 = vunpack.c.l.b16 %v75
  %v209 = vunpack.c.l.b16 %v76
  %v210 = vunpack.c.l.b16 %v77
  %v211 = vunpack.c.l.b16 %v78
  %v212 = vunpack.c.l.b16 %v79
  %v213 = vunpack.c.l.b16 %v80
  %v214 = vunpack.c.l.b16 %v81
  %v215 = vunpack.c.l.b16 %v82
  %v216 = vunpack.c.l.b16 %v83
  %v217 = vunpack.c.l.b16 %v84
  %v218 = vunpack.c.l.b16 %v85
  %v219 = vunpack.c.l.b16 %v86
  %v220 = vunpack.c.l.b16 %v87
  %v221 = vunpack.c.l.b16 %v88
  %v222 = vunpack.c.l.b16 %v89
  %v223 = vunpack.c.l.b16 %v90
  %v224 = vunpack.c.l.b16 %v91
  %v225 = vunpack.c.l.b16 %v92
  %v226 = vunpack.c.l.b16 %v93
  %v227 = vunpack.c.l.b16 %v94
  %v228 = vunpack.c.l.b16 %v95
  %v229 = vunpack.c.l.b16 %v96
  %v230 = vunpack.c.l.b16 %v97
  %v231 = vunpack.c.l.b16 %v98
  %v232 = vunpack.c.l.b16 %v99
  %v233 = vunpack.c.l.b16 %v100
  %v234 = vunpack.c.l.b16 %v101
  %v235 = vunpack.c.l.b16 %v102
  %v236 = vpack.c.b16 %v173, %v172
  %v237 = vpack.c.b16 %v175, %v174
  %v238 = vpack.c.b16 %v177, %v176
  %v239 = vpack.c.b16 %v179, %v178
  %v240 = vpack.c.b16 %v181, %v180
  %v241 = vpack.c.b16 %v183, %v182
  %v242 = vpack.c.b16 %v185, %v184
  %v243 = vpack.c.b16 %v187, %v186
  %v244 = vpack.c.b16 %v189, %v188
  %v245 = vpack.c.b16 %v191, %v190
  %v246 = vpack.c.b16 %v193, %v192
  %v247 = vpack.c.b16 %v195, %v194
  %v248 = vpack.c.b16 %v197, %v196
  %v249 = vpack.c.b16 %v199, %v198
  %v250 = vpack.c.b16 %v201, %v200
  %v251 = vpack.c.b16 %v203, %v202
  %v252 = vpack.c.b16 %v205, %v204
  %v253 = vpack.c.b16 %v207, %v206
  %v254 = vpack.c.b16 %v209, %v208
  %v255 = vpack.c.b16 %v211, %v210
  %v256 = vpack.c.b16 %v213, %v212
  %v257 = vpack.c.b16 %v215, %v214
  %v258 = vpack.c.b16 %v217, %v216
  %v259 = vpack.c.b16 %v219, %v218
  %v260 = vpack.c.b16 %v221, %v220
  %v261 = vpack.c.b16 %v223, %v222
  %v262 = vpack.c.b16 %v225, %v224
  %v263 = vpack.c.b16 %v227, %v226
  %v264 = vpack.c.b16 %v229, %v228
  %v265 = vpack.c.b16 %v231, %v230
  %v266 = vpack.c.b16 %v233, %v232
  %v267 = vpack.c.b16 %v235, %v234
  %v273 = vunpack.c.l.b16 %v103
  %v274 = vunpack.c.l.b16 %v104
  %v275 = vunpack.c.l.b16 %v105
  %v276 = vunpack.c.l.b16 %v106
  %v277 = vunpack.c.l.b16 %v107
  %v278 = vpack.c.b16 %v274, %v273
  %v279 = vpack.c.b16 %v276, %v275
  %v280 = vpack.c.b16 %v277, %v277
  %vm283 = vcmask 293888
  %v285 = vsel %vm283, %v236, 0
  %v288 = vsel %vm283, %v237, 0
  %v291 = vsel %vm283, %v238, 0
  %v294 = vsel %vm283, %v239, 0
  %v297 = vsel %vm283, %v240, 0
  %v300 = vsel %vm283, %v241, 0
  %v303 = vsel %vm283, %v242, 0
  %v306 = vsel %vm283, %v243, 0
  %v309 = vsel %vm283, %v244, 0
  %v312 = vsel %vm283, %v245, 0
  %v315 = vsel %vm283, %v246, 0
  %v318 = vsel %vm283, %v247, 0
  %v321 = vsel %vm283, %v248, 0
  %v324 = vsel %vm283, %v249, 0
  %v327 = vsel %vm283, %v250, 0
  %v330 = vsel %vm283, %v251, 0
  %v333 = vsel %vm283, %v252, 0
  %v336 = vsel %vm283, %v253, 0
  %v339 = vsel %vm283, %v254, 0
  %v342 = vsel %vm283, %v255, 0
  %v345 = vsel %vm283, %v256, 0
  %v348 = vsel %vm283, %v257, 0
  %v351 = vsel %vm283, %v258, 0
  %v354 = vsel %vm283, %v259, 0
  %v357 = vsel %vm283, %v260, 0
  %v360 = vsel %vm283, %v261, 0
  %v363 = vsel %vm283, %v262, 0
  %v366 = vsel %vm283, %v263, 0
  %v369 = vsel %vm283, %v264, 0
  %v372 = vsel %vm283, %v265, 0
  %v375 = vsel %vm283, %v266, 0
  %v378 = vsel %vm283, %v267, 0
  %vm380 = vcmask 1041408
  %v382 = vsel %vm380, %v280, 0
  %384 = vmatpush.bf16.msra.mxu0 0
  %385 = vmatpush.bf16.msra.mxu0 0
  %386 = vmatpush.bf16.msra.mxu0 0
  %387 = vmatpush.bf16.msra.mxu0 0
  %388 = vmatpush.bf16.msra.mxu0 0
  %389 = vmatpush.bf16.msra.mxu0 %v382
  %390 = vmatpush.bf16.msra.mxu0 %v279
  %391 = vmatpush.bf16.msra.mxu0 %v278
  %392 = vmatmul.bf16.gmra.mxu0 %v285
  %v393 = vpop.f32.mrf.mxu0
  %v394 = vadd.f32 0.0, %v393
  %v395 = vpop.f32.mrf.mxu0
  %v396 = vadd.f32 0.0, %v395
  %397 = vmatmul.bf16.gmra.mxu0 %v288
  %v398 = vpop.f32.mrf.mxu0
  %v399 = vadd.f32 0.0, %v398
  %v400 = vpop.f32.mrf.mxu0
  %v401 = vadd.f32 0.0, %v400
  %402 = vmatmul.bf16.gmra.mxu0 %v291
  %v403 = vpop.f32.mrf.mxu0
  %v404 = vadd.f32 0.0, %v403
  %v405 = vpop.f32.mrf.mxu0
  %v406 = vadd.f32 0.0, %v405
  %407 = vmatmul.bf16.gmra.mxu0 %v294
  %v408 = vpop.f32.mrf.mxu0
  %v409 = vadd.f32 0.0, %v408
  %v410 = vpop.f32.mrf.mxu0
  %v411 = vadd.f32 0.0, %v410
  %412 = vmatmul.bf16.gmra.mxu0 %v297
  %v413 = vpop.f32.mrf.mxu0
  %v414 = vadd.f32 0.0, %v413
  %v415 = vpop.f32.mrf.mxu0
  %v416 = vadd.f32 0.0, %v415
  %417 = vmatmul.bf16.gmra.mxu0 %v300
  %v418 = vpop.f32.mrf.mxu0
  %v419 = vadd.f32 0.0, %v418
  %v420 = vpop.f32.mrf.mxu0
  %v421 = vadd.f32 0.0, %v420
  %422 = vmatmul.bf16.gmra.mxu0 %v303
  %v423 = vpop.f32.mrf.mxu0
  %v424 = vadd.f32 0.0, %v423
  %v425 = vpop.f32.mrf.mxu0
  %v426 = vadd.f32 0.0, %v425
  %427 = vmatmul.bf16.gmra.mxu0 %v306
  %v428 = vpop.f32.mrf.mxu0
  %v429 = vadd.f32 0.0, %v428
  %v430 = vpop.f32.mrf.mxu0
  %v431 = vadd.f32 0.0, %v430
  %432 = vmatmul.bf16.gmra.mxu0 %v309
  %v433 = vpop.f32.mrf.mxu0
  %v434 = vadd.f32 0.0, %v433
  %v435 = vpop.f32.mrf.mxu0
  %v436 = vadd.f32 0.0, %v435
  %437 = vmatmul.bf16.gmra.mxu0 %v312
  %v438 = vpop.f32.mrf.mxu0
  %v439 = vadd.f32 0.0, %v438
  %v440 = vpop.f32.mrf.mxu0
  %v441 = vadd.f32 0.0, %v440
  %442 = vmatmul.bf16.gmra.mxu0 %v315
  %v443 = vpop.f32.mrf.mxu0
  %v444 = vadd.f32 0.0, %v443
  %v445 = vpop.f32.mrf.mxu0
  %v446 = vadd.f32 0.0, %v445
  %447 = vmatmul.bf16.gmra.mxu0 %v318
  %v448 = vpop.f32.mrf.mxu0
  %v449 = vadd.f32 0.0, %v448
  %v450 = vpop.f32.mrf.mxu0
  %v451 = vadd.f32 0.0, %v450
  %452 = vmatmul.bf16.gmra.mxu0 %v321
  %v453 = vpop.f32.mrf.mxu0
  %v454 = vadd.f32 0.0, %v453
  %v455 = vpop.f32.mrf.mxu0
  %v456 = vadd.f32 0.0, %v455
  %457 = vmatmul.bf16.gmra.mxu0 %v324
  %v458 = vpop.f32.mrf.mxu0
  %v459 = vadd.f32 0.0, %v458
  %v460 = vpop.f32.mrf.mxu0
  %v461 = vadd.f32 0.0, %v460
  %462 = vmatmul.bf16.gmra.mxu0 %v327
  %v463 = vpop.f32.mrf.mxu0
  %v464 = vadd.f32 0.0, %v463
  %v465 = vpop.f32.mrf.mxu0
  %v466 = vadd.f32 0.0, %v465
  %467 = vmatmul.bf16.gmra.mxu0 %v330
  %v468 = vpop.f32.mrf.mxu0
  %v469 = vadd.f32 0.0, %v468
  %v470 = vpop.f32.mrf.mxu0
  %v471 = vadd.f32 0.0, %v470
  %472 = vmatmul.bf16.gmra.mxu0 %v333
  %v473 = vpop.f32.mrf.mxu0
  %v474 = vadd.f32 0.0, %v473
  %v475 = vpop.f32.mrf.mxu0
  %v476 = vadd.f32 0.0, %v475
  %477 = vmatmul.bf16.gmra.mxu0 %v336
  %v478 = vpop.f32.mrf.mxu0
  %v479 = vadd.f32 0.0, %v478
  %v480 = vpop.f32.mrf.mxu0
  %v481 = vadd.f32 0.0, %v480
  %482 = vmatmul.bf16.gmra.mxu0 %v339
  %v483 = vpop.f32.mrf.mxu0
  %v484 = vadd.f32 0.0, %v483
  %v485 = vpop.f32.mrf.mxu0
  %v486 = vadd.f32 0.0, %v485
  %487 = vmatmul.bf16.gmra.mxu0 %v342
  %v488 = vpop.f32.mrf.mxu0
  %v489 = vadd.f32 0.0, %v488
  %v490 = vpop.f32.mrf.mxu0
  %v491 = vadd.f32 0.0, %v490
  %492 = vmatmul.bf16.gmra.mxu0 %v345
  %v493 = vpop.f32.mrf.mxu0
  %v494 = vadd.f32 0.0, %v493
  %v495 = vpop.f32.mrf.mxu0
  %v496 = vadd.f32 0.0, %v495
  %497 = vmatmul.bf16.gmra.mxu0 %v348
  %v498 = vpop.f32.mrf.mxu0
  %v499 = vadd.f32 0.0, %v498
  %v500 = vpop.f32.mrf.mxu0
  %v501 = vadd.f32 0.0, %v500
  %502 = vmatmul.bf16.gmra.mxu0 %v351
  %v503 = vpop.f32.mrf.mxu0
  %v504 = vadd.f32 0.0, %v503
  %v505 = vpop.f32.mrf.mxu0
  %v506 = vadd.f32 0.0, %v505
  %507 = vmatmul.bf16.gmra.mxu0 %v354
  %v508 = vpop.f32.mrf.mxu0
  %v509 = vadd.f32 0.0, %v508
  %v510 = vpop.f32.mrf.mxu0
  %v511 = vadd.f32 0.0, %v510
  %512 = vmatmul.bf16.gmra.mxu0 %v357
  %v513 = vpop.f32.mrf.mxu0
  %v514 = vadd.f32 0.0, %v513
  %v515 = vpop.f32.mrf.mxu0
  %v516 = vadd.f32 0.0, %v515
  %517 = vmatmul.bf16.gmra.mxu0 %v360
  %v518 = vpop.f32.mrf.mxu0
  %v519 = vadd.f32 0.0, %v518
  %v520 = vpop.f32.mrf.mxu0
  %v521 = vadd.f32 0.0, %v520
  %522 = vmatmul.bf16.gmra.mxu0 %v363
  %v523 = vpop.f32.mrf.mxu0
  %v524 = vadd.f32 0.0, %v523
  %v525 = vpop.f32.mrf.mxu0
  %v526 = vadd.f32 0.0, %v525
  %527 = vmatmul.bf16.gmra.mxu0 %v366
  %v528 = vpop.f32.mrf.mxu0
  %v529 = vadd.f32 0.0, %v528
  %v530 = vpop.f32.mrf.mxu0
  %v531 = vadd.f32 0.0, %v530
  %532 = vmatmul.bf16.gmra.mxu0 %v369
  %v533 = vpop.f32.mrf.mxu0
  %v534 = vadd.f32 0.0, %v533
  %v535 = vpop.f32.mrf.mxu0
  %v536 = vadd.f32 0.0, %v535
  %537 = vmatmul.bf16.gmra.mxu0 %v372
  %v538 = vpop.f32.mrf.mxu0
  %v539 = vadd.f32 0.0, %v538
  %v540 = vpop.f32.mrf.mxu0
  %v541 = vadd.f32 0.0, %v540
  %542 = vmatmul.bf16.gmra.mxu0 %v375
  %v543 = vpop.f32.mrf.mxu0
  %v544 = vadd.f32 0.0, %v543
  %v545 = vpop.f32.mrf.mxu0
  %v546 = vadd.f32 0.0, %v545
  %547 = vmatmul.bf16.gmra.mxu0 %v378
  %v548 = vpop.f32.mrf.mxu0
  %v549 = vadd.f32 0.0, %v548
  %v550 = vpop.f32.mrf.mxu0
  %v551 = vadd.f32 0.0, %v550
  %552 = vdwg.mxu0
  %v553 = vld [vmem:[%s2] sm:$0x1]
  %v555 = vperm.slane %v553, 0
  %v557 = vmul.f32 %v394, %v555
  %v558 = vmul.f32 %v396, %v555
  %v559 = vmul.f32 %v399, %v555
  %v560 = vmul.f32 %v401, %v555
  %v561 = vmul.f32 %v404, %v555
  %v562 = vmul.f32 %v406, %v555
  %v563 = vmul.f32 %v409, %v555
  %v564 = vmul.f32 %v411, %v555
  %v565 = vmul.f32 %v414, %v555
  %v566 = vmul.f32 %v416, %v555
  %v567 = vmul.f32 %v419, %v555
  %v568 = vmul.f32 %v421, %v555
  %v569 = vmul.f32 %v424, %v555
  %v570 = vmul.f32 %v426, %v555
  %v571 = vmul.f32 %v429, %v555
  %v572 = vmul.f32 %v431, %v555
  %v573 = vmul.f32 %v434, %v555
  %v574 = vmul.f32 %v436, %v555
  %v575 = vmul.f32 %v439, %v555
  %v576 = vmul.f32 %v441, %v555
  %v577 = vmul.f32 %v444, %v555
  %v578 = vmul.f32 %v446, %v555
  %v579 = vmul.f32 %v449, %v555
  %v580 = vmul.f32 %v451, %v555
  %v581 = vmul.f32 %v454, %v555
  %v582 = vmul.f32 %v456, %v555
  %v583 = vmul.f32 %v459, %v555
  %v584 = vmul.f32 %v461, %v555
  %v585 = vmul.f32 %v464, %v555
  %v586 = vmul.f32 %v466, %v555
  %v587 = vmul.f32 %v469, %v555
  %v588 = vmul.f32 %v471, %v555
  %v589 = vmul.f32 %v474, %v555
  %v590 = vmul.f32 %v476, %v555
  %v591 = vmul.f32 %v479, %v555
  %v592 = vmul.f32 %v481, %v555
  %v593 = vmul.f32 %v484, %v555
  %v594 = vmul.f32 %v486, %v555
  %v595 = vmul.f32 %v489, %v555
  %v596 = vmul.f32 %v491, %v555
  %v597 = vmul.f32 %v494, %v555
  %v598 = vmul.f32 %v496, %v555
  %v599 = vmul.f32 %v499, %v555
  %v600 = vmul.f32 %v501, %v555
  %v601 = vmul.f32 %v504, %v555
  %v602 = vmul.f32 %v506, %v555
  %v603 = vmul.f32 %v509, %v555
  %v604 = vmul.f32 %v511, %v555
  %v605 = vmul.f32 %v514, %v555
  %v606 = vmul.f32 %v516, %v555
  %v607 = vmul.f32 %v519, %v555
  %v608 = vmul.f32 %v521, %v555
  %v609 = vmul.f32 %v524, %v555
  %v610 = vmul.f32 %v526, %v555
  %v611 = vmul.f32 %v529, %v555
  %v612 = vmul.f32 %v531, %v555
  %v613 = vmul.f32 %v534, %v555
  %v614 = vmul.f32 %v536, %v555
  %v615 = vmul.f32 %v539, %v555
  %v616 = vmul.f32 %v541, %v555
  %v617 = vmul.f32 %v544, %v555
  %v618 = vmul.f32 %v546, %v555
  %v619 = vmul.f32 %v549, %v555
  %v620 = vmul.f32 %v551, %v555
  %v621 = vld [vmem:[%s3] sm:$0x1]
  %v623 = vperm.slane %v621, 0
  %v625 = vadd.f32 %v557, %v623
  %v626 = vadd.f32 %v558, %v623
  %v627 = vadd.f32 %v559, %v623
  %v628 = vadd.f32 %v560, %v623
  %v629 = vadd.f32 %v561, %v623
  %v630 = vadd.f32 %v562, %v623
  %v631 = vadd.f32 %v563, %v623
  %v632 = vadd.f32 %v564, %v623
  %v633 = vadd.f32 %v565, %v623
  %v634 = vadd.f32 %v566, %v623
  %v635 = vadd.f32 %v567, %v623
  %v636 = vadd.f32 %v568, %v623
  %v637 = vadd.f32 %v569, %v623
  %v638 = vadd.f32 %v570, %v623
  %v639 = vadd.f32 %v571, %v623
  %v640 = vadd.f32 %v572, %v623
  %v641 = vadd.f32 %v573, %v623
  %v642 = vadd.f32 %v574, %v623
  %v643 = vadd.f32 %v575, %v623
  %v644 = vadd.f32 %v576, %v623
  %v645 = vadd.f32 %v577, %v623
  %v646 = vadd.f32 %v578, %v623
  %v647 = vadd.f32 %v579, %v623
  %v648 = vadd.f32 %v580, %v623
  %v649 = vadd.f32 %v581, %v623
  %v650 = vadd.f32 %v582, %v623
  %v651 = vadd.f32 %v583, %v623
  %v652 = vadd.f32 %v584, %v623
  %v653 = vadd.f32 %v585, %v623
  %v654 = vadd.f32 %v586, %v623
  %v655 = vadd.f32 %v587, %v623
  %v656 = vadd.f32 %v588, %v623
  %v657 = vadd.f32 %v589, %v623
  %v658 = vadd.f32 %v590, %v623
  %v659 = vadd.f32 %v591, %v623
  %v660 = vadd.f32 %v592, %v623
  %v661 = vadd.f32 %v593, %v623
  %v662 = vadd.f32 %v594, %v623
  %v663 = vadd.f32 %v595, %v623
  %v664 = vadd.f32 %v596, %v623
  %v665 = vadd.f32 %v597, %v623
  %v666 = vadd.f32 %v598, %v623
  %v667 = vadd.f32 %v599, %v623
  %v668 = vadd.f32 %v600, %v623
  %v669 = vadd.f32 %v601, %v623
  %v670 = vadd.f32 %v602, %v623
  %v671 = vadd.f32 %v603, %v623
  %v672 = vadd.f32 %v604, %v623
  %v673 = vadd.f32 %v605, %v623
  %v674 = vadd.f32 %v606, %v623
  %v675 = vadd.f32 %v607, %v623
  %v676 = vadd.f32 %v608, %v623
  %v677 = vadd.f32 %v609, %v623
  %v678 = vadd.f32 %v610, %v623
  %v679 = vadd.f32 %v611, %v623
  %v680 = vadd.f32 %v612, %v623
  %v681 = vadd.f32 %v613, %v623
  %v682 = vadd.f32 %v614, %v623
  %v683 = vadd.f32 %v615, %v623
  %v684 = vadd.f32 %v616, %v623
  %v685 = vadd.f32 %v617, %v623
  %v686 = vadd.f32 %v618, %v623
  %v687 = vadd.f32 %v619, %v623
  %v688 = vadd.f32 %v620, %v623
  %v689 = vmax.f32 %v625, 0.0
  %v690 = vmax.f32 %v626, 0.0
  %v691 = vmax.f32 %v627, 0.0
  %v692 = vmax.f32 %v628, 0.0
  %v693 = vmax.f32 %v629, 0.0
  %v694 = vmax.f32 %v630, 0.0
  %v695 = vmax.f32 %v631, 0.0
  %v696 = vmax.f32 %v632, 0.0
  %v697 = vmax.f32 %v633, 0.0
  %v698 = vmax.f32 %v634, 0.0
  %v699 = vmax.f32 %v635, 0.0
  %v700 = vmax.f32 %v636, 0.0
  %v701 = vmax.f32 %v637, 0.0
  %v702 = vmax.f32 %v638, 0.0
  %v703 = vmax.f32 %v639, 0.0
  %v704 = vmax.f32 %v640, 0.0
  %v705 = vmax.f32 %v641, 0.0
  %v706 = vmax.f32 %v642, 0.0
  %v707 = vmax.f32 %v643, 0.0
  %v708 = vmax.f32 %v644, 0.0
  %v709 = vmax.f32 %v645, 0.0
  %v710 = vmax.f32 %v646, 0.0
  %v711 = vmax.f32 %v647, 0.0
  %v712 = vmax.f32 %v648, 0.0
  %v713 = vmax.f32 %v649, 0.0
  %v714 = vmax.f32 %v650, 0.0
  %v715 = vmax.f32 %v651, 0.0
  %v716 = vmax.f32 %v652, 0.0
  %v717 = vmax.f32 %v653, 0.0
  %v718 = vmax.f32 %v654, 0.0
  %v719 = vmax.f32 %v655, 0.0
  %v720 = vmax.f32 %v656, 0.0
  %v721 = vmax.f32 %v657, 0.0
  %v722 = vmax.f32 %v658, 0.0
  %v723 = vmax.f32 %v659, 0.0
  %v724 = vmax.f32 %v660, 0.0
  %v725 = vmax.f32 %v661, 0.0
  %v726 = vmax.f32 %v662, 0.0
  %v727 = vmax.f32 %v663, 0.0
  %v728 = vmax.f32 %v664, 0.0
  %v729 = vmax.f32 %v665, 0.0
  %v730 = vmax.f32 %v666, 0.0
  %v731 = vmax.f32 %v667, 0.0
  %v732 = vmax.f32 %v668, 0.0
  %v733 = vmax.f32 %v669, 0.0
  %v734 = vmax.f32 %v670, 0.0
  %v735 = vmax.f32 %v671, 0.0
  %v736 = vmax.f32 %v672, 0.0
  %v737 = vmax.f32 %v673, 0.0
  %v738 = vmax.f32 %v674, 0.0
  %v739 = vmax.f32 %v675, 0.0
  %v740 = vmax.f32 %v676, 0.0
  %v741 = vmax.f32 %v677, 0.0
  %v742 = vmax.f32 %v678, 0.0
  %v743 = vmax.f32 %v679, 0.0
  %v744 = vmax.f32 %v680, 0.0
  %v745 = vmax.f32 %v681, 0.0
  %v746 = vmax.f32 %v682, 0.0
  %v747 = vmax.f32 %v683, 0.0
  %v748 = vmax.f32 %v684, 0.0
  %v749 = vmax.f32 %v685, 0.0
  %v750 = vmax.f32 %v686, 0.0
  %v751 = vmax.f32 %v687, 0.0
  %v752 = vmax.f32 %v688, 0.0
  %753 = vst [vmem:[#allocation2] sm:$0xff] 0.0
  %754 = vst [vmem:[#allocation2 + $0x8] sm:$0xff] 0.0
  %755 = vst [vmem:[#allocation2 + $0x10] sm:$0x3] 0.0
  %756 = vst [vmem:[#allocation2 + $0x18] sm:$0xff] 0.0
  %757 = vst [vmem:[#allocation2 + $0x20] sm:$0xff] 0.0
  %758 = vst [vmem:[#allocation2 + $0x28] sm:$0x3] 0.0
  %759 = vst [vmem:[#allocation2 + $0x30] sm:$0xff] 0.0
  %760 = vst [vmem:[#allocation2 + $0x38] sm:$0xff] 0.0
  %761 = vst [vmem:[#allocation2 + $0x40] sm:$0x3] 0.0
  %762 = vst [vmem:[#allocation2 + $0x48] sm:$0xff] 0.0
  %763 = vst [vmem:[#allocation2 + $0x50] sm:$0xff] 0.0
  %764 = vst [vmem:[#allocation2 + $0x58] sm:$0x3] 0.0
  %765 = vst [vmem:[#allocation2 + $0x60] sm:$0xff] 0.0
  %766 = vst [vmem:[#allocation2 + $0x68] sm:$0xff] 0.0
  %767 = vst [vmem:[#allocation2 + $0x70] sm:$0x3] 0.0
  %768 = vst [vmem:[#allocation2 + $0x78] sm:$0xff] 0.0
  %769 = vst [vmem:[#allocation2 + $0x80] sm:$0xff] 0.0
  %770 = vst [vmem:[#allocation2 + $0x88] sm:$0x3] 0.0
  %771 = vst [vmem:[#allocation2 + $0x90] sm:$0xff] 0.0
  %772 = vst [vmem:[#allocation2 + $0x98] sm:$0xff] 0.0
  %773 = vst [vmem:[#allocation2 + $0xa0] sm:$0x3] 0.0
  %774 = vst [vmem:[#allocation2 + $0xa8] sm:$0xff] 0.0
  %775 = vst [vmem:[#allocation2 + $0xb0] sm:$0xff] 0.0
  %776 = vst [vmem:[#allocation2 + $0xb8] sm:$0x3] 0.0
  %777 = vst [vmem:[#allocation2 + $0xc0] sm:$0xff] 0.0
  %778 = vst [vmem:[#allocation2 + $0xc8] sm:$0xff] 0.0
  %779 = vst [vmem:[#allocation2 + $0xd0] sm:$0x3] 0.0
  %780 = vst [vmem:[#allocation2 + $0xd8] sm:$0xff] 0.0
  %781 = vst [vmem:[#allocation2 + $0xe0] sm:$0xff] 0.0
  %782 = vst [vmem:[#allocation2 + $0xe8] sm:$0x3] 0.0
  %783 = vst [vmem:[#allocation2 + $0xf0] sm:$0xff] 0.0
  %784 = vst [vmem:[#allocation2 + $0xf8] sm:$0xff] 0.0
  %785 = vst [vmem:[#allocation2 + $0x100] sm:$0x3] 0.0
  %786 = vst [vmem:[#allocation2 + $0x108] sm:$0xff] 0.0
  %787 = vst [vmem:[#allocation2 + $0x110] sm:$0xff] 0.0
  %788 = vst [vmem:[#allocation2 + $0x118] sm:$0x3] 0.0
  %789 = vst [vmem:[#allocation2 + $0x120] sm:$0xff] 0.0
  %790 = vst [vmem:[#allocation2 + $0x128] sm:$0xff] 0.0
  %791 = vst [vmem:[#allocation2 + $0x130] sm:$0x3] 0.0
  %792 = vst [vmem:[#allocation2 + $0x138] sm:$0xff] 0.0
  %793 = vst [vmem:[#allocation2 + $0x140] sm:$0xff] 0.0
  %794 = vst [vmem:[#allocation2 + $0x148] sm:$0x3] 0.0
  %795 = vst [vmem:[#allocation2 + $0x150] sm:$0xff] 0.0
  %796 = vst [vmem:[#allocation2 + $0x158] sm:$0xff] 0.0
  %797 = vst [vmem:[#allocation2 + $0x160] sm:$0x3] 0.0
  %798 = vst [vmem:[#allocation2 + $0x168] sm:$0xff] 0.0
  %799 = vst [vmem:[#allocation2 + $0x170] sm:$0xff] 0.0
  %800 = vst [vmem:[#allocation2 + $0x178] sm:$0x3] 0.0
  %801 = vst [vmem:[#allocation2 + $0x180] sm:$0xff] 0.0
  %802 = vst [vmem:[#allocation2 + $0x188] sm:$0xff] 0.0
  %803 = vst [vmem:[#allocation2 + $0x190] sm:$0x3] 0.0
  %804 = vst [vmem:[#allocation2 + $0x198] sm:$0xff] 0.0
  %805 = vst [vmem:[#allocation2 + $0x1a0] sm:$0xff] 0.0
  %806 = vst [vmem:[#allocation2 + $0x1a8] sm:$0x3] 0.0
  %807 = vst [vmem:[#allocation2 + $0x1b0] sm:$0xff] 0.0
  %808 = vst [vmem:[#allocation2 + $0x1b8] sm:$0xff] 0.0
  %809 = vst [vmem:[#allocation2 + $0x1c0] sm:$0x3] 0.0
  %810 = vst [vmem:[#allocation2 + $0x1c8] sm:$0xff] 0.0
  %811 = vst [vmem:[#allocation2 + $0x1d0] sm:$0xff] 0.0
  %812 = vst [vmem:[#allocation2 + $0x1d8] sm:$0x3] 0.0
  %813 = vst [vmem:[#allocation2 + $0x1e0] sm:$0xff] 0.0
  %814 = vst [vmem:[#allocation2 + $0x1e8] sm:$0xff] 0.0
  %815 = vst [vmem:[#allocation2 + $0x1f0] sm:$0x3] 0.0
  %816 = vst [vmem:[#allocation2 + $0x1f8] sm:$0xff] 0.0
  %817 = vst [vmem:[#allocation2 + $0x200] sm:$0xff] 0.0
  %818 = vst [vmem:[#allocation2 + $0x208] sm:$0x3] 0.0
  %819 = vst [vmem:[#allocation2 + $0x210] sm:$0xff] 0.0
  %820 = vst [vmem:[#allocation2 + $0x218] sm:$0xff] 0.0
  %821 = vst [vmem:[#allocation2 + $0x220] sm:$0x3] 0.0
  %822 = vst [vmem:[#allocation2 + $0x228] sm:$0xff] 0.0
  %823 = vst [vmem:[#allocation2 + $0x230] sm:$0xff] 0.0
  %824 = vst [vmem:[#allocation2 + $0x238] sm:$0x3] 0.0
  %825 = vst [vmem:[#allocation2 + $0x240] sm:$0xff] 0.0
  %826 = vst [vmem:[#allocation2 + $0x248] sm:$0xff] 0.0
  %827 = vst [vmem:[#allocation2 + $0x250] sm:$0x3] 0.0
  %828 = vst [vmem:[#allocation2 + $0x258] sm:$0xff] 0.0
  %829 = vst [vmem:[#allocation2 + $0x260] sm:$0xff] 0.0
  %830 = vst [vmem:[#allocation2 + $0x268] sm:$0x3] 0.0
  %831 = vst [vmem:[#allocation2 + $0x270] sm:$0xff] 0.0
  %832 = vst [vmem:[#allocation2 + $0x278] sm:$0xff] 0.0
  %833 = vst [vmem:[#allocation2 + $0x280] sm:$0x3] 0.0
  %834 = vst [vmem:[#allocation2 + $0x288] sm:$0xff] 0.0
  %835 = vst [vmem:[#allocation2 + $0x290] sm:$0xff] 0.0
  %836 = vst [vmem:[#allocation2 + $0x298] sm:$0x3] 0.0
  %837 = vst [vmem:[#allocation2 + $0x2a0] sm:$0xff] 0.0
  %838 = vst [vmem:[#allocation2 + $0x2a8] sm:$0xff] 0.0
  %839 = vst [vmem:[#allocation2 + $0x2b0] sm:$0x3] 0.0
  %840 = vst [vmem:[#allocation2 + $0x2b8] sm:$0xff] 0.0
  %841 = vst [vmem:[#allocation2 + $0x2c0] sm:$0xff] 0.0
  %842 = vst [vmem:[#allocation2 + $0x2c8] sm:$0x3] 0.0
  %843 = vst [vmem:[#allocation2 + $0x2d0] sm:$0xff] 0.0
  %844 = vst [vmem:[#allocation2 + $0x2d8] sm:$0xff] 0.0
  %845 = vst [vmem:[#allocation2 + $0x2e0] sm:$0x3] 0.0
  %846 = vst [vmem:[#allocation2 + $0x2e8] sm:$0xff] 0.0
  %847 = vst [vmem:[#allocation2 + $0x2f0] sm:$0xff] 0.0
  %848 = vst [vmem:[#allocation2 + $0x2f8] sm:$0x3] 0.0
  %849 = vst [vmem:[#allocation2 + $0x300] sm:$0xff] 0.0
  %850 = vst [vmem:[#allocation2 + $0x308] sm:$0xff] 0.0
  %851 = vst [vmem:[#allocation2 + $0x310] sm:$0x3] 0.0
  %852 = vst [vmem:[#allocation2 + $0x318] sm:$0xff] 0.0
  %853 = vst [vmem:[#allocation2 + $0x320] sm:$0xff] 0.0
  %854 = vst [vmem:[#allocation2 + $0x328] sm:$0x3] 0.0
  %855 = vst [vmem:[#allocation2 + $0x330] sm:$0xff] 0.0
  %856 = vst [vmem:[#allocation2 + $0x338] sm:$0xff] 0.0
  %857 = vst [vmem:[#allocation2 + $0x340] sm:$0x3] 0.0
  %858 = vst [vmem:[#allocation2 + $0x348] sm:$0xff] 0.0
  %859 = vst [vmem:[#allocation2 + $0x350] sm:$0xff] 0.0
  %860 = vst [vmem:[#allocation2 + $0x358] sm:$0x3] 0.0
  %s861 = scalar_lea.vmem [#allocation2], 24
  %862 = vst [vmem:[%s861 + $0x1] sm:$0xff] %v689
  %863 = vst [vmem:[%s861 + $0x9] sm:$0xff] %v690
  %864 = vst [vmem:[%s861 + $0x19] sm:$0xff] %v691
  %865 = vst [vmem:[%s861 + $0x21] sm:$0xff] %v692
  %866 = vst [vmem:[%s861 + $0x31] sm:$0xff] %v693
  %867 = vst [vmem:[%s861 + $0x39] sm:$0xff] %v694
  %868 = vst [vmem:[%s861 + $0x49] sm:$0xff] %v695
  %869 = vst [vmem:[%s861 + $0x51] sm:$0xff] %v696
  %870 = vst [vmem:[%s861 + $0x61] sm:$0xff] %v697
  %871 = vst [vmem:[%s861 + $0x69] sm:$0xff] %v698
  %872 = vst [vmem:[%s861 + $0x79] sm:$0xff] %v699
  %873 = vst [vmem:[%s861 + $0x81] sm:$0xff] %v700
  %874 = vst [vmem:[%s861 + $0x91] sm:$0xff] %v701
  %875 = vst [vmem:[%s861 + $0x99] sm:$0xff] %v702
  %876 = vst [vmem:[%s861 + $0xa9] sm:$0xff] %v703
  %877 = vst [vmem:[%s861 + $0xb1] sm:$0xff] %v704
  %878 = vst [vmem:[%s861 + $0xc1] sm:$0xff] %v705
  %879 = vst [vmem:[%s861 + $0xc9] sm:$0xff] %v706
  %880 = vst [vmem:[%s861 + $0xd9] sm:$0xff] %v707
  %881 = vst [vmem:[%s861 + $0xe1] sm:$0xff] %v708
  %882 = vst [vmem:[%s861 + $0xf1] sm:$0xff] %v709
  %883 = vst [vmem:[%s861 + $0xf9] sm:$0xff] %v710
  %884 = vst [vmem:[%s861 + $0x109] sm:$0xff] %v711
  %885 = vst [vmem:[%s861 + $0x111] sm:$0xff] %v712
  %886 = vst [vmem:[%s861 + $0x121] sm:$0xff] %v713
  %887 = vst [vmem:[%s861 + $0x129] sm:$0xff] %v714
  %888 = vst [vmem:[%s861 + $0x139] sm:$0xff] %v715
  %889 = vst [vmem:[%s861 + $0x141] sm:$0xff] %v716
  %890 = vst [vmem:[%s861 + $0x151] sm:$0xff] %v717
  %891 = vst [vmem:[%s861 + $0x159] sm:$0xff] %v718
  %892 = vst [vmem:[%s861 + $0x169] sm:$0xff] %v719
  %893 = vst [vmem:[%s861 + $0x171] sm:$0xff] %v720
  %894 = vst [vmem:[%s861 + $0x1b1] sm:$0xff] %v721
  %895 = vst [vmem:[%s861 + $0x1b9] sm:$0xff] %v722
  %896 = vst [vmem:[%s861 + $0x1c9] sm:$0xff] %v723
  %897 = vst [vmem:[%s861 + $0x1d1] sm:$0xff] %v724
  %898 = vst [vmem:[%s861 + $0x1e1] sm:$0xff] %v725
  %899 = vst [vmem:[%s861 + $0x1e9] sm:$0xff] %v726
  %900 = vst [vmem:[%s861 + $0x1f9] sm:$0xff] %v727
  %901 = vst [vmem:[%s861 + $0x201] sm:$0xff] %v728
  %902 = vst [vmem:[%s861 + $0x211] sm:$0xff] %v729
  %903 = vst [vmem:[%s861 + $0x219] sm:$0xff] %v730
  %904 = vst [vmem:[%s861 + $0x229] sm:$0xff] %v731
  %905 = vst [vmem:[%s861 + $0x231] sm:$0xff] %v732
  %906 = vst [vmem:[%s861 + $0x241] sm:$0xff] %v733
  %907 = vst [vmem:[%s861 + $0x249] sm:$0xff] %v734
  %908 = vst [vmem:[%s861 + $0x259] sm:$0xff] %v735
  %909 = vst [vmem:[%s861 + $0x261] sm:$0xff] %v736
  %910 = vst [vmem:[%s861 + $0x271] sm:$0xff] %v737
  %911 = vst [vmem:[%s861 + $0x279] sm:$0xff] %v738
  %912 = vst [vmem:[%s861 + $0x289] sm:$0xff] %v739
  %913 = vst [vmem:[%s861 + $0x291] sm:$0xff] %v740
  %914 = vst [vmem:[%s861 + $0x2a1] sm:$0xff] %v741
  %915 = vst [vmem:[%s861 + $0x2a9] sm:$0xff] %v742
  %916 = vst [vmem:[%s861 + $0x2b9] sm:$0xff] %v743
  %917 = vst [vmem:[%s861 + $0x2c1] sm:$0xff] %v744
  %918 = vst [vmem:[%s861 + $0x2d1] sm:$0xff] %v745
  %919 = vst [vmem:[%s861 + $0x2d9] sm:$0xff] %v746
  %920 = vst [vmem:[%s861 + $0x2e9] sm:$0xff] %v747
  %921 = vst [vmem:[%s861 + $0x2f1] sm:$0xff] %v748
  %922 = vst [vmem:[%s861 + $0x301] sm:$0xff] %v749
  %923 = vst [vmem:[%s861 + $0x309] sm:$0xff] %v750
  %924 = vst [vmem:[%s861 + $0x319] sm:$0xff] %v751
  %925 = vst [vmem:[%s861 + $0x321] sm:$0xff] %v752
  %v926 = vld [vmem:[#allocation2] sm:$0xff]
  %v927 = vld [vmem:[#allocation2 + $0x8] sm:$0xff]
  %v928 = vld [vmem:[#allocation2 + $0x10] sm:$0x3]
  %v929 = vld [vmem:[#allocation2 + $0x18] sm:$0xff]
  %v930 = vld [vmem:[#allocation2 + $0x20] sm:$0xff]
  %v931 = vld [vmem:[#allocation2 + $0x28] sm:$0x3]
  %v932 = vld [vmem:[#allocation2 + $0x30] sm:$0xff]
  %v933 = vld [vmem:[#allocation2 + $0x38] sm:$0xff]
  %v934 = vld [vmem:[#allocation2 + $0x40] sm:$0x3]
  %v935 = vld [vmem:[#allocation2 + $0x48] sm:$0xff]
  %v936 = vld [vmem:[#allocation2 + $0x50] sm:$0xff]
  %v937 = vld [vmem:[#allocation2 + $0x58] sm:$0x3]
  %v938 = vld [vmem:[#allocation2 + $0x60] sm:$0xff]
  %v939 = vld [vmem:[#allocation2 + $0x68] sm:$0xff]
  %v940 = vld [vmem:[#allocation2 + $0x70] sm:$0x3]
  %v941 = vld [vmem:[#allocation2 + $0x78] sm:$0xff]
  %v942 = vld [vmem:[#allocation2 + $0x80] sm:$0xff]
  %v943 = vld [vmem:[#allocation2 + $0x88] sm:$0x3]
  %v944 = vld [vmem:[#allocation2 + $0x90] sm:$0xff]
  %v945 = vld [vmem:[#allocation2 + $0x98] sm:$0xff]
  %v946 = vld [vmem:[#allocation2 + $0xa0] sm:$0x3]
  %v947 = vld [vmem:[#allocation2 + $0xa8] sm:$0xff]
  %v948 = vld [vmem:[#allocation2 + $0xb0] sm:$0xff]
  %v949 = vld [vmem:[#allocation2 + $0xb8] sm:$0x3]
  %v950 = vld [vmem:[#allocation2 + $0xc0] sm:$0xff]
  %v951 = vld [vmem:[#allocation2 + $0xc8] sm:$0xff]
  %v952 = vld [vmem:[#allocation2 + $0xd0] sm:$0x3]
  %v953 = vld [vmem:[#allocation2 + $0xd8] sm:$0xff]
  %v954 = vld [vmem:[#allocation2 + $0xe0] sm:$0xff]
  %v955 = vld [vmem:[#allocation2 + $0xe8] sm:$0x3]
  %v956 = vld [vmem:[#allocation2 + $0xf0] sm:$0xff]
  %v957 = vld [vmem:[#allocation2 + $0xf8] sm:$0xff]
  %v958 = vld [vmem:[#allocation2 + $0x100] sm:$0x3]
  %v959 = vld [vmem:[#allocation2 + $0x108] sm:$0xff]
  %v960 = vld [vmem:[#allocation2 + $0x110] sm:$0xff]
  %v961 = vld [vmem:[#allocation2 + $0x118] sm:$0x3]
  %v962 = vld [vmem:[#allocation2 + $0x120] sm:$0xff]
  %v963 = vld [vmem:[#allocation2 + $0x128] sm:$0xff]
  %v964 = vld [vmem:[#allocation2 + $0x130] sm:$0x3]
  %v965 = vld [vmem:[#allocation2 + $0x138] sm:$0xff]
  %v966 = vld [vmem:[#allocation2 + $0x140] sm:$0xff]
  %v967 = vld [vmem:[#allocation2 + $0x148] sm:$0x3]
  %v968 = vld [vmem:[#allocation2 + $0x150] sm:$0xff]
  %v969 = vld [vmem:[#allocation2 + $0x158] sm:$0xff]
  %v970 = vld [vmem:[#allocation2 + $0x160] sm:$0x3]
  %v971 = vld [vmem:[#allocation2 + $0x168] sm:$0xff]
  %v972 = vld [vmem:[#allocation2 + $0x170] sm:$0xff]
  %v973 = vld [vmem:[#allocation2 + $0x178] sm:$0x3]
  %v974 = vld [vmem:[#allocation2 + $0x180] sm:$0xff]
  %v975 = vld [vmem:[#allocation2 + $0x188] sm:$0xff]
  %v976 = vld [vmem:[#allocation2 + $0x190] sm:$0x3]
  %v977 = vld [vmem:[#allocation2 + $0x198] sm:$0xff]
  %v978 = vld [vmem:[#allocation2 + $0x1a0] sm:$0xff]
  %v979 = vld [vmem:[#allocation2 + $0x1a8] sm:$0x3]
  %v980 = vld [vmem:[#allocation2 + $0x1b0] sm:$0xff]
  %v981 = vld [vmem:[#allocation2 + $0x1b8] sm:$0xff]
  %v982 = vld [vmem:[#allocation2 + $0x1c0] sm:$0x3]
  %v983 = vld [vmem:[#allocation2 + $0x1c8] sm:$0xff]
  %v984 = vld [vmem:[#allocation2 + $0x1d0] sm:$0xff]
  %v985 = vld [vmem:[#allocation2 + $0x1d8] sm:$0x3]
  %v986 = vld [vmem:[#allocation2 + $0x1e0] sm:$0xff]
  %v987 = vld [vmem:[#allocation2 + $0x1e8] sm:$0xff]
  %v988 = vld [vmem:[#allocation2 + $0x1f0] sm:$0x3]
  %v989 = vld [vmem:[#allocation2 + $0x1f8] sm:$0xff]
  %v990 = vld [vmem:[#allocation2 + $0x200] sm:$0xff]
  %v991 = vld [vmem:[#allocation2 + $0x208] sm:$0x3]
  %v992 = vld [vmem:[#allocation2 + $0x210] sm:$0xff]
  %v993 = vld [vmem:[#allocation2 + $0x218] sm:$0xff]
  %v994 = vld [vmem:[#allocation2 + $0x220] sm:$0x3]
  %v995 = vld [vmem:[#allocation2 + $0x228] sm:$0xff]
  %v996 = vld [vmem:[#allocation2 + $0x230] sm:$0xff]
  %v997 = vld [vmem:[#allocation2 + $0x238] sm:$0x3]
  %v998 = vld [vmem:[#allocation2 + $0x240] sm:$0xff]
  %v999 = vld [vmem:[#allocation2 + $0x248] sm:$0xff]
  %v1000 = vld [vmem:[#allocation2 + $0x250] sm:$0x3]
  %v1001 = vld [vmem:[#allocation2 + $0x258] sm:$0xff]
  %v1002 = vld [vmem:[#allocation2 + $0x260] sm:$0xff]
  %v1003 = vld [vmem:[#allocation2 + $0x268] sm:$0x3]
  %v1004 = vld [vmem:[#allocation2 + $0x270] sm:$0xff]
  %v1005 = vld [vmem:[#allocation2 + $0x278] sm:$0xff]
  %v1006 = vld [vmem:[#allocation2 + $0x280] sm:$0x3]
  %v1007 = vld [vmem:[#allocation2 + $0x288] sm:$0xff]
  %v1008 = vld [vmem:[#allocation2 + $0x290] sm:$0xff]
  %v1009 = vld [vmem:[#allocation2 + $0x298] sm:$0x3]
  %v1010 = vld [vmem:[#allocation2 + $0x2a0] sm:$0xff]
  %v1011 = vld [vmem:[#allocation2 + $0x2a8] sm:$0xff]
  %v1012 = vld [vmem:[#allocation2 + $0x2b0] sm:$0x3]
  %v1013 = vld [vmem:[#allocation2 + $0x2b8] sm:$0xff]
  %v1014 = vld [vmem:[#allocation2 + $0x2c0] sm:$0xff]
  %v1015 = vld [vmem:[#allocation2 + $0x2c8] sm:$0x3]
  %v1016 = vld [vmem:[#allocation2 + $0x2d0] sm:$0xff]
  %v1017 = vld [vmem:[#allocation2 + $0x2d8] sm:$0xff]
  %v1018 = vld [vmem:[#allocation2 + $0x2e0] sm:$0x3]
  %v1019 = vld [vmem:[#allocation2 + $0x2e8] sm:$0xff]
  %v1020 = vld [vmem:[#allocation2 + $0x2f0] sm:$0xff]
  %v1021 = vld [vmem:[#allocation2 + $0x2f8] sm:$0x3]
  %v1022 = vld [vmem:[#allocation2 + $0x300] sm:$0xff]
  %v1023 = vld [vmem:[#allocation2 + $0x308] sm:$0xff]
  %v1024 = vld [vmem:[#allocation2 + $0x310] sm:$0x3]
  %v1025 = vld [vmem:[#allocation2 + $0x318] sm:$0xff]
  %v1026 = vld [vmem:[#allocation2 + $0x320] sm:$0xff]
  %v1027 = vld [vmem:[#allocation2 + $0x328] sm:$0x3]
  %v1028 = vld [vmem:[#allocation2 + $0x330] sm:$0xff]
  %v1029 = vld [vmem:[#allocation2 + $0x338] sm:$0xff]
  %v1030 = vld [vmem:[#allocation2 + $0x340] sm:$0x3]
  %v1031 = vld [vmem:[#allocation2 + $0x348] sm:$0xff]
  %v1032 = vld [vmem:[#allocation2 + $0x350] sm:$0xff]
  %v1033 = vld [vmem:[#allocation2 + $0x358] sm:$0x3]
  %v1034 = vpack.c.bf16 %v926, %v926
  %v1035 = vpack.c.bf16 %v927, %v927
  %v1036 = vpack.c.bf16 %v929, %v929
  %v1037 = vpack.c.bf16 %v930, %v930
  %v1038 = vpack.c.bf16 %v932, %v932
  %v1039 = vpack.c.bf16 %v933, %v933
  %v1040 = vpack.c.bf16 %v935, %v935
  %v1041 = vpack.c.bf16 %v936, %v936
  %v1042 = vpack.c.bf16 %v938, %v938
  %v1043 = vpack.c.bf16 %v939, %v939
  %v1044 = vpack.c.bf16 %v941, %v941
  %v1045 = vpack.c.bf16 %v942, %v942
  %v1046 = vpack.c.bf16 %v944, %v944
  %v1047 = vpack.c.bf16 %v945, %v945
  %v1048 = vpack.c.bf16 %v947, %v947
  %v1049 = vpack.c.bf16 %v948, %v948
  %v1050 = vpack.c.bf16 %v950, %v950
  %v1051 = vpack.c.bf16 %v951, %v951
  %v1052 = vpack.c.bf16 %v953, %v953
  %v1053 = vpack.c.bf16 %v954, %v954
  %v1054 = vpack.c.bf16 %v956, %v956
  %v1055 = vpack.c.bf16 %v957, %v957
  %v1056 = vpack.c.bf16 %v959, %v959
  %v1057 = vpack.c.bf16 %v960, %v960
  %v1058 = vpack.c.bf16 %v962, %v962
  %v1059 = vpack.c.bf16 %v963, %v963
  %v1060 = vpack.c.bf16 %v965, %v965
  %v1061 = vpack.c.bf16 %v966, %v966
  %v1062 = vpack.c.bf16 %v968, %v968
  %v1063 = vpack.c.bf16 %v969, %v969
  %v1064 = vpack.c.bf16 %v971, %v971
  %v1065 = vpack.c.bf16 %v972, %v972
  %v1066 = vpack.c.bf16 %v980, %v980
  %v1067 = vpack.c.bf16 %v981, %v981
  %v1068 = vpack.c.bf16 %v983, %v983
  %v1069 = vpack.c.bf16 %v984, %v984
  %v1070 = vpack.c.bf16 %v986, %v986
  %v1071 = vpack.c.bf16 %v987, %v987
  %v1072 = vpack.c.bf16 %v989, %v989
  %v1073 = vpack.c.bf16 %v990, %v990
  %v1074 = vpack.c.bf16 %v992, %v992
  %v1075 = vpack.c.bf16 %v993, %v993
  %v1076 = vpack.c.bf16 %v995, %v995
  %v1077 = vpack.c.bf16 %v996, %v996
  %v1078 = vpack.c.bf16 %v998, %v998
  %v1079 = vpack.c.bf16 %v999, %v999
  %v1080 = vpack.c.bf16 %v1001, %v1001
  %v1081 = vpack.c.bf16 %v1002, %v1002
  %v1082 = vpack.c.bf16 %v1004, %v1004
  %v1083 = vpack.c.bf16 %v1005, %v1005
  %v1084 = vpack.c.bf16 %v1007, %v1007
  %v1085 = vpack.c.bf16 %v1008, %v1008
  %v1086 = vpack.c.bf16 %v1010, %v1010
  %v1087 = vpack.c.bf16 %v1011, %v1011
  %v1088 = vpack.c.bf16 %v1013, %v1013
  %v1089 = vpack.c.bf16 %v1014, %v1014
  %v1090 = vpack.c.bf16 %v1016, %v1016
  %v1091 = vpack.c.bf16 %v1017, %v1017
  %v1092 = vpack.c.bf16 %v1019, %v1019
  %v1093 = vpack.c.bf16 %v1020, %v1020
  %v1094 = vpack.c.bf16 %v1022, %v1022
  %v1095 = vpack.c.bf16 %v1023, %v1023
  %v1096 = vpack.c.bf16 %v1025, %v1025
  %v1097 = vpack.c.bf16 %v1026, %v1026
  %v1098 = vpack.c.bf16 %v928, %v928
  %v1099 = vpack.c.bf16 %v931, %v931
  %v1100 = vpack.c.bf16 %v934, %v934
  %v1101 = vpack.c.bf16 %v937, %v937
  %v1102 = vpack.c.bf16 %v940, %v940
  %v1103 = vpack.c.bf16 %v943, %v943
  %v1104 = vpack.c.bf16 %v946, %v946
  %v1105 = vpack.c.bf16 %v949, %v949
  %v1106 = vpack.c.bf16 %v952, %v952
  %v1107 = vpack.c.bf16 %v955, %v955
  %v1108 = vpack.c.bf16 %v958, %v958
  %v1109 = vpack.c.bf16 %v961, %v961
  %v1110 = vpack.c.bf16 %v964, %v964
  %v1111 = vpack.c.bf16 %v967, %v967
  %v1112 = vpack.c.bf16 %v970, %v970
  %v1113 = vpack.c.bf16 %v973, %v973
  %v1114 = vpack.c.bf16 %v982, %v982
  %v1115 = vpack.c.bf16 %v985, %v985
  %v1116 = vpack.c.bf16 %v988, %v988
  %v1117 = vpack.c.bf16 %v991, %v991
  %v1118 = vpack.c.bf16 %v994, %v994
  %v1119 = vpack.c.bf16 %v997, %v997
  %v1120 = vpack.c.bf16 %v1000, %v1000
  %v1121 = vpack.c.bf16 %v1003, %v1003
  %v1122 = vpack.c.bf16 %v1006, %v1006
  %v1123 = vpack.c.bf16 %v1009, %v1009
  %v1124 = vpack.c.bf16 %v1012, %v1012
  %v1125 = vpack.c.bf16 %v1015, %v1015
  %v1126 = vpack.c.bf16 %v1018, %v1018
  %v1127 = vpack.c.bf16 %v1021, %v1021
  %v1128 = vpack.c.bf16 %v1024, %v1024
  %v1129 = vpack.c.bf16 %v1027, %v1027
  %v1130 = vpack.c.bf16 %v974, %v974
  %v1131 = vpack.c.bf16 %v975, %v975
  %v1132 = vpack.c.bf16 %v1028, %v1028
  %v1133 = vpack.c.bf16 %v1029, %v1029
  %v1134 = vpack.c.bf16 %v976, %v976
  %v1135 = vpack.c.bf16 %v1030, %v1030
  %v1136 = vpack.c.bf16 %v977, %v977
  %v1137 = vpack.c.bf16 %v978, %v978
  %v1138 = vpack.c.bf16 %v1031, %v1031
  %v1139 = vpack.c.bf16 %v1032, %v1032
  %v1140 = vpack.c.bf16 %v979, %v979
  %v1141 = vpack.c.bf16 %v1033, %v1033
  %v1206 = vunpack.c.l.b16 %v1034
  %v1207 = vunpack.c.l.b16 %v1035
  %v1208 = vunpack.c.l.b16 %v1036
  %v1209 = vunpack.c.l.b16 %v1037
  %v1210 = vunpack.c.l.b16 %v1038
  %v1211 = vunpack.c.l.b16 %v1039
  %v1212 = vunpack.c.l.b16 %v1040
  %v1213 = vunpack.c.l.b16 %v1041
  %v1214 = vunpack.c.l.b16 %v1042
  %v1215 = vunpack.c.l.b16 %v1043
  %v1216 = vunpack.c.l.b16 %v1044
  %v1217 = vunpack.c.l.b16 %v1045
  %v1218 = vunpack.c.l.b16 %v1046
  %v1219 = vunpack.c.l.b16 %v1047
  %v1220 = vunpack.c.l.b16 %v1048
  %v1221 = vunpack.c.l.b16 %v1049
  %v1222 = vunpack.c.l.b16 %v1050
  %v1223 = vunpack.c.l.b16 %v1051
  %v1224 = vunpack.c.l.b16 %v1052
  %v1225 = vunpack.c.l.b16 %v1053
  %v1226 = vunpack.c.l.b16 %v1054
  %v1227 = vunpack.c.l.b16 %v1055
  %v1228 = vunpack.c.l.b16 %v1056
  %v1229 = vunpack.c.l.b16 %v1057
  %v1230 = vunpack.c.l.b16 %v1058
  %v1231 = vunpack.c.l.b16 %v1059
  %v1232 = vunpack.c.l.b16 %v1060
  %v1233 = vunpack.c.l.b16 %v1061
  %v1234 = vunpack.c.l.b16 %v1062
  %v1235 = vunpack.c.l.b16 %v1063
  %v1236 = vunpack.c.l.b16 %v1064
  %v1237 = vunpack.c.l.b16 %v1065
  %v1238 = vunpack.c.l.b16 %v1066
  %v1239 = vunpack.c.l.b16 %v1067
  %v1240 = vunpack.c.l.b16 %v1068
  %v1241 = vunpack.c.l.b16 %v1069
  %v1242 = vunpack.c.l.b16 %v1070
  %v1243 = vunpack.c.l.b16 %v1071
  %v1244 = vunpack.c.l.b16 %v1072
  %v1245 = vunpack.c.l.b16 %v1073
  %v1246 = vunpack.c.l.b16 %v1074
  %v1247 = vunpack.c.l.b16 %v1075
  %v1248 = vunpack.c.l.b16 %v1076
  %v1249 = vunpack.c.l.b16 %v1077
  %v1250 = vunpack.c.l.b16 %v1078
  %v1251 = vunpack.c.l.b16 %v1079
  %v1252 = vunpack.c.l.b16 %v1080
  %v1253 = vunpack.c.l.b16 %v1081
  %v1254 = vunpack.c.l.b16 %v1082
  %v1255 = vunpack.c.l.b16 %v1083
  %v1256 = vunpack.c.l.b16 %v1084
  %v1257 = vunpack.c.l.b16 %v1085
  %v1258 = vunpack.c.l.b16 %v1086
  %v1259 = vunpack.c.l.b16 %v1087
  %v1260 = vunpack.c.l.b16 %v1088
  %v1261 = vunpack.c.l.b16 %v1089
  %v1262 = vunpack.c.l.b16 %v1090
  %v1263 = vunpack.c.l.b16 %v1091
  %v1264 = vunpack.c.l.b16 %v1092
  %v1265 = vunpack.c.l.b16 %v1093
  %v1266 = vunpack.c.l.b16 %v1094
  %v1267 = vunpack.c.l.b16 %v1095
  %v1268 = vunpack.c.l.b16 %v1096
  %v1269 = vunpack.c.l.b16 %v1097
  %v1270 = vpack.c.b16 %v1207, %v1206
  %v1271 = vpack.c.b16 %v1209, %v1208
  %v1272 = vpack.c.b16 %v1211, %v1210
  %v1273 = vpack.c.b16 %v1213, %v1212
  %v1274 = vpack.c.b16 %v1215, %v1214
  %v1275 = vpack.c.b16 %v1217, %v1216
  %v1276 = vpack.c.b16 %v1219, %v1218
  %v1277 = vpack.c.b16 %v1221, %v1220
  %v1278 = vpack.c.b16 %v1223, %v1222
  %v1279 = vpack.c.b16 %v1225, %v1224
  %v1280 = vpack.c.b16 %v1227, %v1226
  %v1281 = vpack.c.b16 %v1229, %v1228
  %v1282 = vpack.c.b16 %v1231, %v1230
  %v1283 = vpack.c.b16 %v1233, %v1232
  %v1284 = vpack.c.b16 %v1235, %v1234
  %v1285 = vpack.c.b16 %v1237, %v1236
  %v1286 = vpack.c.b16 %v1239, %v1238
  %v1287 = vpack.c.b16 %v1241, %v1240
  %v1288 = vpack.c.b16 %v1243, %v1242
  %v1289 = vpack.c.b16 %v1245, %v1244
  %v1290 = vpack.c.b16 %v1247, %v1246
  %v1291 = vpack.c.b16 %v1249, %v1248
  %v1292 = vpack.c.b16 %v1251, %v1250
  %v1293 = vpack.c.b16 %v1253, %v1252
  %v1294 = vpack.c.b16 %v1255, %v1254
  %v1295 = vpack.c.b16 %v1257, %v1256
  %v1296 = vpack.c.b16 %v1259, %v1258
  %v1297 = vpack.c.b16 %v1261, %v1260
  %v1298 = vpack.c.b16 %v1263, %v1262
  %v1299 = vpack.c.b16 %v1265, %v1264
  %v1300 = vpack.c.b16 %v1267, %v1266
  %v1301 = vpack.c.b16 %v1269, %v1268
  %v1366 = vunpack.c.l.b16 %v1098
  %v1367 = vunpack.c.l.b16 %v1099
  %v1368 = vunpack.c.l.b16 %v1100
  %v1369 = vunpack.c.l.b16 %v1101
  %v1370 = vunpack.c.l.b16 %v1102
  %v1371 = vunpack.c.l.b16 %v1103
  %v1372 = vunpack.c.l.b16 %v1104
  %v1373 = vunpack.c.l.b16 %v1105
  %v1374 = vunpack.c.l.b16 %v1106
  %v1375 = vunpack.c.l.b16 %v1107
  %v1376 = vunpack.c.l.b16 %v1108
  %v1377 = vunpack.c.l.b16 %v1109
  %v1378 = vunpack.c.l.b16 %v1110
  %v1379 = vunpack.c.l.b16 %v1111
  %v1380 = vunpack.c.l.b16 %v1112
  %v1381 = vunpack.c.l.b16 %v1113
  %v1382 = vunpack.c.l.b16 %v1114
  %v1383 = vunpack.c.l.b16 %v1115
  %v1384 = vunpack.c.l.b16 %v1116
  %v1385 = vunpack.c.l.b16 %v1117
  %v1386 = vunpack.c.l.b16 %v1118
  %v1387 = vunpack.c.l.b16 %v1119
  %v1388 = vunpack.c.l.b16 %v1120
  %v1389 = vunpack.c.l.b16 %v1121
  %v1390 = vunpack.c.l.b16 %v1122
  %v1391 = vunpack.c.l.b16 %v1123
  %v1392 = vunpack.c.l.b16 %v1124
  %v1393 = vunpack.c.l.b16 %v1125
  %v1394 = vunpack.c.l.b16 %v1126
  %v1395 = vunpack.c.l.b16 %v1127
  %v1396 = vunpack.c.l.b16 %v1128
  %v1397 = vunpack.c.l.b16 %v1129
  %v1398 = vpack.c.b16 %v1366, %v1366
  %v1399 = vpack.c.b16 %v1367, %v1367
  %v1400 = vpack.c.b16 %v1368, %v1368
  %v1401 = vpack.c.b16 %v1369, %v1369
  %v1402 = vpack.c.b16 %v1370, %v1370
  %v1403 = vpack.c.b16 %v1371, %v1371
  %v1404 = vpack.c.b16 %v1372, %v1372
  %v1405 = vpack.c.b16 %v1373, %v1373
  %v1406 = vpack.c.b16 %v1374, %v1374
  %v1407 = vpack.c.b16 %v1375, %v1375
  %v1408 = vpack.c.b16 %v1376, %v1376
  %v1409 = vpack.c.b16 %v1377, %v1377
  %v1410 = vpack.c.b16 %v1378, %v1378
  %v1411 = vpack.c.b16 %v1379, %v1379
  %v1412 = vpack.c.b16 %v1380, %v1380
  %v1413 = vpack.c.b16 %v1381, %v1381
  %v1414 = vpack.c.b16 %v1382, %v1382
  %v1415 = vpack.c.b16 %v1383, %v1383
  %v1416 = vpack.c.b16 %v1384, %v1384
  %v1417 = vpack.c.b16 %v1385, %v1385
  %v1418 = vpack.c.b16 %v1386, %v1386
  %v1419 = vpack.c.b16 %v1387, %v1387
  %v1420 = vpack.c.b16 %v1388, %v1388
  %v1421 = vpack.c.b16 %v1389, %v1389
  %v1422 = vpack.c.b16 %v1390, %v1390
  %v1423 = vpack.c.b16 %v1391, %v1391
  %v1424 = vpack.c.b16 %v1392, %v1392
  %v1425 = vpack.c.b16 %v1393, %v1393
  %v1426 = vpack.c.b16 %v1394, %v1394
  %v1427 = vpack.c.b16 %v1395, %v1395
  %v1428 = vpack.c.b16 %v1396, %v1396
  %v1429 = vpack.c.b16 %v1397, %v1397
  %vm1430 = vsmask.f32 7424
  %v1432 = vshrl.u32 %v1270, 16
  %v1434 = vshll.u32 %v1270, 16
  %v1436 = vrot.slane %v1434, 1
  %v1437 = vor.u32 %v1432, %v1436
  %v1439 = vshll.u32 %v1398, 16
  %v1441 = vrot.slane %v1439, 1
  %v1442 = vsel %vm1430, %v1437, %v1441
  %v1444 = vshrl.u32 %v1271, 16
  %v1446 = vshll.u32 %v1271, 16
  %v1448 = vrot.slane %v1446, 1
  %v1449 = vor.u32 %v1444, %v1448
  %v1451 = vshll.u32 %v1399, 16
  %v1453 = vrot.slane %v1451, 1
  %v1454 = vsel %vm1430, %v1449, %v1453
  %v1456 = vshrl.u32 %v1272, 16
  %v1458 = vshll.u32 %v1272, 16
  %v1460 = vrot.slane %v1458, 1
  %v1461 = vor.u32 %v1456, %v1460
  %v1463 = vshll.u32 %v1400, 16
  %v1465 = vrot.slane %v1463, 1
  %v1466 = vsel %vm1430, %v1461, %v1465
  %v1468 = vshrl.u32 %v1273, 16
  %v1470 = vshll.u32 %v1273, 16
  %v1472 = vrot.slane %v1470, 1
  %v1473 = vor.u32 %v1468, %v1472
  %v1475 = vshll.u32 %v1401, 16
  %v1477 = vrot.slane %v1475, 1
  %v1478 = vsel %vm1430, %v1473, %v1477
  %v1480 = vshrl.u32 %v1274, 16
  %v1482 = vshll.u32 %v1274, 16
  %v1484 = vrot.slane %v1482, 1
  %v1485 = vor.u32 %v1480, %v1484
  %v1487 = vshll.u32 %v1402, 16
  %v1489 = vrot.slane %v1487, 1
  %v1490 = vsel %vm1430, %v1485, %v1489
  %v1492 = vshrl.u32 %v1275, 16
  %v1494 = vshll.u32 %v1275, 16
  %v1496 = vrot.slane %v1494, 1
  %v1497 = vor.u32 %v1492, %v1496
  %v1499 = vshll.u32 %v1403, 16
  %v1501 = vrot.slane %v1499, 1
  %v1502 = vsel %vm1430, %v1497, %v1501
  %v1504 = vshrl.u32 %v1276, 16
  %v1506 = vshll.u32 %v1276, 16
  %v1508 = vrot.slane %v1506, 1
  %v1509 = vor.u32 %v1504, %v1508
  %v1511 = vshll.u32 %v1404, 16
  %v1513 = vrot.slane %v1511, 1
  %v1514 = vsel %vm1430, %v1509, %v1513
  %v1516 = vshrl.u32 %v1277, 16
  %v1518 = vshll.u32 %v1277, 16
  %v1520 = vrot.slane %v1518, 1
  %v1521 = vor.u32 %v1516, %v1520
  %v1523 = vshll.u32 %v1405, 16
  %v1525 = vrot.slane %v1523, 1
  %v1526 = vsel %vm1430, %v1521, %v1525
  %v1528 = vshrl.u32 %v1278, 16
  %v1530 = vshll.u32 %v1278, 16
  %v1532 = vrot.slane %v1530, 1
  %v1533 = vor.u32 %v1528, %v1532
  %v1535 = vshll.u32 %v1406, 16
  %v1537 = vrot.slane %v1535, 1
  %v1538 = vsel %vm1430, %v1533, %v1537
  %v1540 = vshrl.u32 %v1279, 16
  %v1542 = vshll.u32 %v1279, 16
  %v1544 = vrot.slane %v1542, 1
  %v1545 = vor.u32 %v1540, %v1544
  %v1547 = vshll.u32 %v1407, 16
  %v1549 = vrot.slane %v1547, 1
  %v1550 = vsel %vm1430, %v1545, %v1549
  %v1552 = vshrl.u32 %v1280, 16
  %v1554 = vshll.u32 %v1280, 16
  %v1556 = vrot.slane %v1554, 1
  %v1557 = vor.u32 %v1552, %v1556
  %v1559 = vshll.u32 %v1408, 16
  %v1561 = vrot.slane %v1559, 1
  %v1562 = vsel %vm1430, %v1557, %v1561
  %v1564 = vshrl.u32 %v1281, 16
  %v1566 = vshll.u32 %v1281, 16
  %v1568 = vrot.slane %v1566, 1
  %v1569 = vor.u32 %v1564, %v1568
  %v1571 = vshll.u32 %v1409, 16
  %v1573 = vrot.slane %v1571, 1
  %v1574 = vsel %vm1430, %v1569, %v1573
  %v1576 = vshrl.u32 %v1282, 16
  %v1578 = vshll.u32 %v1282, 16
  %v1580 = vrot.slane %v1578, 1
  %v1581 = vor.u32 %v1576, %v1580
  %v1583 = vshll.u32 %v1410, 16
  %v1585 = vrot.slane %v1583, 1
  %v1586 = vsel %vm1430, %v1581, %v1585
  %v1588 = vshrl.u32 %v1283, 16
  %v1590 = vshll.u32 %v1283, 16
  %v1592 = vrot.slane %v1590, 1
  %v1593 = vor.u32 %v1588, %v1592
  %v1595 = vshll.u32 %v1411, 16
  %v1597 = vrot.slane %v1595, 1
  %v1598 = vsel %vm1430, %v1593, %v1597
  %v1600 = vshrl.u32 %v1284, 16
  %v1602 = vshll.u32 %v1284, 16
  %v1604 = vrot.slane %v1602, 1
  %v1605 = vor.u32 %v1600, %v1604
  %v1607 = vshll.u32 %v1412, 16
  %v1609 = vrot.slane %v1607, 1
  %v1610 = vsel %vm1430, %v1605, %v1609
  %v1612 = vshrl.u32 %v1285, 16
  %v1614 = vshll.u32 %v1285, 16
  %v1616 = vrot.slane %v1614, 1
  %v1617 = vor.u32 %v1612, %v1616
  %v1619 = vshll.u32 %v1413, 16
  %v1621 = vrot.slane %v1619, 1
  %v1622 = vsel %vm1430, %v1617, %v1621
  %v1624 = vshrl.u32 %v1286, 16
  %v1626 = vshll.u32 %v1286, 16
  %v1628 = vrot.slane %v1626, 1
  %v1629 = vor.u32 %v1624, %v1628
  %v1631 = vshll.u32 %v1414, 16
  %v1633 = vrot.slane %v1631, 1
  %v1634 = vsel %vm1430, %v1629, %v1633
  %v1636 = vshrl.u32 %v1287, 16
  %v1638 = vshll.u32 %v1287, 16
  %v1640 = vrot.slane %v1638, 1
  %v1641 = vor.u32 %v1636, %v1640
  %v1643 = vshll.u32 %v1415, 16
  %v1645 = vrot.slane %v1643, 1
  %v1646 = vsel %vm1430, %v1641, %v1645
  %v1648 = vshrl.u32 %v1288, 16
  %v1650 = vshll.u32 %v1288, 16
  %v1652 = vrot.slane %v1650, 1
  %v1653 = vor.u32 %v1648, %v1652
  %v1655 = vshll.u32 %v1416, 16
  %v1657 = vrot.slane %v1655, 1
  %v1658 = vsel %vm1430, %v1653, %v1657
  %v1660 = vshrl.u32 %v1289, 16
  %v1662 = vshll.u32 %v1289, 16
  %v1664 = vrot.slane %v1662, 1
  %v1665 = vor.u32 %v1660, %v1664
  %v1667 = vshll.u32 %v1417, 16
  %v1669 = vrot.slane %v1667, 1
  %v1670 = vsel %vm1430, %v1665, %v1669
  %v1672 = vshrl.u32 %v1290, 16
  %v1674 = vshll.u32 %v1290, 16
  %v1676 = vrot.slane %v1674, 1
  %v1677 = vor.u32 %v1672, %v1676
  %v1679 = vshll.u32 %v1418, 16
  %v1681 = vrot.slane %v1679, 1
  %v1682 = vsel %vm1430, %v1677, %v1681
  %v1684 = vshrl.u32 %v1291, 16
  %v1686 = vshll.u32 %v1291, 16
  %v1688 = vrot.slane %v1686, 1
  %v1689 = vor.u32 %v1684, %v1688
  %v1691 = vshll.u32 %v1419, 16
  %v1693 = vrot.slane %v1691, 1
  %v1694 = vsel %vm1430, %v1689, %v1693
  %v1696 = vshrl.u32 %v1292, 16
  %v1698 = vshll.u32 %v1292, 16
  %v1700 = vrot.slane %v1698, 1
  %v1701 = vor.u32 %v1696, %v1700
  %v1703 = vshll.u32 %v1420, 16
  %v1705 = vrot.slane %v1703, 1
  %v1706 = vsel %vm1430, %v1701, %v1705
  %v1708 = vshrl.u32 %v1293, 16
  %v1710 = vshll.u32 %v1293, 16
  %v1712 = vrot.slane %v1710, 1
  %v1713 = vor.u32 %v1708, %v1712
  %v1715 = vshll.u32 %v1421, 16
  %v1717 = vrot.slane %v1715, 1
  %v1718 = vsel %vm1430, %v1713, %v1717
  %v1720 = vshrl.u32 %v1294, 16
  %v1722 = vshll.u32 %v1294, 16
  %v1724 = vrot.slane %v1722, 1
  %v1725 = vor.u32 %v1720, %v1724
  %v1727 = vshll.u32 %v1422, 16
  %v1729 = vrot.slane %v1727, 1
  %v1730 = vsel %vm1430, %v1725, %v1729
  %v1732 = vshrl.u32 %v1295, 16
  %v1734 = vshll.u32 %v1295, 16
  %v1736 = vrot.slane %v1734, 1
  %v1737 = vor.u32 %v1732, %v1736
  %v1739 = vshll.u32 %v1423, 16
  %v1741 = vrot.slane %v1739, 1
  %v1742 = vsel %vm1430, %v1737, %v1741
  %v1744 = vshrl.u32 %v1296, 16
  %v1746 = vshll.u32 %v1296, 16
  %v1748 = vrot.slane %v1746, 1
  %v1749 = vor.u32 %v1744, %v1748
  %v1751 = vshll.u32 %v1424, 16
  %v1753 = vrot.slane %v1751, 1
  %v1754 = vsel %vm1430, %v1749, %v1753
  %v1756 = vshrl.u32 %v1297, 16
  %v1758 = vshll.u32 %v1297, 16
  %v1760 = vrot.slane %v1758, 1
  %v1761 = vor.u32 %v1756, %v1760
  %v1763 = vshll.u32 %v1425, 16
  %v1765 = vrot.slane %v1763, 1
  %v1766 = vsel %vm1430, %v1761, %v1765
  %v1768 = vshrl.u32 %v1298, 16
  %v1770 = vshll.u32 %v1298, 16
  %v1772 = vrot.slane %v1770, 1
  %v1773 = vor.u32 %v1768, %v1772
  %v1775 = vshll.u32 %v1426, 16
  %v1777 = vrot.slane %v1775, 1
  %v1778 = vsel %vm1430, %v1773, %v1777
  %v1780 = vshrl.u32 %v1299, 16
  %v1782 = vshll.u32 %v1299, 16
  %v1784 = vrot.slane %v1782, 1
  %v1785 = vor.u32 %v1780, %v1784
  %v1787 = vshll.u32 %v1427, 16
  %v1789 = vrot.slane %v1787, 1
  %v1790 = vsel %vm1430, %v1785, %v1789
  %v1792 = vshrl.u32 %v1300, 16
  %v1794 = vshll.u32 %v1300, 16
  %v1796 = vrot.slane %v1794, 1
  %v1797 = vor.u32 %v1792, %v1796
  %v1799 = vshll.u32 %v1428, 16
  %v1801 = vrot.slane %v1799, 1
  %v1802 = vsel %vm1430, %v1797, %v1801
  %v1804 = vshrl.u32 %v1301, 16
  %v1806 = vshll.u32 %v1301, 16
  %v1808 = vrot.slane %v1806, 1
  %v1809 = vor.u32 %v1804, %v1808
  %v1811 = vshll.u32 %v1429, 16
  %v1813 = vrot.slane %v1811, 1
  %v1814 = vsel %vm1430, %v1809, %v1813
  %vm1847 = vcmask 1046528
  %v1848 = vrot.slane %v1270, 1
  %v1849 = vrot.slane %v1398, 1
  %v1850 = vsel %vm1847, %v1848, %v1849
  %v1851 = vrot.slane %v1271, 1
  %v1852 = vrot.slane %v1399, 1
  %v1853 = vsel %vm1847, %v1851, %v1852
  %v1854 = vrot.slane %v1272, 1
  %v1855 = vrot.slane %v1400, 1
  %v1856 = vsel %vm1847, %v1854, %v1855
  %v1857 = vrot.slane %v1273, 1
  %v1858 = vrot.slane %v1401, 1
  %v1859 = vsel %vm1847, %v1857, %v1858
  %v1860 = vrot.slane %v1274, 1
  %v1861 = vrot.slane %v1402, 1
  %v1862 = vsel %vm1847, %v1860, %v1861
  %v1863 = vrot.slane %v1275, 1
  %v1864 = vrot.slane %v1403, 1
  %v1865 = vsel %vm1847, %v1863, %v1864
  %v1866 = vrot.slane %v1276, 1
  %v1867 = vrot.slane %v1404, 1
  %v1868 = vsel %vm1847, %v1866, %v1867
  %v1869 = vrot.slane %v1277, 1
  %v1870 = vrot.slane %v1405, 1
  %v1871 = vsel %vm1847, %v1869, %v1870
  %v1872 = vrot.slane %v1278, 1
  %v1873 = vrot.slane %v1406, 1
  %v1874 = vsel %vm1847, %v1872, %v1873
  %v1875 = vrot.slane %v1279, 1
  %v1876 = vrot.slane %v1407, 1
  %v1877 = vsel %vm1847, %v1875, %v1876
  %v1878 = vrot.slane %v1280, 1
  %v1879 = vrot.slane %v1408, 1
  %v1880 = vsel %vm1847, %v1878, %v1879
  %v1881 = vrot.slane %v1281, 1
  %v1882 = vrot.slane %v1409, 1
  %v1883 = vsel %vm1847, %v1881, %v1882
  %v1884 = vrot.slane %v1282, 1
  %v1885 = vrot.slane %v1410, 1
  %v1886 = vsel %vm1847, %v1884, %v1885
  %v1887 = vrot.slane %v1283, 1
  %v1888 = vrot.slane %v1411, 1
  %v1889 = vsel %vm1847, %v1887, %v1888
  %v1890 = vrot.slane %v1284, 1
  %v1891 = vrot.slane %v1412, 1
  %v1892 = vsel %vm1847, %v1890, %v1891
  %v1893 = vrot.slane %v1285, 1
  %v1894 = vrot.slane %v1413, 1
  %v1895 = vsel %vm1847, %v1893, %v1894
  %v1896 = vrot.slane %v1286, 1
  %v1897 = vrot.slane %v1414, 1
  %v1898 = vsel %vm1847, %v1896, %v1897
  %v1899 = vrot.slane %v1287, 1
  %v1900 = vrot.slane %v1415, 1
  %v1901 = vsel %vm1847, %v1899, %v1900
  %v1902 = vrot.slane %v1288, 1
  %v1903 = vrot.slane %v1416, 1
  %v1904 = vsel %vm1847, %v1902, %v1903
  %v1905 = vrot.slane %v1289, 1
  %v1906 = vrot.slane %v1417, 1
  %v1907 = vsel %vm1847, %v1905, %v1906
  %v1908 = vrot.slane %v1290, 1
  %v1909 = vrot.slane %v1418, 1
  %v1910 = vsel %vm1847, %v1908, %v1909
  %v1911 = vrot.slane %v1291, 1
  %v1912 = vrot.slane %v1419, 1
  %v1913 = vsel %vm1847, %v1911, %v1912
  %v1914 = vrot.slane %v1292, 1
  %v1915 = vrot.slane %v1420, 1
  %v1916 = vsel %vm1847, %v1914, %v1915
  %v1917 = vrot.slane %v1293, 1
  %v1918 = vrot.slane %v1421, 1
  %v1919 = vsel %vm1847, %v1917, %v1918
  %v1920 = vrot.slane %v1294, 1
  %v1921 = vrot.slane %v1422, 1
  %v1922 = vsel %vm1847, %v1920, %v1921
  %v1923 = vrot.slane %v1295, 1
  %v1924 = vrot.slane %v1423, 1
  %v1925 = vsel %vm1847, %v1923, %v1924
  %v1926 = vrot.slane %v1296, 1
  %v1927 = vrot.slane %v1424, 1
  %v1928 = vsel %vm1847, %v1926, %v1927
  %v1929 = vrot.slane %v1297, 1
  %v1930 = vrot.slane %v1425, 1
  %v1931 = vsel %vm1847, %v1929, %v1930
  %v1932 = vrot.slane %v1298, 1
  %v1933 = vrot.slane %v1426, 1
  %v1934 = vsel %vm1847, %v1932, %v1933
  %v1935 = vrot.slane %v1299, 1
  %v1936 = vrot.slane %v1427, 1
  %v1937 = vsel %vm1847, %v1935, %v1936
  %v1938 = vrot.slane %v1300, 1
  %v1939 = vrot.slane %v1428, 1
  %v1940 = vsel %vm1847, %v1938, %v1939
  %v1941 = vrot.slane %v1301, 1
  %v1942 = vrot.slane %v1429, 1
  %v1943 = vsel %vm1847, %v1941, %v1942
  %v1980 = vunpack.c.l.b16 %v1130
  %v1981 = vunpack.c.l.b16 %v1131
  %v1982 = vunpack.c.l.b16 %v1132
  %v1983 = vunpack.c.l.b16 %v1133
  %v1984 = vpack.c.b16 %v1981, %v1980
  %v1985 = vpack.c.b16 %v1983, %v1982
  %v1990 = vunpack.c.l.b16 %v1134
  %v1991 = vunpack.c.l.b16 %v1135
  %v1992 = vpack.c.b16 %v1990, %v1990
  %v1993 = vpack.c.b16 %v1991, %v1991
  %v1995 = vshrl.u32 %v1984, 16
  %v1997 = vshll.u32 %v1984, 16
  %v1999 = vrot.slane %v1997, 1
  %v2000 = vor.u32 %v1995, %v1999
  %v2002 = vshll.u32 %v1992, 16
  %v2004 = vrot.slane %v2002, 1
  %v2005 = vsel %vm1430, %v2000, %v2004
  %v2007 = vshrl.u32 %v1985, 16
  %v2009 = vshll.u32 %v1985, 16
  %v2011 = vrot.slane %v2009, 1
  %v2012 = vor.u32 %v2007, %v2011
  %v2014 = vshll.u32 %v1993, 16
  %v2016 = vrot.slane %v2014, 1
  %v2017 = vsel %vm1430, %v2012, %v2016
  %v2020 = vrot.slane %v1984, 1
  %v2021 = vrot.slane %v1992, 1
  %v2022 = vsel %vm1847, %v2020, %v2021
  %v2023 = vrot.slane %v1985, 1
  %v2024 = vrot.slane %v1993, 1
  %v2025 = vsel %vm1847, %v2023, %v2024
  %v2032 = vunpack.c.l.b16 %v1136
  %v2033 = vunpack.c.l.b16 %v1137
  %v2034 = vunpack.c.l.b16 %v1138
  %v2035 = vunpack.c.l.b16 %v1139
  %v2036 = vpack.c.b16 %v2033, %v2032
  %v2037 = vpack.c.b16 %v2035, %v2034
  %v2042 = vunpack.c.l.b16 %v1140
  %v2043 = vunpack.c.l.b16 %v1141
  %v2044 = vpack.c.b16 %v2042, %v2042
  %v2045 = vpack.c.b16 %v2043, %v2043
  %v2047 = vshrl.u32 %v2036, 16
  %v2049 = vshll.u32 %v2036, 16
  %v2051 = vrot.slane %v2049, 1
  %v2052 = vor.u32 %v2047, %v2051
  %v2054 = vshll.u32 %v2044, 16
  %v2056 = vrot.slane %v2054, 1
  %v2057 = vsel %vm1430, %v2052, %v2056
  %v2059 = vshrl.u32 %v2037, 16
  %v2061 = vshll.u32 %v2037, 16
  %v2063 = vrot.slane %v2061, 1
  %v2064 = vor.u32 %v2059, %v2063
  %v2066 = vshll.u32 %v2045, 16
  %v2068 = vrot.slane %v2066, 1
  %v2069 = vsel %vm1430, %v2064, %v2068
  %v2072 = vrot.slane %v2036, 1
  %v2073 = vrot.slane %v2044, 1
  %v2074 = vsel %vm1847, %v2072, %v2073
  %v2075 = vrot.slane %v2037, 1
  %v2076 = vrot.slane %v2045, 1
  %v2077 = vsel %vm1847, %v2075, %v2076
  %v2080 = vld [vmem:[%s4] sm:$0xf]
  %v2081 = vld [vmem:[%s4 + $0x4] sm:$0xf]
  %v2082 = vld [vmem:[%s4 + $0x8] sm:$0xf]
  %v2083 = vld [vmem:[%s4 + $0xc] sm:$0xf]
  %v2084 = vld [vmem:[%s4 + $0x10] sm:$0xf]
  %v2085 = vld [vmem:[%s4 + $0x14] sm:$0xf]
  %v2086 = vld [vmem:[%s4 + $0x18] sm:$0xf]
  %v2087 = vld [vmem:[%s4 + $0x1c] sm:$0xf]
  %v2088 = vld [vmem:[%s4 + $0x20] sm:$0xf]
  %v2089 = vld [vmem:[%s4 + $0x24] sm:$0xf]
  %v2090 = vld [vmem:[%s4 + $0x28] sm:$0xf]
  %v2091 = vld [vmem:[%s4 + $0x2c] sm:$0xf]
  %v2092 = vld [vmem:[%s4 + $0x30] sm:$0xf]
  %v2093 = vld [vmem:[%s4 + $0x34] sm:$0xf]
  %v2094 = vld [vmem:[%s4 + $0x38] sm:$0xf]
  %v2095 = vld [vmem:[%s4 + $0x3c] sm:$0xf]
  %v2096 = vld [vmem:[%s4 + $0x40] sm:$0xf]
  %v2097 = vld [vmem:[%s4 + $0x44] sm:$0xf]
  %v2098 = vld [vmem:[%s4 + $0x48] sm:$0xf]
  %v2099 = vld [vmem:[%s4 + $0x4c] sm:$0xf]
  %v2100 = vld [vmem:[%s4 + $0x50] sm:$0xf]
  %v2101 = vld [vmem:[%s4 + $0x54] sm:$0xf]
  %v2102 = vld [vmem:[%s4 + $0x58] sm:$0xf]
  %v2103 = vld [vmem:[%s4 + $0x5c] sm:$0xf]
  %v2104 = vld [vmem:[%s4 + $0x60] sm:$0xf]
  %v2105 = vld [vmem:[%s4 + $0x64] sm:$0xf]
  %v2106 = vld [vmem:[%s4 + $0x68] sm:$0xf]
  %v2107 = vld [vmem:[%s4 + $0x6c] sm:$0xf]
  %v2108 = vld [vmem:[%s4 + $0x70] sm:$0xf]
  %v2109 = vld [vmem:[%s4 + $0x74] sm:$0xf]
  %v2110 = vld [vmem:[%s4 + $0x78] sm:$0xf]
  %v2111 = vld [vmem:[%s4 + $0x7c] sm:$0xf]
  %v2112 = vld [vmem:[%s4 + $0x80] sm:$0xf]
  %v2113 = vld [vmem:[%s4 + $0x84] sm:$0xf]
  %v2114 = vld [vmem:[%s4 + $0x88] sm:$0xf]
  %v2115 = vld [vmem:[%s4 + $0x8c] sm:$0xf]
  %v2116 = vld [vmem:[%s4 + $0x90] sm:$0xf]
  %v2117 = vld [vmem:[%s4 + $0x94] sm:$0xf]
  %v2118 = vld [vmem:[%s4 + $0x98] sm:$0xf]
  %v2119 = vld [vmem:[%s4 + $0x9c] sm:$0xf]
  %v2120 = vld [vmem:[%s4 + $0xa0] sm:$0xf]
  %v2121 = vld [vmem:[%s4 + $0xa4] sm:$0xf]
  %v2122 = vld [vmem:[%s4 + $0xa8] sm:$0xf]
  %v2123 = vld [vmem:[%s4 + $0xac] sm:$0xf]
  %v2124 = vld [vmem:[%s4 + $0xb0] sm:$0xf]
  %v2125 = vld [vmem:[%s4 + $0xb4] sm:$0xf]
  %v2126 = vld [vmem:[%s4 + $0xb8] sm:$0xf]
  %v2127 = vld [vmem:[%s4 + $0xbc] sm:$0xf]
  %v2128 = vld [vmem:[%s4 + $0xc0] sm:$0xf]
  %v2129 = vld [vmem:[%s4 + $0xc4] sm:$0xf]
  %v2130 = vld [vmem:[%s4 + $0xc8] sm:$0xf]
  %v2131 = vld [vmem:[%s4 + $0xcc] sm:$0xf]
  %v2132 = vld [vmem:[%s4 + $0xd0] sm:$0xf]
  %v2133 = vld [vmem:[%s4 + $0xd4] sm:$0xf]
  %v2134 = vld [vmem:[%s4 + $0xd8] sm:$0xf]
  %v2135 = vld [vmem:[%s4 + $0xdc] sm:$0xf]
  %v2136 = vld [vmem:[%s4 + $0xe0] sm:$0xf]
  %v2137 = vld [vmem:[%s4 + $0xe4] sm:$0xf]
  %v2138 = vld [vmem:[%s4 + $0xe8] sm:$0xf]
  %v2139 = vld [vmem:[%s4 + $0xec] sm:$0xf]
  %v2140 = vld [vmem:[%s4 + $0xf0] sm:$0xf]
  %v2141 = vld [vmem:[%s4 + $0xf4] sm:$0xf]
  %v2142 = vld [vmem:[%s4 + $0xf8] sm:$0xf]
  %v2143 = vld [vmem:[%s4 + $0xfc] sm:$0xf]
  %v2144 = vld [vmem:[%s4 + $0x100] sm:$0xf]
  %v2145 = vld [vmem:[%s4 + $0x104] sm:$0xf]
  %v2146 = vld [vmem:[%s4 + $0x108] sm:$0xf]
  %v2147 = vld [vmem:[%s4 + $0x10c] sm:$0xf]
  %v2148 = vld [vmem:[%s4 + $0x110] sm:$0xf]
  %v2149 = vld [vmem:[%s4 + $0x114] sm:$0xf]
  %v2150 = vld [vmem:[%s4 + $0x118] sm:$0xf]
  %v2151 = vld [vmem:[%s4 + $0x11c] sm:$0xf]
  %v2152 = vld [vmem:[%s4 + $0x120] sm:$0xf]
  %v2153 = vld [vmem:[%s4 + $0x124] sm:$0xf]
  %v2154 = vld [vmem:[%s4 + $0x128] sm:$0xf]
  %v2155 = vld [vmem:[%s4 + $0x12c] sm:$0xf]
  %v2156 = vld [vmem:[%s4 + $0x130] sm:$0xf]
  %v2157 = vld [vmem:[%s4 + $0x134] sm:$0xf]
  %v2158 = vld [vmem:[%s4 + $0x138] sm:$0xf]
  %v2159 = vld [vmem:[%s4 + $0x13c] sm:$0xf]
  %v2160 = vld [vmem:[%s4 + $0x140] sm:$0xf]
  %v2161 = vld [vmem:[%s4 + $0x144] sm:$0xf]
  %v2162 = vld [vmem:[%s4 + $0x148] sm:$0xf]
  %v2163 = vld [vmem:[%s4 + $0x14c] sm:$0xf]
  %v2164 = vld [vmem:[%s4 + $0x150] sm:$0xf]
  %v2165 = vld [vmem:[%s4 + $0x154] sm:$0xf]
  %v2166 = vld [vmem:[%s4 + $0x158] sm:$0xf]
  %v2167 = vld [vmem:[%s4 + $0x15c] sm:$0xf]
  %v2168 = vld [vmem:[%s4 + $0x160] sm:$0xf]
  %v2169 = vld [vmem:[%s4 + $0x164] sm:$0xf]
  %v2170 = vld [vmem:[%s4 + $0x168] sm:$0xf]
  %v2171 = vld [vmem:[%s4 + $0x16c] sm:$0xf]
  %v2172 = vld [vmem:[%s4 + $0x170] sm:$0xf]
  %v2173 = vld [vmem:[%s4 + $0x174] sm:$0xf]
  %v2174 = vld [vmem:[%s4 + $0x178] sm:$0xf]
  %v2175 = vld [vmem:[%s4 + $0x17c] sm:$0xf]
  %v2176 = vld [vmem:[%s4 + $0x180] sm:$0xf]
  %v2177 = vld [vmem:[%s4 + $0x184] sm:$0xf]
  %v2178 = vld [vmem:[%s4 + $0x188] sm:$0xf]
  %v2179 = vld [vmem:[%s4 + $0x18c] sm:$0xf]
  %v2180 = vld [vmem:[%s4 + $0x190] sm:$0xf]
  %v2181 = vld [vmem:[%s4 + $0x194] sm:$0xf]
  %v2182 = vld [vmem:[%s4 + $0x198] sm:$0xf]
  %v2183 = vld [vmem:[%s4 + $0x19c] sm:$0xf]
  %v2184 = vld [vmem:[%s4 + $0x1a0] sm:$0xf]
  %v2185 = vld [vmem:[%s4 + $0x1a4] sm:$0xf]
  %v2186 = vld [vmem:[%s4 + $0x1a8] sm:$0xf]
  %v2187 = vld [vmem:[%s4 + $0x1ac] sm:$0xf]
  %v2188 = vld [vmem:[%s4 + $0x1b0] sm:$0xf]
  %v2189 = vld [vmem:[%s4 + $0x1b4] sm:$0xf]
  %v2190 = vld [vmem:[%s4 + $0x1b8] sm:$0xf]
  %v2191 = vld [vmem:[%s4 + $0x1bc] sm:$0xf]
  %v2192 = vld [vmem:[%s4 + $0x1c0] sm:$0xf]
  %v2193 = vld [vmem:[%s4 + $0x1c4] sm:$0xf]
  %v2194 = vld [vmem:[%s4 + $0x1c8] sm:$0xf]
  %v2195 = vld [vmem:[%s4 + $0x1cc] sm:$0xf]
  %v2196 = vld [vmem:[%s4 + $0x1d0] sm:$0xf]
  %v2197 = vld [vmem:[%s4 + $0x1d4] sm:$0xf]
  %v2198 = vld [vmem:[%s4 + $0x1d8] sm:$0xf]
  %v2199 = vld [vmem:[%s4 + $0x1dc] sm:$0xf]
  %v2200 = vld [vmem:[%s4 + $0x1e0] sm:$0xf]
  %v2201 = vld [vmem:[%s4 + $0x1e4] sm:$0xf]
  %v2202 = vld [vmem:[%s4 + $0x1e8] sm:$0xf]
  %v2203 = vld [vmem:[%s4 + $0x1ec] sm:$0xf]
  %v2204 = vld [vmem:[%s4 + $0x1f0] sm:$0xf]
  %v2205 = vld [vmem:[%s4 + $0x1f4] sm:$0xf]
  %v2206 = vld [vmem:[%s4 + $0x1f8] sm:$0xf]
  %v2207 = vld [vmem:[%s4 + $0x1fc] sm:$0xf]
  %v2208 = vld [vmem:[%s4 + $0x200] sm:$0xf]
  %v2209 = vld [vmem:[%s4 + $0x204] sm:$0xf]
  %v2210 = vld [vmem:[%s4 + $0x208] sm:$0xf]
  %v2211 = vld [vmem:[%s4 + $0x20c] sm:$0xf]
  %v2212 = vld [vmem:[%s4 + $0x210] sm:$0xf]
  %v2213 = vld [vmem:[%s4 + $0x214] sm:$0xf]
  %v2214 = vld [vmem:[%s4 + $0x218] sm:$0xf]
  %v2215 = vld [vmem:[%s4 + $0x21c] sm:$0xf]
  %v2216 = vld [vmem:[%s4 + $0x220] sm:$0xf]
  %v2217 = vld [vmem:[%s4 + $0x224] sm:$0xf]
  %v2218 = vld [vmem:[%s4 + $0x228] sm:$0xf]
  %v2219 = vld [vmem:[%s4 + $0x22c] sm:$0xf]
  %v2220 = vld [vmem:[%s4 + $0x230] sm:$0xf]
  %v2221 = vld [vmem:[%s4 + $0x234] sm:$0xf]
  %v2222 = vld [vmem:[%s4 + $0x238] sm:$0xf]
  %v2223 = vld [vmem:[%s4 + $0x23c] sm:$0xf]
  %v2368 = vunpack.c.l.b16 %v2080
  %v2369 = vunpack.c.l.b16 %v2081
  %v2370 = vunpack.c.l.b16 %v2082
  %v2371 = vunpack.c.l.b16 %v2083
  %v2372 = vunpack.c.l.b16 %v2084
  %v2373 = vunpack.c.l.b16 %v2085
  %v2374 = vunpack.c.l.b16 %v2086
  %v2375 = vunpack.c.l.b16 %v2087
  %v2376 = vunpack.c.l.b16 %v2088
  %v2377 = vunpack.c.l.b16 %v2089
  %v2378 = vunpack.c.l.b16 %v2090
  %v2379 = vunpack.c.l.b16 %v2091
  %v2380 = vunpack.c.l.b16 %v2092
  %v2381 = vunpack.c.l.b16 %v2093
  %v2382 = vunpack.c.l.b16 %v2094
  %v2383 = vunpack.c.l.b16 %v2095
  %v2384 = vunpack.c.l.b16 %v2096
  %v2385 = vunpack.c.l.b16 %v2097
  %v2386 = vunpack.c.l.b16 %v2098
  %v2387 = vunpack.c.l.b16 %v2099
  %v2388 = vunpack.c.l.b16 %v2100
  %v2389 = vunpack.c.l.b16 %v2101
  %v2390 = vunpack.c.l.b16 %v2102
  %v2391 = vunpack.c.l.b16 %v2103
  %v2392 = vunpack.c.l.b16 %v2104
  %v2393 = vunpack.c.l.b16 %v2105
  %v2394 = vunpack.c.l.b16 %v2106
  %v2395 = vunpack.c.l.b16 %v2107
  %v2396 = vunpack.c.l.b16 %v2108
  %v2397 = vunpack.c.l.b16 %v2109
  %v2398 = vunpack.c.l.b16 %v2110
  %v2399 = vunpack.c.l.b16 %v2111
  %v2400 = vunpack.c.l.b16 %v2112
  %v2401 = vunpack.c.l.b16 %v2113
  %v2402 = vunpack.c.l.b16 %v2114
  %v2403 = vunpack.c.l.b16 %v2115
  %v2404 = vunpack.c.l.b16 %v2116
  %v2405 = vunpack.c.l.b16 %v2117
  %v2406 = vunpack.c.l.b16 %v2118
  %v2407 = vunpack.c.l.b16 %v2119
  %v2408 = vunpack.c.l.b16 %v2120
  %v2409 = vunpack.c.l.b16 %v2121
  %v2410 = vunpack.c.l.b16 %v2122
  %v2411 = vunpack.c.l.b16 %v2123
  %v2412 = vunpack.c.l.b16 %v2124
  %v2413 = vunpack.c.l.b16 %v2125
  %v2414 = vunpack.c.l.b16 %v2126
  %v2415 = vunpack.c.l.b16 %v2127
  %v2416 = vunpack.c.l.b16 %v2128
  %v2417 = vunpack.c.l.b16 %v2129
  %v2418 = vunpack.c.l.b16 %v2130
  %v2419 = vunpack.c.l.b16 %v2131
  %v2420 = vunpack.c.l.b16 %v2132
  %v2421 = vunpack.c.l.b16 %v2133
  %v2422 = vunpack.c.l.b16 %v2134
  %v2423 = vunpack.c.l.b16 %v2135
  %v2424 = vunpack.c.l.b16 %v2136
  %v2425 = vunpack.c.l.b16 %v2137
  %v2426 = vunpack.c.l.b16 %v2138
  %v2427 = vunpack.c.l.b16 %v2139
  %v2428 = vunpack.c.l.b16 %v2140
  %v2429 = vunpack.c.l.b16 %v2141
  %v2430 = vunpack.c.l.b16 %v2142
  %v2431 = vunpack.c.l.b16 %v2143
  %v2432 = vunpack.c.l.b16 %v2144
  %v2433 = vunpack.c.l.b16 %v2145
  %v2434 = vunpack.c.l.b16 %v2146
  %v2435 = vunpack.c.l.b16 %v2147
  %v2436 = vunpack.c.l.b16 %v2148
  %v2437 = vunpack.c.l.b16 %v2149
  %v2438 = vunpack.c.l.b16 %v2150
  %v2439 = vunpack.c.l.b16 %v2151
  %v2440 = vunpack.c.l.b16 %v2152
  %v2441 = vunpack.c.l.b16 %v2153
  %v2442 = vunpack.c.l.b16 %v2154
  %v2443 = vunpack.c.l.b16 %v2155
  %v2444 = vunpack.c.l.b16 %v2156
  %v2445 = vunpack.c.l.b16 %v2157
  %v2446 = vunpack.c.l.b16 %v2158
  %v2447 = vunpack.c.l.b16 %v2159
  %v2448 = vunpack.c.l.b16 %v2160
  %v2449 = vunpack.c.l.b16 %v2161
  %v2450 = vunpack.c.l.b16 %v2162
  %v2451 = vunpack.c.l.b16 %v2163
  %v2452 = vunpack.c.l.b16 %v2164
  %v2453 = vunpack.c.l.b16 %v2165
  %v2454 = vunpack.c.l.b16 %v2166
  %v2455 = vunpack.c.l.b16 %v2167
  %v2456 = vunpack.c.l.b16 %v2168
  %v2457 = vunpack.c.l.b16 %v2169
  %v2458 = vunpack.c.l.b16 %v2170
  %v2459 = vunpack.c.l.b16 %v2171
  %v2460 = vunpack.c.l.b16 %v2172
  %v2461 = vunpack.c.l.b16 %v2173
  %v2462 = vunpack.c.l.b16 %v2174
  %v2463 = vunpack.c.l.b16 %v2175
  %v2464 = vunpack.c.l.b16 %v2176
  %v2465 = vunpack.c.l.b16 %v2177
  %v2466 = vunpack.c.l.b16 %v2178
  %v2467 = vunpack.c.l.b16 %v2179
  %v2468 = vunpack.c.l.b16 %v2180
  %v2469 = vunpack.c.l.b16 %v2181
  %v2470 = vunpack.c.l.b16 %v2182
  %v2471 = vunpack.c.l.b16 %v2183
  %v2472 = vunpack.c.l.b16 %v2184
  %v2473 = vunpack.c.l.b16 %v2185
  %v2474 = vunpack.c.l.b16 %v2186
  %v2475 = vunpack.c.l.b16 %v2187
  %v2476 = vunpack.c.l.b16 %v2188
  %v2477 = vunpack.c.l.b16 %v2189
  %v2478 = vunpack.c.l.b16 %v2190
  %v2479 = vunpack.c.l.b16 %v2191
  %v2480 = vunpack.c.l.b16 %v2192
  %v2481 = vunpack.c.l.b16 %v2193
  %v2482 = vunpack.c.l.b16 %v2194
  %v2483 = vunpack.c.l.b16 %v2195
  %v2484 = vunpack.c.l.b16 %v2196
  %v2485 = vunpack.c.l.b16 %v2197
  %v2486 = vunpack.c.l.b16 %v2198
  %v2487 = vunpack.c.l.b16 %v2199
  %v2488 = vunpack.c.l.b16 %v2200
  %v2489 = vunpack.c.l.b16 %v2201
  %v2490 = vunpack.c.l.b16 %v2202
  %v2491 = vunpack.c.l.b16 %v2203
  %v2492 = vunpack.c.l.b16 %v2204
  %v2493 = vunpack.c.l.b16 %v2205
  %v2494 = vunpack.c.l.b16 %v2206
  %v2495 = vunpack.c.l.b16 %v2207
  %v2496 = vunpack.c.l.b16 %v2208
  %v2497 = vunpack.c.l.b16 %v2209
  %v2498 = vunpack.c.l.b16 %v2210
  %v2499 = vunpack.c.l.b16 %v2211
  %v2500 = vunpack.c.l.b16 %v2212
  %v2501 = vunpack.c.l.b16 %v2213
  %v2502 = vunpack.c.l.b16 %v2214
  %v2503 = vunpack.c.l.b16 %v2215
  %v2504 = vunpack.c.l.b16 %v2216
  %v2505 = vunpack.c.l.b16 %v2217
  %v2506 = vunpack.c.l.b16 %v2218
  %v2507 = vunpack.c.l.b16 %v2219
  %v2508 = vunpack.c.l.b16 %v2220
  %v2509 = vunpack.c.l.b16 %v2221
  %v2510 = vunpack.c.l.b16 %v2222
  %v2511 = vunpack.c.l.b16 %v2223
  %v2512 = vpack.c.b16 %v2369, %v2368
  %v2513 = vpack.c.b16 %v2371, %v2370
  %v2514 = vpack.c.b16 %v2373, %v2372
  %v2515 = vpack.c.b16 %v2375, %v2374
  %v2516 = vpack.c.b16 %v2377, %v2376
  %v2517 = vpack.c.b16 %v2379, %v2378
  %v2518 = vpack.c.b16 %v2381, %v2380
  %v2519 = vpack.c.b16 %v2383, %v2382
  %v2520 = vpack.c.b16 %v2385, %v2384
  %v2521 = vpack.c.b16 %v2387, %v2386
  %v2522 = vpack.c.b16 %v2389, %v2388
  %v2523 = vpack.c.b16 %v2391, %v2390
  %v2524 = vpack.c.b16 %v2393, %v2392
  %v2525 = vpack.c.b16 %v2395, %v2394
  %v2526 = vpack.c.b16 %v2397, %v2396
  %v2527 = vpack.c.b16 %v2399, %v2398
  %v2528 = vpack.c.b16 %v2401, %v2400
  %v2529 = vpack.c.b16 %v2403, %v2402
  %v2530 = vpack.c.b16 %v2405, %v2404
  %v2531 = vpack.c.b16 %v2407, %v2406
  %v2532 = vpack.c.b16 %v2409, %v2408
  %v2533 = vpack.c.b16 %v2411, %v2410
  %v2534 = vpack.c.b16 %v2413, %v2412
  %v2535 = vpack.c.b16 %v2415, %v2414
  %v2536 = vpack.c.b16 %v2417, %v2416
  %v2537 = vpack.c.b16 %v2419, %v2418
  %v2538 = vpack.c.b16 %v2421, %v2420
  %v2539 = vpack.c.b16 %v2423, %v2422
  %v2540 = vpack.c.b16 %v2425, %v2424
  %v2541 = vpack.c.b16 %v2427, %v2426
  %v2542 = vpack.c.b16 %v2429, %v2428
  %v2543 = vpack.c.b16 %v2431, %v2430
  %v2544 = vpack.c.b16 %v2433, %v2432
  %v2545 = vpack.c.b16 %v2435, %v2434
  %v2546 = vpack.c.b16 %v2437, %v2436
  %v2547 = vpack.c.b16 %v2439, %v2438
  %v2548 = vpack.c.b16 %v2441, %v2440
  %v2549 = vpack.c.b16 %v2443, %v2442
  %v2550 = vpack.c.b16 %v2445, %v2444
  %v2551 = vpack.c.b16 %v2447, %v2446
  %v2552 = vpack.c.b16 %v2449, %v2448
  %v2553 = vpack.c.b16 %v2451, %v2450
  %v2554 = vpack.c.b16 %v2453, %v2452
  %v2555 = vpack.c.b16 %v2455, %v2454
  %v2556 = vpack.c.b16 %v2457, %v2456
  %v2557 = vpack.c.b16 %v2459, %v2458
  %v2558 = vpack.c.b16 %v2461, %v2460
  %v2559 = vpack.c.b16 %v2463, %v2462
  %v2560 = vpack.c.b16 %v2465, %v2464
  %v2561 = vpack.c.b16 %v2467, %v2466
  %v2562 = vpack.c.b16 %v2469, %v2468
  %v2563 = vpack.c.b16 %v2471, %v2470
  %v2564 = vpack.c.b16 %v2473, %v2472
  %v2565 = vpack.c.b16 %v2475, %v2474
  %v2566 = vpack.c.b16 %v2477, %v2476
  %v2567 = vpack.c.b16 %v2479, %v2478
  %v2568 = vpack.c.b16 %v2481, %v2480
  %v2569 = vpack.c.b16 %v2483, %v2482
  %v2570 = vpack.c.b16 %v2485, %v2484
  %v2571 = vpack.c.b16 %v2487, %v2486
  %v2572 = vpack.c.b16 %v2489, %v2488
  %v2573 = vpack.c.b16 %v2491, %v2490
  %v2574 = vpack.c.b16 %v2493, %v2492
  %v2575 = vpack.c.b16 %v2495, %v2494
  %v2576 = vpack.c.b16 %v2497, %v2496
  %v2577 = vpack.c.b16 %v2499, %v2498
  %v2578 = vpack.c.b16 %v2501, %v2500
  %v2579 = vpack.c.b16 %v2503, %v2502
  %v2580 = vpack.c.b16 %v2505, %v2504
  %v2581 = vpack.c.b16 %v2507, %v2506
  %v2582 = vpack.c.b16 %v2509, %v2508
  %v2583 = vpack.c.b16 %v2511, %v2510
  %2656 = vmatpush.bf16.msra.mxu0 %v2519
  %2657 = vmatpush.bf16.msra.mxu0 %v2518
  %2658 = vmatpush.bf16.msra.mxu0 %v2517
  %2659 = vmatpush.bf16.msra.mxu0 %v2516
  %2660 = vmatpush.bf16.msra.mxu0 %v2515
  %2661 = vmatpush.bf16.msra.mxu0 %v2514
  %2662 = vmatpush.bf16.msra.mxu0 %v2513
  %2663 = vmatpush.bf16.msra.mxu0 %v2512
  %2664 = vmatmul.bf16.gmra.mxu0 %v1270
  %v2665 = vpop.f32.mrf.mxu0
  %v2666 = vadd.f32 0.0, %v2665
  %v2667 = vpop.f32.mrf.mxu0
  %v2668 = vadd.f32 0.0, %v2667
  %2669 = vmatmul.bf16.gmra.mxu0 %v1271
  %v2670 = vpop.f32.mrf.mxu0
  %v2671 = vadd.f32 0.0, %v2670
  %v2672 = vpop.f32.mrf.mxu0
  %v2673 = vadd.f32 0.0, %v2672
  %2674 = vmatmul.bf16.gmra.mxu0 %v1272
  %v2675 = vpop.f32.mrf.mxu0
  %v2676 = vadd.f32 0.0, %v2675
  %v2677 = vpop.f32.mrf.mxu0
  %v2678 = vadd.f32 0.0, %v2677
  %2679 = vmatmul.bf16.gmra.mxu0 %v1273
  %v2680 = vpop.f32.mrf.mxu0
  %v2681 = vadd.f32 0.0, %v2680
  %v2682 = vpop.f32.mrf.mxu0
  %v2683 = vadd.f32 0.0, %v2682
  %2684 = vmatmul.bf16.gmra.mxu0 %v1274
  %v2685 = vpop.f32.mrf.mxu0
  %v2686 = vadd.f32 0.0, %v2685
  %v2687 = vpop.f32.mrf.mxu0
  %v2688 = vadd.f32 0.0, %v2687
  %2689 = vmatmul.bf16.gmra.mxu0 %v1275
  %v2690 = vpop.f32.mrf.mxu0
  %v2691 = vadd.f32 0.0, %v2690
  %v2692 = vpop.f32.mrf.mxu0
  %v2693 = vadd.f32 0.0, %v2692
  %2694 = vmatmul.bf16.gmra.mxu0 %v1276
  %v2695 = vpop.f32.mrf.mxu0
  %v2696 = vadd.f32 0.0, %v2695
  %v2697 = vpop.f32.mrf.mxu0
  %v2698 = vadd.f32 0.0, %v2697
  %2699 = vmatmul.bf16.gmra.mxu0 %v1277
  %v2700 = vpop.f32.mrf.mxu0
  %v2701 = vadd.f32 0.0, %v2700
  %v2702 = vpop.f32.mrf.mxu0
  %v2703 = vadd.f32 0.0, %v2702
  %2704 = vmatmul.bf16.gmra.mxu0 %v1278
  %v2705 = vpop.f32.mrf.mxu0
  %v2706 = vadd.f32 0.0, %v2705
  %v2707 = vpop.f32.mrf.mxu0
  %v2708 = vadd.f32 0.0, %v2707
  %2709 = vmatmul.bf16.gmra.mxu0 %v1279
  %v2710 = vpop.f32.mrf.mxu0
  %v2711 = vadd.f32 0.0, %v2710
  %v2712 = vpop.f32.mrf.mxu0
  %v2713 = vadd.f32 0.0, %v2712
  %2714 = vmatmul.bf16.gmra.mxu0 %v1280
  %v2715 = vpop.f32.mrf.mxu0
  %v2716 = vadd.f32 0.0, %v2715
  %v2717 = vpop.f32.mrf.mxu0
  %v2718 = vadd.f32 0.0, %v2717
  %2719 = vmatmul.bf16.gmra.mxu0 %v1281
  %v2720 = vpop.f32.mrf.mxu0
  %v2721 = vadd.f32 0.0, %v2720
  %v2722 = vpop.f32.mrf.mxu0
  %v2723 = vadd.f32 0.0, %v2722
  %2724 = vmatmul.bf16.gmra.mxu0 %v1282
  %v2725 = vpop.f32.mrf.mxu0
  %v2726 = vadd.f32 0.0, %v2725
  %v2727 = vpop.f32.mrf.mxu0
  %v2728 = vadd.f32 0.0, %v2727
  %2729 = vmatmul.bf16.gmra.mxu0 %v1283
  %v2730 = vpop.f32.mrf.mxu0
  %v2731 = vadd.f32 0.0, %v2730
  %v2732 = vpop.f32.mrf.mxu0
  %v2733 = vadd.f32 0.0, %v2732
  %2734 = vmatmul.bf16.gmra.mxu0 %v1284
  %v2735 = vpop.f32.mrf.mxu0
  %v2736 = vadd.f32 0.0, %v2735
  %v2737 = vpop.f32.mrf.mxu0
  %v2738 = vadd.f32 0.0, %v2737
  %2739 = vmatmul.bf16.gmra.mxu0 %v1285
  %v2740 = vpop.f32.mrf.mxu0
  %v2741 = vadd.f32 0.0, %v2740
  %v2742 = vpop.f32.mrf.mxu0
  %v2743 = vadd.f32 0.0, %v2742
  %2744 = vmatmul.bf16.gmra.mxu0 %v1286
  %v2745 = vpop.f32.mrf.mxu0
  %v2746 = vadd.f32 0.0, %v2745
  %v2747 = vpop.f32.mrf.mxu0
  %v2748 = vadd.f32 0.0, %v2747
  %2749 = vmatmul.bf16.gmra.mxu0 %v1287
  %v2750 = vpop.f32.mrf.mxu0
  %v2751 = vadd.f32 0.0, %v2750
  %v2752 = vpop.f32.mrf.mxu0
  %v2753 = vadd.f32 0.0, %v2752
  %2754 = vmatmul.bf16.gmra.mxu0 %v1288
  %v2755 = vpop.f32.mrf.mxu0
  %v2756 = vadd.f32 0.0, %v2755
  %v2757 = vpop.f32.mrf.mxu0
  %v2758 = vadd.f32 0.0, %v2757
  %2759 = vmatmul.bf16.gmra.mxu0 %v1289
  %v2760 = vpop.f32.mrf.mxu0
  %v2761 = vadd.f32 0.0, %v2760
  %v2762 = vpop.f32.mrf.mxu0
  %v2763 = vadd.f32 0.0, %v2762
  %2764 = vmatmul.bf16.gmra.mxu0 %v1290
  %v2765 = vpop.f32.mrf.mxu0
  %v2766 = vadd.f32 0.0, %v2765
  %v2767 = vpop.f32.mrf.mxu0
  %v2768 = vadd.f32 0.0, %v2767
  %2769 = vmatmul.bf16.gmra.mxu0 %v1291
  %v2770 = vpop.f32.mrf.mxu0
  %v2771 = vadd.f32 0.0, %v2770
  %v2772 = vpop.f32.mrf.mxu0
  %v2773 = vadd.f32 0.0, %v2772
  %2774 = vmatmul.bf16.gmra.mxu0 %v1292
  %v2775 = vpop.f32.mrf.mxu0
  %v2776 = vadd.f32 0.0, %v2775
  %v2777 = vpop.f32.mrf.mxu0
  %v2778 = vadd.f32 0.0, %v2777
  %2779 = vmatmul.bf16.gmra.mxu0 %v1293
  %v2780 = vpop.f32.mrf.mxu0
  %v2781 = vadd.f32 0.0, %v2780
  %v2782 = vpop.f32.mrf.mxu0
  %v2783 = vadd.f32 0.0, %v2782
  %2784 = vmatmul.bf16.gmra.mxu0 %v1294
  %v2785 = vpop.f32.mrf.mxu0
  %v2786 = vadd.f32 0.0, %v2785
  %v2787 = vpop.f32.mrf.mxu0
  %v2788 = vadd.f32 0.0, %v2787
  %2789 = vmatmul.bf16.gmra.mxu0 %v1295
  %v2790 = vpop.f32.mrf.mxu0
  %v2791 = vadd.f32 0.0, %v2790
  %v2792 = vpop.f32.mrf.mxu0
  %v2793 = vadd.f32 0.0, %v2792
  %2794 = vmatmul.bf16.gmra.mxu0 %v1296
  %v2795 = vpop.f32.mrf.mxu0
  %v2796 = vadd.f32 0.0, %v2795
  %v2797 = vpop.f32.mrf.mxu0
  %v2798 = vadd.f32 0.0, %v2797
  %2799 = vmatmul.bf16.gmra.mxu0 %v1297
  %v2800 = vpop.f32.mrf.mxu0
  %v2801 = vadd.f32 0.0, %v2800
  %v2802 = vpop.f32.mrf.mxu0
  %v2803 = vadd.f32 0.0, %v2802
  %2804 = vmatmul.bf16.gmra.mxu0 %v1298
  %v2805 = vpop.f32.mrf.mxu0
  %v2806 = vadd.f32 0.0, %v2805
  %v2807 = vpop.f32.mrf.mxu0
  %v2808 = vadd.f32 0.0, %v2807
  %2809 = vmatmul.bf16.gmra.mxu0 %v1299
  %v2810 = vpop.f32.mrf.mxu0
  %v2811 = vadd.f32 0.0, %v2810
  %v2812 = vpop.f32.mrf.mxu0
  %v2813 = vadd.f32 0.0, %v2812
  %2814 = vmatmul.bf16.gmra.mxu0 %v1300
  %v2815 = vpop.f32.mrf.mxu0
  %v2816 = vadd.f32 0.0, %v2815
  %v2817 = vpop.f32.mrf.mxu0
  %v2818 = vadd.f32 0.0, %v2817
  %2819 = vmatmul.bf16.gmra.mxu0 %v1301
  %v2820 = vpop.f32.mrf.mxu0
  %v2821 = vadd.f32 0.0, %v2820
  %v2822 = vpop.f32.mrf.mxu0
  %v2823 = vadd.f32 0.0, %v2822
  %2824 = vdwg.mxu0
  %2825 = vmatpush.bf16.msra.mxu0 %v2527
  %2826 = vmatpush.bf16.msra.mxu0 %v2526
  %2827 = vmatpush.bf16.msra.mxu0 %v2525
  %2828 = vmatpush.bf16.msra.mxu0 %v2524
  %2829 = vmatpush.bf16.msra.mxu0 %v2523
  %2830 = vmatpush.bf16.msra.mxu0 %v2522
  %2831 = vmatpush.bf16.msra.mxu0 %v2521
  %2832 = vmatpush.bf16.msra.mxu0 %v2520
  %2833 = vmatmul.bf16.gmra.mxu0 %v1442
  %v2834 = vpop.f32.mrf.mxu0
  %v2835 = vadd.f32 %v2666, %v2834
  %v2836 = vpop.f32.mrf.mxu0
  %v2837 = vadd.f32 %v2668, %v2836
  %2838 = vmatmul.bf16.gmra.mxu0 %v1454
  %v2839 = vpop.f32.mrf.mxu0
  %v2840 = vadd.f32 %v2671, %v2839
  %v2841 = vpop.f32.mrf.mxu0
  %v2842 = vadd.f32 %v2673, %v2841
  %2843 = vmatmul.bf16.gmra.mxu0 %v1466
  %v2844 = vpop.f32.mrf.mxu0
  %v2845 = vadd.f32 %v2676, %v2844
  %v2846 = vpop.f32.mrf.mxu0
  %v2847 = vadd.f32 %v2678, %v2846
  %2848 = vmatmul.bf16.gmra.mxu0 %v1478
  %v2849 = vpop.f32.mrf.mxu0
  %v2850 = vadd.f32 %v2681, %v2849
  %v2851 = vpop.f32.mrf.mxu0
  %v2852 = vadd.f32 %v2683, %v2851
  %2853 = vmatmul.bf16.gmra.mxu0 %v1490
  %v2854 = vpop.f32.mrf.mxu0
  %v2855 = vadd.f32 %v2686, %v2854
  %v2856 = vpop.f32.mrf.mxu0
  %v2857 = vadd.f32 %v2688, %v2856
  %2858 = vmatmul.bf16.gmra.mxu0 %v1502
  %v2859 = vpop.f32.mrf.mxu0
  %v2860 = vadd.f32 %v2691, %v2859
  %v2861 = vpop.f32.mrf.mxu0
  %v2862 = vadd.f32 %v2693, %v2861
  %2863 = vmatmul.bf16.gmra.mxu0 %v1514
  %v2864 = vpop.f32.mrf.mxu0
  %v2865 = vadd.f32 %v2696, %v2864
  %v2866 = vpop.f32.mrf.mxu0
  %v2867 = vadd.f32 %v2698, %v2866
  %2868 = vmatmul.bf16.gmra.mxu0 %v1526
  %v2869 = vpop.f32.mrf.mxu0
  %v2870 = vadd.f32 %v2701, %v2869
  %v2871 = vpop.f32.mrf.mxu0
  %v2872 = vadd.f32 %v2703, %v2871
  %2873 = vmatmul.bf16.gmra.mxu0 %v1538
  %v2874 = vpop.f32.mrf.mxu0
  %v2875 = vadd.f32 %v2706, %v2874
  %v2876 = vpop.f32.mrf.mxu0
  %v2877 = vadd.f32 %v2708, %v2876
  %2878 = vmatmul.bf16.gmra.mxu0 %v1550
  %v2879 = vpop.f32.mrf.mxu0
  %v2880 = vadd.f32 %v2711, %v2879
  %v2881 = vpop.f32.mrf.mxu0
  %v2882 = vadd.f32 %v2713, %v2881
  %2883 = vmatmul.bf16.gmra.mxu0 %v1562
  %v2884 = vpop.f32.mrf.mxu0
  %v2885 = vadd.f32 %v2716, %v2884
  %v2886 = vpop.f32.mrf.mxu0
  %v2887 = vadd.f32 %v2718, %v2886
  %2888 = vmatmul.bf16.gmra.mxu0 %v1574
  %v2889 = vpop.f32.mrf.mxu0
  %v2890 = vadd.f32 %v2721, %v2889
  %v2891 = vpop.f32.mrf.mxu0
  %v2892 = vadd.f32 %v2723, %v2891
  %2893 = vmatmul.bf16.gmra.mxu0 %v1586
  %v2894 = vpop.f32.mrf.mxu0
  %v2895 = vadd.f32 %v2726, %v2894
  %v2896 = vpop.f32.mrf.mxu0
  %v2897 = vadd.f32 %v2728, %v2896
  %2898 = vmatmul.bf16.gmra.mxu0 %v1598
  %v2899 = vpop.f32.mrf.mxu0
  %v2900 = vadd.f32 %v2731, %v2899
  %v2901 = vpop.f32.mrf.mxu0
  %v2902 = vadd.f32 %v2733, %v2901
  %2903 = vmatmul.bf16.gmra.mxu0 %v1610
  %v2904 = vpop.f32.mrf.mxu0
  %v2905 = vadd.f32 %v2736, %v2904
  %v2906 = vpop.f32.mrf.mxu0
  %v2907 = vadd.f32 %v2738, %v2906
  %2908 = vmatmul.bf16.gmra.mxu0 %v1622
  %v2909 = vpop.f32.mrf.mxu0
  %v2910 = vadd.f32 %v2741, %v2909
  %v2911 = vpop.f32.mrf.mxu0
  %v2912 = vadd.f32 %v2743, %v2911
  %2913 = vmatmul.bf16.gmra.mxu0 %v1634
  %v2914 = vpop.f32.mrf.mxu0
  %v2915 = vadd.f32 %v2746, %v2914
  %v2916 = vpop.f32.mrf.mxu0
  %v2917 = vadd.f32 %v2748, %v2916
  %2918 = vmatmul.bf16.gmra.mxu0 %v1646
  %v2919 = vpop.f32.mrf.mxu0
  %v2920 = vadd.f32 %v2751, %v2919
  %v2921 = vpop.f32.mrf.mxu0
  %v2922 = vadd.f32 %v2753, %v2921
  %2923 = vmatmul.bf16.gmra.mxu0 %v1658
  %v2924 = vpop.f32.mrf.mxu0
  %v2925 = vadd.f32 %v2756, %v2924
  %v2926 = vpop.f32.mrf.mxu0
  %v2927 = vadd.f32 %v2758, %v2926
  %2928 = vmatmul.bf16.gmra.mxu0 %v1670
  %v2929 = vpop.f32.mrf.mxu0
  %v2930 = vadd.f32 %v2761, %v2929
  %v2931 = vpop.f32.mrf.mxu0
  %v2932 = vadd.f32 %v2763, %v2931
  %2933 = vmatmul.bf16.gmra.mxu0 %v1682
  %v2934 = vpop.f32.mrf.mxu0
  %v2935 = vadd.f32 %v2766, %v2934
  %v2936 = vpop.f32.mrf.mxu0
  %v2937 = vadd.f32 %v2768, %v2936
  %2938 = vmatmul.bf16.gmra.mxu0 %v1694
  %v2939 = vpop.f32.mrf.mxu0
  %v2940 = vadd.f32 %v2771, %v2939
  %v2941 = vpop.f32.mrf.mxu0
  %v2942 = vadd.f32 %v2773, %v2941
  %2943 = vmatmul.bf16.gmra.mxu0 %v1706
  %v2944 = vpop.f32.mrf.mxu0
  %v2945 = vadd.f32 %v2776, %v2944
  %v2946 = vpop.f32.mrf.mxu0
  %v2947 = vadd.f32 %v2778, %v2946
  %2948 = vmatmul.bf16.gmra.mxu0 %v1718
  %v2949 = vpop.f32.mrf.mxu0
  %v2950 = vadd.f32 %v2781, %v2949
  %v2951 = vpop.f32.mrf.mxu0
  %v2952 = vadd.f32 %v2783, %v2951
  %2953 = vmatmul.bf16.gmra.mxu0 %v1730
  %v2954 = vpop.f32.mrf.mxu0
  %v2955 = vadd.f32 %v2786, %v2954
  %v2956 = vpop.f32.mrf.mxu0
  %v2957 = vadd.f32 %v2788, %v2956
  %2958 = vmatmul.bf16.gmra.mxu0 %v1742
  %v2959 = vpop.f32.mrf.mxu0
  %v2960 = vadd.f32 %v2791, %v2959
  %v2961 = vpop.f32.mrf.mxu0
  %v2962 = vadd.f32 %v2793, %v2961
  %2963 = vmatmul.bf16.gmra.mxu0 %v1754
  %v2964 = vpop.f32.mrf.mxu0
  %v2965 = vadd.f32 %v2796, %v2964
  %v2966 = vpop.f32.mrf.mxu0
  %v2967 = vadd.f32 %v2798, %v2966
  %2968 = vmatmul.bf16.gmra.mxu0 %v1766
  %v2969 = vpop.f32.mrf.mxu0
  %v2970 = vadd.f32 %v2801, %v2969
  %v2971 = vpop.f32.mrf.mxu0
  %v2972 = vadd.f32 %v2803, %v2971
  %2973 = vmatmul.bf16.gmra.mxu0 %v1778
  %v2974 = vpop.f32.mrf.mxu0
  %v2975 = vadd.f32 %v2806, %v2974
  %v2976 = vpop.f32.mrf.mxu0
  %v2977 = vadd.f32 %v2808, %v2976
  %2978 = vmatmul.bf16.gmra.mxu0 %v1790
  %v2979 = vpop.f32.mrf.mxu0
  %v2980 = vadd.f32 %v2811, %v2979
  %v2981 = vpop.f32.mrf.mxu0
  %v2982 = vadd.f32 %v2813, %v2981
  %2983 = vmatmul.bf16.gmra.mxu0 %v1802
  %v2984 = vpop.f32.mrf.mxu0
  %v2985 = vadd.f32 %v2816, %v2984
  %v2986 = vpop.f32.mrf.mxu0
  %v2987 = vadd.f32 %v2818, %v2986
  %2988 = vmatmul.bf16.gmra.mxu0 %v1814
  %v2989 = vpop.f32.mrf.mxu0
  %v2990 = vadd.f32 %v2821, %v2989
  %v2991 = vpop.f32.mrf.mxu0
  %v2992 = vadd.f32 %v2823, %v2991
  %2993 = vdwg.mxu0
  %2994 = vmatpush.bf16.msra.mxu0 %v2535
  %2995 = vmatpush.bf16.msra.mxu0 %v2534
  %2996 = vmatpush.bf16.msra.mxu0 %v2533
  %2997 = vmatpush.bf16.msra.mxu0 %v2532
  %2998 = vmatpush.bf16.msra.mxu0 %v2531
  %2999 = vmatpush.bf16.msra.mxu0 %v2530
  %3000 = vmatpush.bf16.msra.mxu0 %v2529
  %3001 = vmatpush.bf16.msra.mxu0 %v2528
  %3002 = vmatmul.bf16.gmra.mxu0 %v1850
  %v3003 = vpop.f32.mrf.mxu0
  %v3004 = vadd.f32 %v2835, %v3003
  %v3005 = vpop.f32.mrf.mxu0
  %v3006 = vadd.f32 %v2837, %v3005
  %3007 = vmatmul.bf16.gmra.mxu0 %v1853
  %v3008 = vpop.f32.mrf.mxu0
  %v3009 = vadd.f32 %v2840, %v3008
  %v3010 = vpop.f32.mrf.mxu0
  %v3011 = vadd.f32 %v2842, %v3010
  %3012 = vmatmul.bf16.gmra.mxu0 %v1856
  %v3013 = vpop.f32.mrf.mxu0
  %v3014 = vadd.f32 %v2845, %v3013
  %v3015 = vpop.f32.mrf.mxu0
  %v3016 = vadd.f32 %v2847, %v3015
  %3017 = vmatmul.bf16.gmra.mxu0 %v1859
  %v3018 = vpop.f32.mrf.mxu0
  %v3019 = vadd.f32 %v2850, %v3018
  %v3020 = vpop.f32.mrf.mxu0
  %v3021 = vadd.f32 %v2852, %v3020
  %3022 = vmatmul.bf16.gmra.mxu0 %v1862
  %v3023 = vpop.f32.mrf.mxu0
  %v3024 = vadd.f32 %v2855, %v3023
  %v3025 = vpop.f32.mrf.mxu0
  %v3026 = vadd.f32 %v2857, %v3025
  %3027 = vmatmul.bf16.gmra.mxu0 %v1865
  %v3028 = vpop.f32.mrf.mxu0
  %v3029 = vadd.f32 %v2860, %v3028
  %v3030 = vpop.f32.mrf.mxu0
  %v3031 = vadd.f32 %v2862, %v3030
  %3032 = vmatmul.bf16.gmra.mxu0 %v1868
  %v3033 = vpop.f32.mrf.mxu0
  %v3034 = vadd.f32 %v2865, %v3033
  %v3035 = vpop.f32.mrf.mxu0
  %v3036 = vadd.f32 %v2867, %v3035
  %3037 = vmatmul.bf16.gmra.mxu0 %v1871
  %v3038 = vpop.f32.mrf.mxu0
  %v3039 = vadd.f32 %v2870, %v3038
  %v3040 = vpop.f32.mrf.mxu0
  %v3041 = vadd.f32 %v2872, %v3040
  %3042 = vmatmul.bf16.gmra.mxu0 %v1874
  %v3043 = vpop.f32.mrf.mxu0
  %v3044 = vadd.f32 %v2875, %v3043
  %v3045 = vpop.f32.mrf.mxu0
  %v3046 = vadd.f32 %v2877, %v3045
  %3047 = vmatmul.bf16.gmra.mxu0 %v1877
  %v3048 = vpop.f32.mrf.mxu0
  %v3049 = vadd.f32 %v2880, %v3048
  %v3050 = vpop.f32.mrf.mxu0
  %v3051 = vadd.f32 %v2882, %v3050
  %3052 = vmatmul.bf16.gmra.mxu0 %v1880
  %v3053 = vpop.f32.mrf.mxu0
  %v3054 = vadd.f32 %v2885, %v3053
  %v3055 = vpop.f32.mrf.mxu0
  %v3056 = vadd.f32 %v2887, %v3055
  %3057 = vmatmul.bf16.gmra.mxu0 %v1883
  %v3058 = vpop.f32.mrf.mxu0
  %v3059 = vadd.f32 %v2890, %v3058
  %v3060 = vpop.f32.mrf.mxu0
  %v3061 = vadd.f32 %v2892, %v3060
  %3062 = vmatmul.bf16.gmra.mxu0 %v1886
  %v3063 = vpop.f32.mrf.mxu0
  %v3064 = vadd.f32 %v2895, %v3063
  %v3065 = vpop.f32.mrf.mxu0
  %v3066 = vadd.f32 %v2897, %v3065
  %3067 = vmatmul.bf16.gmra.mxu0 %v1889
  %v3068 = vpop.f32.mrf.mxu0
  %v3069 = vadd.f32 %v2900, %v3068
  %v3070 = vpop.f32.mrf.mxu0
  %v3071 = vadd.f32 %v2902, %v3070
  %3072 = vmatmul.bf16.gmra.mxu0 %v1892
  %v3073 = vpop.f32.mrf.mxu0
  %v3074 = vadd.f32 %v2905, %v3073
  %v3075 = vpop.f32.mrf.mxu0
  %v3076 = vadd.f32 %v2907, %v3075
  %3077 = vmatmul.bf16.gmra.mxu0 %v1895
  %v3078 = vpop.f32.mrf.mxu0
  %v3079 = vadd.f32 %v2910, %v3078
  %v3080 = vpop.f32.mrf.mxu0
  %v3081 = vadd.f32 %v2912, %v3080
  %3082 = vmatmul.bf16.gmra.mxu0 %v1898
  %v3083 = vpop.f32.mrf.mxu0
  %v3084 = vadd.f32 %v2915, %v3083
  %v3085 = vpop.f32.mrf.mxu0
  %v3086 = vadd.f32 %v2917, %v3085
  %3087 = vmatmul.bf16.gmra.mxu0 %v1901
  %v3088 = vpop.f32.mrf.mxu0
  %v3089 = vadd.f32 %v2920, %v3088
  %v3090 = vpop.f32.mrf.mxu0
  %v3091 = vadd.f32 %v2922, %v3090
  %3092 = vmatmul.bf16.gmra.mxu0 %v1904
  %v3093 = vpop.f32.mrf.mxu0
  %v3094 = vadd.f32 %v2925, %v3093
  %v3095 = vpop.f32.mrf.mxu0
  %v3096 = vadd.f32 %v2927, %v3095
  %3097 = vmatmul.bf16.gmra.mxu0 %v1907
  %v3098 = vpop.f32.mrf.mxu0
  %v3099 = vadd.f32 %v2930, %v3098
  %v3100 = vpop.f32.mrf.mxu0
  %v3101 = vadd.f32 %v2932, %v3100
  %3102 = vmatmul.bf16.gmra.mxu0 %v1910
  %v3103 = vpop.f32.mrf.mxu0
  %v3104 = vadd.f32 %v2935, %v3103
  %v3105 = vpop.f32.mrf.mxu0
  %v3106 = vadd.f32 %v2937, %v3105
  %3107 = vmatmul.bf16.gmra.mxu0 %v1913
  %v3108 = vpop.f32.mrf.mxu0
  %v3109 = vadd.f32 %v2940, %v3108
  %v3110 = vpop.f32.mrf.mxu0
  %v3111 = vadd.f32 %v2942, %v3110
  %3112 = vmatmul.bf16.gmra.mxu0 %v1916
  %v3113 = vpop.f32.mrf.mxu0
  %v3114 = vadd.f32 %v2945, %v3113
  %v3115 = vpop.f32.mrf.mxu0
  %v3116 = vadd.f32 %v2947, %v3115
  %3117 = vmatmul.bf16.gmra.mxu0 %v1919
  %v3118 = vpop.f32.mrf.mxu0
  %v3119 = vadd.f32 %v2950, %v3118
  %v3120 = vpop.f32.mrf.mxu0
  %v3121 = vadd.f32 %v2952, %v3120
  %3122 = vmatmul.bf16.gmra.mxu0 %v1922
  %v3123 = vpop.f32.mrf.mxu0
  %v3124 = vadd.f32 %v2955, %v3123
  %v3125 = vpop.f32.mrf.mxu0
  %v3126 = vadd.f32 %v2957, %v3125
  %3127 = vmatmul.bf16.gmra.mxu0 %v1925
  %v3128 = vpop.f32.mrf.mxu0
  %v3129 = vadd.f32 %v2960, %v3128
  %v3130 = vpop.f32.mrf.mxu0
  %v3131 = vadd.f32 %v2962, %v3130
  %3132 = vmatmul.bf16.gmra.mxu0 %v1928
  %v3133 = vpop.f32.mrf.mxu0
  %v3134 = vadd.f32 %v2965, %v3133
  %v3135 = vpop.f32.mrf.mxu0
  %v3136 = vadd.f32 %v2967, %v3135
  %3137 = vmatmul.bf16.gmra.mxu0 %v1931
  %v3138 = vpop.f32.mrf.mxu0
  %v3139 = vadd.f32 %v2970, %v3138
  %v3140 = vpop.f32.mrf.mxu0
  %v3141 = vadd.f32 %v2972, %v3140
  %3142 = vmatmul.bf16.gmra.mxu0 %v1934
  %v3143 = vpop.f32.mrf.mxu0
  %v3144 = vadd.f32 %v2975, %v3143
  %v3145 = vpop.f32.mrf.mxu0
  %v3146 = vadd.f32 %v2977, %v3145
  %3147 = vmatmul.bf16.gmra.mxu0 %v1937
  %v3148 = vpop.f32.mrf.mxu0
  %v3149 = vadd.f32 %v2980, %v3148
  %v3150 = vpop.f32.mrf.mxu0
  %v3151 = vadd.f32 %v2982, %v3150
  %3152 = vmatmul.bf16.gmra.mxu0 %v1940
  %v3153 = vpop.f32.mrf.mxu0
  %v3154 = vadd.f32 %v2985, %v3153
  %v3155 = vpop.f32.mrf.mxu0
  %v3156 = vadd.f32 %v2987, %v3155
  %3157 = vmatmul.bf16.gmra.mxu0 %v1943
  %v3158 = vpop.f32.mrf.mxu0
  %v3159 = vadd.f32 %v2990, %v3158
  %v3160 = vpop.f32.mrf.mxu0
  %v3161 = vadd.f32 %v2992, %v3160
  %3162 = vdwg.mxu0
  %3163 = vmatpush.bf16.msra.mxu0 %v2543
  %3164 = vmatpush.bf16.msra.mxu0 %v2542
  %3165 = vmatpush.bf16.msra.mxu0 %v2541
  %3166 = vmatpush.bf16.msra.mxu0 %v2540
  %3167 = vmatpush.bf16.msra.mxu0 %v2539
  %3168 = vmatpush.bf16.msra.mxu0 %v2538
  %3169 = vmatpush.bf16.msra.mxu0 %v2537
  %3170 = vmatpush.bf16.msra.mxu0 %v2536
  %3171 = vmatmul.bf16.gmra.mxu0 %v1271
  %v3172 = vpop.f32.mrf.mxu0
  %v3173 = vadd.f32 %v3004, %v3172
  %v3174 = vpop.f32.mrf.mxu0
  %v3175 = vadd.f32 %v3006, %v3174
  %3176 = vmatmul.bf16.gmra.mxu0 %v1272
  %v3177 = vpop.f32.mrf.mxu0
  %v3178 = vadd.f32 %v3009, %v3177
  %v3179 = vpop.f32.mrf.mxu0
  %v3180 = vadd.f32 %v3011, %v3179
  %3181 = vmatmul.bf16.gmra.mxu0 %v1273
  %v3182 = vpop.f32.mrf.mxu0
  %v3183 = vadd.f32 %v3014, %v3182
  %v3184 = vpop.f32.mrf.mxu0
  %v3185 = vadd.f32 %v3016, %v3184
  %3186 = vmatmul.bf16.gmra.mxu0 %v1274
  %v3187 = vpop.f32.mrf.mxu0
  %v3188 = vadd.f32 %v3019, %v3187
  %v3189 = vpop.f32.mrf.mxu0
  %v3190 = vadd.f32 %v3021, %v3189
  %3191 = vmatmul.bf16.gmra.mxu0 %v1275
  %v3192 = vpop.f32.mrf.mxu0
  %v3193 = vadd.f32 %v3024, %v3192
  %v3194 = vpop.f32.mrf.mxu0
  %v3195 = vadd.f32 %v3026, %v3194
  %3196 = vmatmul.bf16.gmra.mxu0 %v1276
  %v3197 = vpop.f32.mrf.mxu0
  %v3198 = vadd.f32 %v3029, %v3197
  %v3199 = vpop.f32.mrf.mxu0
  %v3200 = vadd.f32 %v3031, %v3199
  %3201 = vmatmul.bf16.gmra.mxu0 %v1277
  %v3202 = vpop.f32.mrf.mxu0
  %v3203 = vadd.f32 %v3034, %v3202
  %v3204 = vpop.f32.mrf.mxu0
  %v3205 = vadd.f32 %v3036, %v3204
  %3206 = vmatmul.bf16.gmra.mxu0 %v1278
  %v3207 = vpop.f32.mrf.mxu0
  %v3208 = vadd.f32 %v3039, %v3207
  %v3209 = vpop.f32.mrf.mxu0
  %v3210 = vadd.f32 %v3041, %v3209
  %3211 = vmatmul.bf16.gmra.mxu0 %v1279
  %v3212 = vpop.f32.mrf.mxu0
  %v3213 = vadd.f32 %v3044, %v3212
  %v3214 = vpop.f32.mrf.mxu0
  %v3215 = vadd.f32 %v3046, %v3214
  %3216 = vmatmul.bf16.gmra.mxu0 %v1280
  %v3217 = vpop.f32.mrf.mxu0
  %v3218 = vadd.f32 %v3049, %v3217
  %v3219 = vpop.f32.mrf.mxu0
  %v3220 = vadd.f32 %v3051, %v3219
  %3221 = vmatmul.bf16.gmra.mxu0 %v1281
  %v3222 = vpop.f32.mrf.mxu0
  %v3223 = vadd.f32 %v3054, %v3222
  %v3224 = vpop.f32.mrf.mxu0
  %v3225 = vadd.f32 %v3056, %v3224
  %3226 = vmatmul.bf16.gmra.mxu0 %v1282
  %v3227 = vpop.f32.mrf.mxu0
  %v3228 = vadd.f32 %v3059, %v3227
  %v3229 = vpop.f32.mrf.mxu0
  %v3230 = vadd.f32 %v3061, %v3229
  %3231 = vmatmul.bf16.gmra.mxu0 %v1283
  %v3232 = vpop.f32.mrf.mxu0
  %v3233 = vadd.f32 %v3064, %v3232
  %v3234 = vpop.f32.mrf.mxu0
  %v3235 = vadd.f32 %v3066, %v3234
  %3236 = vmatmul.bf16.gmra.mxu0 %v1284
  %v3237 = vpop.f32.mrf.mxu0
  %v3238 = vadd.f32 %v3069, %v3237
  %v3239 = vpop.f32.mrf.mxu0
  %v3240 = vadd.f32 %v3071, %v3239
  %3241 = vmatmul.bf16.gmra.mxu0 %v1285
  %v3242 = vpop.f32.mrf.mxu0
  %v3243 = vadd.f32 %v3074, %v3242
  %v3244 = vpop.f32.mrf.mxu0
  %v3245 = vadd.f32 %v3076, %v3244
  %3246 = vmatmul.bf16.gmra.mxu0 %v1984
  %v3247 = vpop.f32.mrf.mxu0
  %v3248 = vadd.f32 %v3079, %v3247
  %v3249 = vpop.f32.mrf.mxu0
  %v3250 = vadd.f32 %v3081, %v3249
  %3251 = vmatmul.bf16.gmra.mxu0 %v1287
  %v3252 = vpop.f32.mrf.mxu0
  %v3253 = vadd.f32 %v3084, %v3252
  %v3254 = vpop.f32.mrf.mxu0
  %v3255 = vadd.f32 %v3086, %v3254
  %3256 = vmatmul.bf16.gmra.mxu0 %v1288
  %v3257 = vpop.f32.mrf.mxu0
  %v3258 = vadd.f32 %v3089, %v3257
  %v3259 = vpop.f32.mrf.mxu0
  %v3260 = vadd.f32 %v3091, %v3259
  %3261 = vmatmul.bf16.gmra.mxu0 %v1289
  %v3262 = vpop.f32.mrf.mxu0
  %v3263 = vadd.f32 %v3094, %v3262
  %v3264 = vpop.f32.mrf.mxu0
  %v3265 = vadd.f32 %v3096, %v3264
  %3266 = vmatmul.bf16.gmra.mxu0 %v1290
  %v3267 = vpop.f32.mrf.mxu0
  %v3268 = vadd.f32 %v3099, %v3267
  %v3269 = vpop.f32.mrf.mxu0
  %v3270 = vadd.f32 %v3101, %v3269
  %3271 = vmatmul.bf16.gmra.mxu0 %v1291
  %v3272 = vpop.f32.mrf.mxu0
  %v3273 = vadd.f32 %v3104, %v3272
  %v3274 = vpop.f32.mrf.mxu0
  %v3275 = vadd.f32 %v3106, %v3274
  %3276 = vmatmul.bf16.gmra.mxu0 %v1292
  %v3277 = vpop.f32.mrf.mxu0
  %v3278 = vadd.f32 %v3109, %v3277
  %v3279 = vpop.f32.mrf.mxu0
  %v3280 = vadd.f32 %v3111, %v3279
  %3281 = vmatmul.bf16.gmra.mxu0 %v1293
  %v3282 = vpop.f32.mrf.mxu0
  %v3283 = vadd.f32 %v3114, %v3282
  %v3284 = vpop.f32.mrf.mxu0
  %v3285 = vadd.f32 %v3116, %v3284
  %3286 = vmatmul.bf16.gmra.mxu0 %v1294
  %v3287 = vpop.f32.mrf.mxu0
  %v3288 = vadd.f32 %v3119, %v3287
  %v3289 = vpop.f32.mrf.mxu0
  %v3290 = vadd.f32 %v3121, %v3289
  %3291 = vmatmul.bf16.gmra.mxu0 %v1295
  %v3292 = vpop.f32.mrf.mxu0
  %v3293 = vadd.f32 %v3124, %v3292
  %v3294 = vpop.f32.mrf.mxu0
  %v3295 = vadd.f32 %v3126, %v3294
  %3296 = vmatmul.bf16.gmra.mxu0 %v1296
  %v3297 = vpop.f32.mrf.mxu0
  %v3298 = vadd.f32 %v3129, %v3297
  %v3299 = vpop.f32.mrf.mxu0
  %v3300 = vadd.f32 %v3131, %v3299
  %3301 = vmatmul.bf16.gmra.mxu0 %v1297
  %v3302 = vpop.f32.mrf.mxu0
  %v3303 = vadd.f32 %v3134, %v3302
  %v3304 = vpop.f32.mrf.mxu0
  %v3305 = vadd.f32 %v3136, %v3304
  %3306 = vmatmul.bf16.gmra.mxu0 %v1298
  %v3307 = vpop.f32.mrf.mxu0
  %v3308 = vadd.f32 %v3139, %v3307
  %v3309 = vpop.f32.mrf.mxu0
  %v3310 = vadd.f32 %v3141, %v3309
  %3311 = vmatmul.bf16.gmra.mxu0 %v1299
  %v3312 = vpop.f32.mrf.mxu0
  %v3313 = vadd.f32 %v3144, %v3312
  %v3314 = vpop.f32.mrf.mxu0
  %v3315 = vadd.f32 %v3146, %v3314
  %3316 = vmatmul.bf16.gmra.mxu0 %v1300
  %v3317 = vpop.f32.mrf.mxu0
  %v3318 = vadd.f32 %v3149, %v3317
  %v3319 = vpop.f32.mrf.mxu0
  %v3320 = vadd.f32 %v3151, %v3319
  %3321 = vmatmul.bf16.gmra.mxu0 %v1301
  %v3322 = vpop.f32.mrf.mxu0
  %v3323 = vadd.f32 %v3154, %v3322
  %v3324 = vpop.f32.mrf.mxu0
  %v3325 = vadd.f32 %v3156, %v3324
  %3326 = vmatmul.bf16.gmra.mxu0 %v1985
  %v3327 = vpop.f32.mrf.mxu0
  %v3328 = vadd.f32 %v3159, %v3327
  %v3329 = vpop.f32.mrf.mxu0
  %v3330 = vadd.f32 %v3161, %v3329
  %3331 = vdwg.mxu0
  %3332 = vmatpush.bf16.msra.mxu0 %v2551
  %3333 = vmatpush.bf16.msra.mxu0 %v2550
  %3334 = vmatpush.bf16.msra.mxu0 %v2549
  %3335 = vmatpush.bf16.msra.mxu0 %v2548
  %3336 = vmatpush.bf16.msra.mxu0 %v2547
  %3337 = vmatpush.bf16.msra.mxu0 %v2546
  %3338 = vmatpush.bf16.msra.mxu0 %v2545
  %3339 = vmatpush.bf16.msra.mxu0 %v2544
  %3340 = vmatmul.bf16.gmra.mxu0 %v1454
  %v3341 = vpop.f32.mrf.mxu0
  %v3342 = vadd.f32 %v3173, %v3341
  %v3343 = vpop.f32.mrf.mxu0
  %v3344 = vadd.f32 %v3175, %v3343
  %3345 = vmatmul.bf16.gmra.mxu0 %v1466
  %v3346 = vpop.f32.mrf.mxu0
  %v3347 = vadd.f32 %v3178, %v3346
  %v3348 = vpop.f32.mrf.mxu0
  %v3349 = vadd.f32 %v3180, %v3348
  %3350 = vmatmul.bf16.gmra.mxu0 %v1478
  %v3351 = vpop.f32.mrf.mxu0
  %v3352 = vadd.f32 %v3183, %v3351
  %v3353 = vpop.f32.mrf.mxu0
  %v3354 = vadd.f32 %v3185, %v3353
  %3355 = vmatmul.bf16.gmra.mxu0 %v1490
  %v3356 = vpop.f32.mrf.mxu0
  %v3357 = vadd.f32 %v3188, %v3356
  %v3358 = vpop.f32.mrf.mxu0
  %v3359 = vadd.f32 %v3190, %v3358
  %3360 = vmatmul.bf16.gmra.mxu0 %v1502
  %v3361 = vpop.f32.mrf.mxu0
  %v3362 = vadd.f32 %v3193, %v3361
  %v3363 = vpop.f32.mrf.mxu0
  %v3364 = vadd.f32 %v3195, %v3363
  %3365 = vmatmul.bf16.gmra.mxu0 %v1514
  %v3366 = vpop.f32.mrf.mxu0
  %v3367 = vadd.f32 %v3198, %v3366
  %v3368 = vpop.f32.mrf.mxu0
  %v3369 = vadd.f32 %v3200, %v3368
  %3370 = vmatmul.bf16.gmra.mxu0 %v1526
  %v3371 = vpop.f32.mrf.mxu0
  %v3372 = vadd.f32 %v3203, %v3371
  %v3373 = vpop.f32.mrf.mxu0
  %v3374 = vadd.f32 %v3205, %v3373
  %3375 = vmatmul.bf16.gmra.mxu0 %v1538
  %v3376 = vpop.f32.mrf.mxu0
  %v3377 = vadd.f32 %v3208, %v3376
  %v3378 = vpop.f32.mrf.mxu0
  %v3379 = vadd.f32 %v3210, %v3378
  %3380 = vmatmul.bf16.gmra.mxu0 %v1550
  %v3381 = vpop.f32.mrf.mxu0
  %v3382 = vadd.f32 %v3213, %v3381
  %v3383 = vpop.f32.mrf.mxu0
  %v3384 = vadd.f32 %v3215, %v3383
  %3385 = vmatmul.bf16.gmra.mxu0 %v1562
  %v3386 = vpop.f32.mrf.mxu0
  %v3387 = vadd.f32 %v3218, %v3386
  %v3388 = vpop.f32.mrf.mxu0
  %v3389 = vadd.f32 %v3220, %v3388
  %3390 = vmatmul.bf16.gmra.mxu0 %v1574
  %v3391 = vpop.f32.mrf.mxu0
  %v3392 = vadd.f32 %v3223, %v3391
  %v3393 = vpop.f32.mrf.mxu0
  %v3394 = vadd.f32 %v3225, %v3393
  %3395 = vmatmul.bf16.gmra.mxu0 %v1586
  %v3396 = vpop.f32.mrf.mxu0
  %v3397 = vadd.f32 %v3228, %v3396
  %v3398 = vpop.f32.mrf.mxu0
  %v3399 = vadd.f32 %v3230, %v3398
  %3400 = vmatmul.bf16.gmra.mxu0 %v1598
  %v3401 = vpop.f32.mrf.mxu0
  %v3402 = vadd.f32 %v3233, %v3401
  %v3403 = vpop.f32.mrf.mxu0
  %v3404 = vadd.f32 %v3235, %v3403
  %3405 = vmatmul.bf16.gmra.mxu0 %v1610
  %v3406 = vpop.f32.mrf.mxu0
  %v3407 = vadd.f32 %v3238, %v3406
  %v3408 = vpop.f32.mrf.mxu0
  %v3409 = vadd.f32 %v3240, %v3408
  %3410 = vmatmul.bf16.gmra.mxu0 %v1622
  %v3411 = vpop.f32.mrf.mxu0
  %v3412 = vadd.f32 %v3243, %v3411
  %v3413 = vpop.f32.mrf.mxu0
  %v3414 = vadd.f32 %v3245, %v3413
  %3415 = vmatmul.bf16.gmra.mxu0 %v2005
  %v3416 = vpop.f32.mrf.mxu0
  %v3417 = vadd.f32 %v3248, %v3416
  %v3418 = vpop.f32.mrf.mxu0
  %v3419 = vadd.f32 %v3250, %v3418
  %3420 = vmatmul.bf16.gmra.mxu0 %v1646
  %v3421 = vpop.f32.mrf.mxu0
  %v3422 = vadd.f32 %v3253, %v3421
  %v3423 = vpop.f32.mrf.mxu0
  %v3424 = vadd.f32 %v3255, %v3423
  %3425 = vmatmul.bf16.gmra.mxu0 %v1658
  %v3426 = vpop.f32.mrf.mxu0
  %v3427 = vadd.f32 %v3258, %v3426
  %v3428 = vpop.f32.mrf.mxu0
  %v3429 = vadd.f32 %v3260, %v3428
  %3430 = vmatmul.bf16.gmra.mxu0 %v1670
  %v3431 = vpop.f32.mrf.mxu0
  %v3432 = vadd.f32 %v3263, %v3431
  %v3433 = vpop.f32.mrf.mxu0
  %v3434 = vadd.f32 %v3265, %v3433
  %3435 = vmatmul.bf16.gmra.mxu0 %v1682
  %v3436 = vpop.f32.mrf.mxu0
  %v3437 = vadd.f32 %v3268, %v3436
  %v3438 = vpop.f32.mrf.mxu0
  %v3439 = vadd.f32 %v3270, %v3438
  %3440 = vmatmul.bf16.gmra.mxu0 %v1694
  %v3441 = vpop.f32.mrf.mxu0
  %v3442 = vadd.f32 %v3273, %v3441
  %v3443 = vpop.f32.mrf.mxu0
  %v3444 = vadd.f32 %v3275, %v3443
  %3445 = vmatmul.bf16.gmra.mxu0 %v1706
  %v3446 = vpop.f32.mrf.mxu0
  %v3447 = vadd.f32 %v3278, %v3446
  %v3448 = vpop.f32.mrf.mxu0
  %v3449 = vadd.f32 %v3280, %v3448
  %3450 = vmatmul.bf16.gmra.mxu0 %v1718
  %v3451 = vpop.f32.mrf.mxu0
  %v3452 = vadd.f32 %v3283, %v3451
  %v3453 = vpop.f32.mrf.mxu0
  %v3454 = vadd.f32 %v3285, %v3453
  %3455 = vmatmul.bf16.gmra.mxu0 %v1730
  %v3456 = vpop.f32.mrf.mxu0
  %v3457 = vadd.f32 %v3288, %v3456
  %v3458 = vpop.f32.mrf.mxu0
  %v3459 = vadd.f32 %v3290, %v3458
  %3460 = vmatmul.bf16.gmra.mxu0 %v1742
  %v3461 = vpop.f32.mrf.mxu0
  %v3462 = vadd.f32 %v3293, %v3461
  %v3463 = vpop.f32.mrf.mxu0
  %v3464 = vadd.f32 %v3295, %v3463
  %3465 = vmatmul.bf16.gmra.mxu0 %v1754
  %v3466 = vpop.f32.mrf.mxu0
  %v3467 = vadd.f32 %v3298, %v3466
  %v3468 = vpop.f32.mrf.mxu0
  %v3469 = vadd.f32 %v3300, %v3468
  %3470 = vmatmul.bf16.gmra.mxu0 %v1766
  %v3471 = vpop.f32.mrf.mxu0
  %v3472 = vadd.f32 %v3303, %v3471
  %v3473 = vpop.f32.mrf.mxu0
  %v3474 = vadd.f32 %v3305, %v3473
  %3475 = vmatmul.bf16.gmra.mxu0 %v1778
  %v3476 = vpop.f32.mrf.mxu0
  %v3477 = vadd.f32 %v3308, %v3476
  %v3478 = vpop.f32.mrf.mxu0
  %v3479 = vadd.f32 %v3310, %v3478
  %3480 = vmatmul.bf16.gmra.mxu0 %v1790
  %v3481 = vpop.f32.mrf.mxu0
  %v3482 = vadd.f32 %v3313, %v3481
  %v3483 = vpop.f32.mrf.mxu0
  %v3484 = vadd.f32 %v3315, %v3483
  %3485 = vmatmul.bf16.gmra.mxu0 %v1802
  %v3486 = vpop.f32.mrf.mxu0
  %v3487 = vadd.f32 %v3318, %v3486
  %v3488 = vpop.f32.mrf.mxu0
  %v3489 = vadd.f32 %v3320, %v3488
  %3490 = vmatmul.bf16.gmra.mxu0 %v1814
  %v3491 = vpop.f32.mrf.mxu0
  %v3492 = vadd.f32 %v3323, %v3491
  %v3493 = vpop.f32.mrf.mxu0
  %v3494 = vadd.f32 %v3325, %v3493
  %3495 = vmatmul.bf16.gmra.mxu0 %v2017
  %v3496 = vpop.f32.mrf.mxu0
  %v3497 = vadd.f32 %v3328, %v3496
  %v3498 = vpop.f32.mrf.mxu0
  %v3499 = vadd.f32 %v3330, %v3498
  %3500 = vdwg.mxu0
  %3501 = vmatpush.bf16.msra.mxu0 %v2559
  %3502 = vmatpush.bf16.msra.mxu0 %v2558
  %3503 = vmatpush.bf16.msra.mxu0 %v2557
  %3504 = vmatpush.bf16.msra.mxu0 %v2556
  %3505 = vmatpush.bf16.msra.mxu0 %v2555
  %3506 = vmatpush.bf16.msra.mxu0 %v2554
  %3507 = vmatpush.bf16.msra.mxu0 %v2553
  %3508 = vmatpush.bf16.msra.mxu0 %v2552
  %3509 = vmatmul.bf16.gmra.mxu0 %v1853
  %v3510 = vpop.f32.mrf.mxu0
  %v3511 = vadd.f32 %v3342, %v3510
  %v3512 = vpop.f32.mrf.mxu0
  %v3513 = vadd.f32 %v3344, %v3512
  %3514 = vmatmul.bf16.gmra.mxu0 %v1856
  %v3515 = vpop.f32.mrf.mxu0
  %v3516 = vadd.f32 %v3347, %v3515
  %v3517 = vpop.f32.mrf.mxu0
  %v3518 = vadd.f32 %v3349, %v3517
  %3519 = vmatmul.bf16.gmra.mxu0 %v1859
  %v3520 = vpop.f32.mrf.mxu0
  %v3521 = vadd.f32 %v3352, %v3520
  %v3522 = vpop.f32.mrf.mxu0
  %v3523 = vadd.f32 %v3354, %v3522
  %3524 = vmatmul.bf16.gmra.mxu0 %v1862
  %v3525 = vpop.f32.mrf.mxu0
  %v3526 = vadd.f32 %v3357, %v3525
  %v3527 = vpop.f32.mrf.mxu0
  %v3528 = vadd.f32 %v3359, %v3527
  %3529 = vmatmul.bf16.gmra.mxu0 %v1865
  %v3530 = vpop.f32.mrf.mxu0
  %v3531 = vadd.f32 %v3362, %v3530
  %v3532 = vpop.f32.mrf.mxu0
  %v3533 = vadd.f32 %v3364, %v3532
  %3534 = vmatmul.bf16.gmra.mxu0 %v1868
  %v3535 = vpop.f32.mrf.mxu0
  %v3536 = vadd.f32 %v3367, %v3535
  %v3537 = vpop.f32.mrf.mxu0
  %v3538 = vadd.f32 %v3369, %v3537
  %3539 = vmatmul.bf16.gmra.mxu0 %v1871
  %v3540 = vpop.f32.mrf.mxu0
  %v3541 = vadd.f32 %v3372, %v3540
  %v3542 = vpop.f32.mrf.mxu0
  %v3543 = vadd.f32 %v3374, %v3542
  %3544 = vmatmul.bf16.gmra.mxu0 %v1874
  %v3545 = vpop.f32.mrf.mxu0
  %v3546 = vadd.f32 %v3377, %v3545
  %v3547 = vpop.f32.mrf.mxu0
  %v3548 = vadd.f32 %v3379, %v3547
  %3549 = vmatmul.bf16.gmra.mxu0 %v1877
  %v3550 = vpop.f32.mrf.mxu0
  %v3551 = vadd.f32 %v3382, %v3550
  %v3552 = vpop.f32.mrf.mxu0
  %v3553 = vadd.f32 %v3384, %v3552
  %3554 = vmatmul.bf16.gmra.mxu0 %v1880
  %v3555 = vpop.f32.mrf.mxu0
  %v3556 = vadd.f32 %v3387, %v3555
  %v3557 = vpop.f32.mrf.mxu0
  %v3558 = vadd.f32 %v3389, %v3557
  %3559 = vmatmul.bf16.gmra.mxu0 %v1883
  %v3560 = vpop.f32.mrf.mxu0
  %v3561 = vadd.f32 %v3392, %v3560
  %v3562 = vpop.f32.mrf.mxu0
  %v3563 = vadd.f32 %v3394, %v3562
  %3564 = vmatmul.bf16.gmra.mxu0 %v1886
  %v3565 = vpop.f32.mrf.mxu0
  %v3566 = vadd.f32 %v3397, %v3565
  %v3567 = vpop.f32.mrf.mxu0
  %v3568 = vadd.f32 %v3399, %v3567
  %3569 = vmatmul.bf16.gmra.mxu0 %v1889
  %v3570 = vpop.f32.mrf.mxu0
  %v3571 = vadd.f32 %v3402, %v3570
  %v3572 = vpop.f32.mrf.mxu0
  %v3573 = vadd.f32 %v3404, %v3572
  %3574 = vmatmul.bf16.gmra.mxu0 %v1892
  %v3575 = vpop.f32.mrf.mxu0
  %v3576 = vadd.f32 %v3407, %v3575
  %v3577 = vpop.f32.mrf.mxu0
  %v3578 = vadd.f32 %v3409, %v3577
  %3579 = vmatmul.bf16.gmra.mxu0 %v1895
  %v3580 = vpop.f32.mrf.mxu0
  %v3581 = vadd.f32 %v3412, %v3580
  %v3582 = vpop.f32.mrf.mxu0
  %v3583 = vadd.f32 %v3414, %v3582
  %3584 = vmatmul.bf16.gmra.mxu0 %v2022
  %v3585 = vpop.f32.mrf.mxu0
  %v3586 = vadd.f32 %v3417, %v3585
  %v3587 = vpop.f32.mrf.mxu0
  %v3588 = vadd.f32 %v3419, %v3587
  %3589 = vmatmul.bf16.gmra.mxu0 %v1901
  %v3590 = vpop.f32.mrf.mxu0
  %v3591 = vadd.f32 %v3422, %v3590
  %v3592 = vpop.f32.mrf.mxu0
  %v3593 = vadd.f32 %v3424, %v3592
  %3594 = vmatmul.bf16.gmra.mxu0 %v1904
  %v3595 = vpop.f32.mrf.mxu0
  %v3596 = vadd.f32 %v3427, %v3595
  %v3597 = vpop.f32.mrf.mxu0
  %v3598 = vadd.f32 %v3429, %v3597
  %3599 = vmatmul.bf16.gmra.mxu0 %v1907
  %v3600 = vpop.f32.mrf.mxu0
  %v3601 = vadd.f32 %v3432, %v3600
  %v3602 = vpop.f32.mrf.mxu0
  %v3603 = vadd.f32 %v3434, %v3602
  %3604 = vmatmul.bf16.gmra.mxu0 %v1910
  %v3605 = vpop.f32.mrf.mxu0
  %v3606 = vadd.f32 %v3437, %v3605
  %v3607 = vpop.f32.mrf.mxu0
  %v3608 = vadd.f32 %v3439, %v3607
  %3609 = vmatmul.bf16.gmra.mxu0 %v1913
  %v3610 = vpop.f32.mrf.mxu0
  %v3611 = vadd.f32 %v3442, %v3610
  %v3612 = vpop.f32.mrf.mxu0
  %v3613 = vadd.f32 %v3444, %v3612
  %3614 = vmatmul.bf16.gmra.mxu0 %v1916
  %v3615 = vpop.f32.mrf.mxu0
  %v3616 = vadd.f32 %v3447, %v3615
  %v3617 = vpop.f32.mrf.mxu0
  %v3618 = vadd.f32 %v3449, %v3617
  %3619 = vmatmul.bf16.gmra.mxu0 %v1919
  %v3620 = vpop.f32.mrf.mxu0
  %v3621 = vadd.f32 %v3452, %v3620
  %v3622 = vpop.f32.mrf.mxu0
  %v3623 = vadd.f32 %v3454, %v3622
  %3624 = vmatmul.bf16.gmra.mxu0 %v1922
  %v3625 = vpop.f32.mrf.mxu0
  %v3626 = vadd.f32 %v3457, %v3625
  %v3627 = vpop.f32.mrf.mxu0
  %v3628 = vadd.f32 %v3459, %v3627
  %3629 = vmatmul.bf16.gmra.mxu0 %v1925
  %v3630 = vpop.f32.mrf.mxu0
  %v3631 = vadd.f32 %v3462, %v3630
  %v3632 = vpop.f32.mrf.mxu0
  %v3633 = vadd.f32 %v3464, %v3632
  %3634 = vmatmul.bf16.gmra.mxu0 %v1928
  %v3635 = vpop.f32.mrf.mxu0
  %v3636 = vadd.f32 %v3467, %v3635
  %v3637 = vpop.f32.mrf.mxu0
  %v3638 = vadd.f32 %v3469, %v3637
  %3639 = vmatmul.bf16.gmra.mxu0 %v1931
  %v3640 = vpop.f32.mrf.mxu0
  %v3641 = vadd.f32 %v3472, %v3640
  %v3642 = vpop.f32.mrf.mxu0
  %v3643 = vadd.f32 %v3474, %v3642
  %3644 = vmatmul.bf16.gmra.mxu0 %v1934
  %v3645 = vpop.f32.mrf.mxu0
  %v3646 = vadd.f32 %v3477, %v3645
  %v3647 = vpop.f32.mrf.mxu0
  %v3648 = vadd.f32 %v3479, %v3647
  %3649 = vmatmul.bf16.gmra.mxu0 %v1937
  %v3650 = vpop.f32.mrf.mxu0
  %v3651 = vadd.f32 %v3482, %v3650
  %v3652 = vpop.f32.mrf.mxu0
  %v3653 = vadd.f32 %v3484, %v3652
  %3654 = vmatmul.bf16.gmra.mxu0 %v1940
  %v3655 = vpop.f32.mrf.mxu0
  %v3656 = vadd.f32 %v3487, %v3655
  %v3657 = vpop.f32.mrf.mxu0
  %v3658 = vadd.f32 %v3489, %v3657
  %3659 = vmatmul.bf16.gmra.mxu0 %v1943
  %v3660 = vpop.f32.mrf.mxu0
  %v3661 = vadd.f32 %v3492, %v3660
  %v3662 = vpop.f32.mrf.mxu0
  %v3663 = vadd.f32 %v3494, %v3662
  %3664 = vmatmul.bf16.gmra.mxu0 %v2025
  %v3665 = vpop.f32.mrf.mxu0
  %v3666 = vadd.f32 %v3497, %v3665
  %v3667 = vpop.f32.mrf.mxu0
  %v3668 = vadd.f32 %v3499, %v3667
  %3669 = vdwg.mxu0
  %3670 = vmatpush.bf16.msra.mxu0 %v2567
  %3671 = vmatpush.bf16.msra.mxu0 %v2566
  %3672 = vmatpush.bf16.msra.mxu0 %v2565
  %3673 = vmatpush.bf16.msra.mxu0 %v2564
  %3674 = vmatpush.bf16.msra.mxu0 %v2563
  %3675 = vmatpush.bf16.msra.mxu0 %v2562
  %3676 = vmatpush.bf16.msra.mxu0 %v2561
  %3677 = vmatpush.bf16.msra.mxu0 %v2560
  %3678 = vmatmul.bf16.gmra.mxu0 %v1272
  %v3679 = vpop.f32.mrf.mxu0
  %v3680 = vadd.f32 %v3511, %v3679
  %v3681 = vpop.f32.mrf.mxu0
  %v3682 = vadd.f32 %v3513, %v3681
  %3683 = vmatmul.bf16.gmra.mxu0 %v1273
  %v3684 = vpop.f32.mrf.mxu0
  %v3685 = vadd.f32 %v3516, %v3684
  %v3686 = vpop.f32.mrf.mxu0
  %v3687 = vadd.f32 %v3518, %v3686
  %3688 = vmatmul.bf16.gmra.mxu0 %v1274
  %v3689 = vpop.f32.mrf.mxu0
  %v3690 = vadd.f32 %v3521, %v3689
  %v3691 = vpop.f32.mrf.mxu0
  %v3692 = vadd.f32 %v3523, %v3691
  %3693 = vmatmul.bf16.gmra.mxu0 %v1275
  %v3694 = vpop.f32.mrf.mxu0
  %v3695 = vadd.f32 %v3526, %v3694
  %v3696 = vpop.f32.mrf.mxu0
  %v3697 = vadd.f32 %v3528, %v3696
  %3698 = vmatmul.bf16.gmra.mxu0 %v1276
  %v3699 = vpop.f32.mrf.mxu0
  %v3700 = vadd.f32 %v3531, %v3699
  %v3701 = vpop.f32.mrf.mxu0
  %v3702 = vadd.f32 %v3533, %v3701
  %3703 = vmatmul.bf16.gmra.mxu0 %v1277
  %v3704 = vpop.f32.mrf.mxu0
  %v3705 = vadd.f32 %v3536, %v3704
  %v3706 = vpop.f32.mrf.mxu0
  %v3707 = vadd.f32 %v3538, %v3706
  %3708 = vmatmul.bf16.gmra.mxu0 %v1278
  %v3709 = vpop.f32.mrf.mxu0
  %v3710 = vadd.f32 %v3541, %v3709
  %v3711 = vpop.f32.mrf.mxu0
  %v3712 = vadd.f32 %v3543, %v3711
  %3713 = vmatmul.bf16.gmra.mxu0 %v1279
  %v3714 = vpop.f32.mrf.mxu0
  %v3715 = vadd.f32 %v3546, %v3714
  %v3716 = vpop.f32.mrf.mxu0
  %v3717 = vadd.f32 %v3548, %v3716
  %3718 = vmatmul.bf16.gmra.mxu0 %v1280
  %v3719 = vpop.f32.mrf.mxu0
  %v3720 = vadd.f32 %v3551, %v3719
  %v3721 = vpop.f32.mrf.mxu0
  %v3722 = vadd.f32 %v3553, %v3721
  %3723 = vmatmul.bf16.gmra.mxu0 %v1281
  %v3724 = vpop.f32.mrf.mxu0
  %v3725 = vadd.f32 %v3556, %v3724
  %v3726 = vpop.f32.mrf.mxu0
  %v3727 = vadd.f32 %v3558, %v3726
  %3728 = vmatmul.bf16.gmra.mxu0 %v1282
  %v3729 = vpop.f32.mrf.mxu0
  %v3730 = vadd.f32 %v3561, %v3729
  %v3731 = vpop.f32.mrf.mxu0
  %v3732 = vadd.f32 %v3563, %v3731
  %3733 = vmatmul.bf16.gmra.mxu0 %v1283
  %v3734 = vpop.f32.mrf.mxu0
  %v3735 = vadd.f32 %v3566, %v3734
  %v3736 = vpop.f32.mrf.mxu0
  %v3737 = vadd.f32 %v3568, %v3736
  %3738 = vmatmul.bf16.gmra.mxu0 %v1284
  %v3739 = vpop.f32.mrf.mxu0
  %v3740 = vadd.f32 %v3571, %v3739
  %v3741 = vpop.f32.mrf.mxu0
  %v3742 = vadd.f32 %v3573, %v3741
  %3743 = vmatmul.bf16.gmra.mxu0 %v1285
  %v3744 = vpop.f32.mrf.mxu0
  %v3745 = vadd.f32 %v3576, %v3744
  %v3746 = vpop.f32.mrf.mxu0
  %v3747 = vadd.f32 %v3578, %v3746
  %3748 = vmatmul.bf16.gmra.mxu0 %v1984
  %v3749 = vpop.f32.mrf.mxu0
  %v3750 = vadd.f32 %v3581, %v3749
  %v3751 = vpop.f32.mrf.mxu0
  %v3752 = vadd.f32 %v3583, %v3751
  %3753 = vmatmul.bf16.gmra.mxu0 %v2036
  %v3754 = vpop.f32.mrf.mxu0
  %v3755 = vadd.f32 %v3586, %v3754
  %v3756 = vpop.f32.mrf.mxu0
  %v3757 = vadd.f32 %v3588, %v3756
  %3758 = vmatmul.bf16.gmra.mxu0 %v1288
  %v3759 = vpop.f32.mrf.mxu0
  %v3760 = vadd.f32 %v3591, %v3759
  %v3761 = vpop.f32.mrf.mxu0
  %v3762 = vadd.f32 %v3593, %v3761
  %3763 = vmatmul.bf16.gmra.mxu0 %v1289
  %v3764 = vpop.f32.mrf.mxu0
  %v3765 = vadd.f32 %v3596, %v3764
  %v3766 = vpop.f32.mrf.mxu0
  %v3767 = vadd.f32 %v3598, %v3766
  %3768 = vmatmul.bf16.gmra.mxu0 %v1290
  %v3769 = vpop.f32.mrf.mxu0
  %v3770 = vadd.f32 %v3601, %v3769
  %v3771 = vpop.f32.mrf.mxu0
  %v3772 = vadd.f32 %v3603, %v3771
  %3773 = vmatmul.bf16.gmra.mxu0 %v1291
  %v3774 = vpop.f32.mrf.mxu0
  %v3775 = vadd.f32 %v3606, %v3774
  %v3776 = vpop.f32.mrf.mxu0
  %v3777 = vadd.f32 %v3608, %v3776
  %3778 = vmatmul.bf16.gmra.mxu0 %v1292
  %v3779 = vpop.f32.mrf.mxu0
  %v3780 = vadd.f32 %v3611, %v3779
  %v3781 = vpop.f32.mrf.mxu0
  %v3782 = vadd.f32 %v3613, %v3781
  %3783 = vmatmul.bf16.gmra.mxu0 %v1293
  %v3784 = vpop.f32.mrf.mxu0
  %v3785 = vadd.f32 %v3616, %v3784
  %v3786 = vpop.f32.mrf.mxu0
  %v3787 = vadd.f32 %v3618, %v3786
  %3788 = vmatmul.bf16.gmra.mxu0 %v1294
  %v3789 = vpop.f32.mrf.mxu0
  %v3790 = vadd.f32 %v3621, %v3789
  %v3791 = vpop.f32.mrf.mxu0
  %v3792 = vadd.f32 %v3623, %v3791
  %3793 = vmatmul.bf16.gmra.mxu0 %v1295
  %v3794 = vpop.f32.mrf.mxu0
  %v3795 = vadd.f32 %v3626, %v3794
  %v3796 = vpop.f32.mrf.mxu0
  %v3797 = vadd.f32 %v3628, %v3796
  %3798 = vmatmul.bf16.gmra.mxu0 %v1296
  %v3799 = vpop.f32.mrf.mxu0
  %v3800 = vadd.f32 %v3631, %v3799
  %v3801 = vpop.f32.mrf.mxu0
  %v3802 = vadd.f32 %v3633, %v3801
  %3803 = vmatmul.bf16.gmra.mxu0 %v1297
  %v3804 = vpop.f32.mrf.mxu0
  %v3805 = vadd.f32 %v3636, %v3804
  %v3806 = vpop.f32.mrf.mxu0
  %v3807 = vadd.f32 %v3638, %v3806
  %3808 = vmatmul.bf16.gmra.mxu0 %v1298
  %v3809 = vpop.f32.mrf.mxu0
  %v3810 = vadd.f32 %v3641, %v3809
  %v3811 = vpop.f32.mrf.mxu0
  %v3812 = vadd.f32 %v3643, %v3811
  %3813 = vmatmul.bf16.gmra.mxu0 %v1299
  %v3814 = vpop.f32.mrf.mxu0
  %v3815 = vadd.f32 %v3646, %v3814
  %v3816 = vpop.f32.mrf.mxu0
  %v3817 = vadd.f32 %v3648, %v3816
  %3818 = vmatmul.bf16.gmra.mxu0 %v1300
  %v3819 = vpop.f32.mrf.mxu0
  %v3820 = vadd.f32 %v3651, %v3819
  %v3821 = vpop.f32.mrf.mxu0
  %v3822 = vadd.f32 %v3653, %v3821
  %3823 = vmatmul.bf16.gmra.mxu0 %v1301
  %v3824 = vpop.f32.mrf.mxu0
  %v3825 = vadd.f32 %v3656, %v3824
  %v3826 = vpop.f32.mrf.mxu0
  %v3827 = vadd.f32 %v3658, %v3826
  %3828 = vmatmul.bf16.gmra.mxu0 %v1985
  %v3829 = vpop.f32.mrf.mxu0
  %v3830 = vadd.f32 %v3661, %v3829
  %v3831 = vpop.f32.mrf.mxu0
  %v3832 = vadd.f32 %v3663, %v3831
  %3833 = vmatmul.bf16.gmra.mxu0 %v2037
  %v3834 = vpop.f32.mrf.mxu0
  %v3835 = vadd.f32 %v3666, %v3834
  %v3836 = vpop.f32.mrf.mxu0
  %v3837 = vadd.f32 %v3668, %v3836
  %3838 = vdwg.mxu0
  %3839 = vmatpush.bf16.msra.mxu0 %v2575
  %3840 = vmatpush.bf16.msra.mxu0 %v2574
  %3841 = vmatpush.bf16.msra.mxu0 %v2573
  %3842 = vmatpush.bf16.msra.mxu0 %v2572
  %3843 = vmatpush.bf16.msra.mxu0 %v2571
  %3844 = vmatpush.bf16.msra.mxu0 %v2570
  %3845 = vmatpush.bf16.msra.mxu0 %v2569
  %3846 = vmatpush.bf16.msra.mxu0 %v2568
  %3847 = vmatmul.bf16.gmra.mxu0 %v1466
  %v3848 = vpop.f32.mrf.mxu0
  %v3849 = vadd.f32 %v3680, %v3848
  %v3850 = vpop.f32.mrf.mxu0
  %v3851 = vadd.f32 %v3682, %v3850
  %3852 = vmatmul.bf16.gmra.mxu0 %v1478
  %v3853 = vpop.f32.mrf.mxu0
  %v3854 = vadd.f32 %v3685, %v3853
  %v3855 = vpop.f32.mrf.mxu0
  %v3856 = vadd.f32 %v3687, %v3855
  %3857 = vmatmul.bf16.gmra.mxu0 %v1490
  %v3858 = vpop.f32.mrf.mxu0
  %v3859 = vadd.f32 %v3690, %v3858
  %v3860 = vpop.f32.mrf.mxu0
  %v3861 = vadd.f32 %v3692, %v3860
  %3862 = vmatmul.bf16.gmra.mxu0 %v1502
  %v3863 = vpop.f32.mrf.mxu0
  %v3864 = vadd.f32 %v3695, %v3863
  %v3865 = vpop.f32.mrf.mxu0
  %v3866 = vadd.f32 %v3697, %v3865
  %3867 = vmatmul.bf16.gmra.mxu0 %v1514
  %v3868 = vpop.f32.mrf.mxu0
  %v3869 = vadd.f32 %v3700, %v3868
  %v3870 = vpop.f32.mrf.mxu0
  %v3871 = vadd.f32 %v3702, %v3870
  %3872 = vmatmul.bf16.gmra.mxu0 %v1526
  %v3873 = vpop.f32.mrf.mxu0
  %v3874 = vadd.f32 %v3705, %v3873
  %v3875 = vpop.f32.mrf.mxu0
  %v3876 = vadd.f32 %v3707, %v3875
  %3877 = vmatmul.bf16.gmra.mxu0 %v1538
  %v3878 = vpop.f32.mrf.mxu0
  %v3879 = vadd.f32 %v3710, %v3878
  %v3880 = vpop.f32.mrf.mxu0
  %v3881 = vadd.f32 %v3712, %v3880
  %3882 = vmatmul.bf16.gmra.mxu0 %v1550
  %v3883 = vpop.f32.mrf.mxu0
  %v3884 = vadd.f32 %v3715, %v3883
  %v3885 = vpop.f32.mrf.mxu0
  %v3886 = vadd.f32 %v3717, %v3885
  %3887 = vmatmul.bf16.gmra.mxu0 %v1562
  %v3888 = vpop.f32.mrf.mxu0
  %v3889 = vadd.f32 %v3720, %v3888
  %v3890 = vpop.f32.mrf.mxu0
  %v3891 = vadd.f32 %v3722, %v3890
  %3892 = vmatmul.bf16.gmra.mxu0 %v1574
  %v3893 = vpop.f32.mrf.mxu0
  %v3894 = vadd.f32 %v3725, %v3893
  %v3895 = vpop.f32.mrf.mxu0
  %v3896 = vadd.f32 %v3727, %v3895
  %3897 = vmatmul.bf16.gmra.mxu0 %v1586
  %v3898 = vpop.f32.mrf.mxu0
  %v3899 = vadd.f32 %v3730, %v3898
  %v3900 = vpop.f32.mrf.mxu0
  %v3901 = vadd.f32 %v3732, %v3900
  %3902 = vmatmul.bf16.gmra.mxu0 %v1598
  %v3903 = vpop.f32.mrf.mxu0
  %v3904 = vadd.f32 %v3735, %v3903
  %v3905 = vpop.f32.mrf.mxu0
  %v3906 = vadd.f32 %v3737, %v3905
  %3907 = vmatmul.bf16.gmra.mxu0 %v1610
  %v3908 = vpop.f32.mrf.mxu0
  %v3909 = vadd.f32 %v3740, %v3908
  %v3910 = vpop.f32.mrf.mxu0
  %v3911 = vadd.f32 %v3742, %v3910
  %3912 = vmatmul.bf16.gmra.mxu0 %v1622
  %v3913 = vpop.f32.mrf.mxu0
  %v3914 = vadd.f32 %v3745, %v3913
  %v3915 = vpop.f32.mrf.mxu0
  %v3916 = vadd.f32 %v3747, %v3915
  %3917 = vmatmul.bf16.gmra.mxu0 %v2005
  %v3918 = vpop.f32.mrf.mxu0
  %v3919 = vadd.f32 %v3750, %v3918
  %v3920 = vpop.f32.mrf.mxu0
  %v3921 = vadd.f32 %v3752, %v3920
  %3922 = vmatmul.bf16.gmra.mxu0 %v2057
  %v3923 = vpop.f32.mrf.mxu0
  %v3924 = vadd.f32 %v3755, %v3923
  %v3925 = vpop.f32.mrf.mxu0
  %v3926 = vadd.f32 %v3757, %v3925
  %3927 = vmatmul.bf16.gmra.mxu0 %v1658
  %v3928 = vpop.f32.mrf.mxu0
  %v3929 = vadd.f32 %v3760, %v3928
  %v3930 = vpop.f32.mrf.mxu0
  %v3931 = vadd.f32 %v3762, %v3930
  %3932 = vmatmul.bf16.gmra.mxu0 %v1670
  %v3933 = vpop.f32.mrf.mxu0
  %v3934 = vadd.f32 %v3765, %v3933
  %v3935 = vpop.f32.mrf.mxu0
  %v3936 = vadd.f32 %v3767, %v3935
  %3937 = vmatmul.bf16.gmra.mxu0 %v1682
  %v3938 = vpop.f32.mrf.mxu0
  %v3939 = vadd.f32 %v3770, %v3938
  %v3940 = vpop.f32.mrf.mxu0
  %v3941 = vadd.f32 %v3772, %v3940
  %3942 = vmatmul.bf16.gmra.mxu0 %v1694
  %v3943 = vpop.f32.mrf.mxu0
  %v3944 = vadd.f32 %v3775, %v3943
  %v3945 = vpop.f32.mrf.mxu0
  %v3946 = vadd.f32 %v3777, %v3945
  %3947 = vmatmul.bf16.gmra.mxu0 %v1706
  %v3948 = vpop.f32.mrf.mxu0
  %v3949 = vadd.f32 %v3780, %v3948
  %v3950 = vpop.f32.mrf.mxu0
  %v3951 = vadd.f32 %v3782, %v3950
  %3952 = vmatmul.bf16.gmra.mxu0 %v1718
  %v3953 = vpop.f32.mrf.mxu0
  %v3954 = vadd.f32 %v3785, %v3953
  %v3955 = vpop.f32.mrf.mxu0
  %v3956 = vadd.f32 %v3787, %v3955
  %3957 = vmatmul.bf16.gmra.mxu0 %v1730
  %v3958 = vpop.f32.mrf.mxu0
  %v3959 = vadd.f32 %v3790, %v3958
  %v3960 = vpop.f32.mrf.mxu0
  %v3961 = vadd.f32 %v3792, %v3960
  %3962 = vmatmul.bf16.gmra.mxu0 %v1742
  %v3963 = vpop.f32.mrf.mxu0
  %v3964 = vadd.f32 %v3795, %v3963
  %v3965 = vpop.f32.mrf.mxu0
  %v3966 = vadd.f32 %v3797, %v3965
  %3967 = vmatmul.bf16.gmra.mxu0 %v1754
  %v3968 = vpop.f32.mrf.mxu0
  %v3969 = vadd.f32 %v3800, %v3968
  %v3970 = vpop.f32.mrf.mxu0
  %v3971 = vadd.f32 %v3802, %v3970
  %3972 = vmatmul.bf16.gmra.mxu0 %v1766
  %v3973 = vpop.f32.mrf.mxu0
  %v3974 = vadd.f32 %v3805, %v3973
  %v3975 = vpop.f32.mrf.mxu0
  %v3976 = vadd.f32 %v3807, %v3975
  %3977 = vmatmul.bf16.gmra.mxu0 %v1778
  %v3978 = vpop.f32.mrf.mxu0
  %v3979 = vadd.f32 %v3810, %v3978
  %v3980 = vpop.f32.mrf.mxu0
  %v3981 = vadd.f32 %v3812, %v3980
  %3982 = vmatmul.bf16.gmra.mxu0 %v1790
  %v3983 = vpop.f32.mrf.mxu0
  %v3984 = vadd.f32 %v3815, %v3983
  %v3985 = vpop.f32.mrf.mxu0
  %v3986 = vadd.f32 %v3817, %v3985
  %3987 = vmatmul.bf16.gmra.mxu0 %v1802
  %v3988 = vpop.f32.mrf.mxu0
  %v3989 = vadd.f32 %v3820, %v3988
  %v3990 = vpop.f32.mrf.mxu0
  %v3991 = vadd.f32 %v3822, %v3990
  %3992 = vmatmul.bf16.gmra.mxu0 %v1814
  %v3993 = vpop.f32.mrf.mxu0
  %v3994 = vadd.f32 %v3825, %v3993
  %v3995 = vpop.f32.mrf.mxu0
  %v3996 = vadd.f32 %v3827, %v3995
  %3997 = vmatmul.bf16.gmra.mxu0 %v2017
  %v3998 = vpop.f32.mrf.mxu0
  %v3999 = vadd.f32 %v3830, %v3998
  %v4000 = vpop.f32.mrf.mxu0
  %v4001 = vadd.f32 %v3832, %v4000
  %4002 = vmatmul.bf16.gmra.mxu0 %v2069
  %v4003 = vpop.f32.mrf.mxu0
  %v4004 = vadd.f32 %v3835, %v4003
  %v4005 = vpop.f32.mrf.mxu0
  %v4006 = vadd.f32 %v3837, %v4005
  %4007 = vdwg.mxu0
  %4008 = vmatpush.bf16.msra.mxu0 %v2583
  %4009 = vmatpush.bf16.msra.mxu0 %v2582
  %4010 = vmatpush.bf16.msra.mxu0 %v2581
  %4011 = vmatpush.bf16.msra.mxu0 %v2580
  %4012 = vmatpush.bf16.msra.mxu0 %v2579
  %4013 = vmatpush.bf16.msra.mxu0 %v2578
  %4014 = vmatpush.bf16.msra.mxu0 %v2577
  %4015 = vmatpush.bf16.msra.mxu0 %v2576
  %4016 = vmatmul.bf16.gmra.mxu0 %v1856
  %v4017 = vpop.f32.mrf.mxu0
  %v4018 = vadd.f32 %v3849, %v4017
  %v4019 = vpop.f32.mrf.mxu0
  %v4020 = vadd.f32 %v3851, %v4019
  %4021 = vmatmul.bf16.gmra.mxu0 %v1859
  %v4022 = vpop.f32.mrf.mxu0
  %v4023 = vadd.f32 %v3854, %v4022
  %v4024 = vpop.f32.mrf.mxu0
  %v4025 = vadd.f32 %v3856, %v4024
  %4026 = vmatmul.bf16.gmra.mxu0 %v1862
  %v4027 = vpop.f32.mrf.mxu0
  %v4028 = vadd.f32 %v3859, %v4027
  %v4029 = vpop.f32.mrf.mxu0
  %v4030 = vadd.f32 %v3861, %v4029
  %4031 = vmatmul.bf16.gmra.mxu0 %v1865
  %v4032 = vpop.f32.mrf.mxu0
  %v4033 = vadd.f32 %v3864, %v4032
  %v4034 = vpop.f32.mrf.mxu0
  %v4035 = vadd.f32 %v3866, %v4034
  %4036 = vmatmul.bf16.gmra.mxu0 %v1868
  %v4037 = vpop.f32.mrf.mxu0
  %v4038 = vadd.f32 %v3869, %v4037
  %v4039 = vpop.f32.mrf.mxu0
  %v4040 = vadd.f32 %v3871, %v4039
  %4041 = vmatmul.bf16.gmra.mxu0 %v1871
  %v4042 = vpop.f32.mrf.mxu0
  %v4043 = vadd.f32 %v3874, %v4042
  %v4044 = vpop.f32.mrf.mxu0
  %v4045 = vadd.f32 %v3876, %v4044
  %4046 = vmatmul.bf16.gmra.mxu0 %v1874
  %v4047 = vpop.f32.mrf.mxu0
  %v4048 = vadd.f32 %v3879, %v4047
  %v4049 = vpop.f32.mrf.mxu0
  %v4050 = vadd.f32 %v3881, %v4049
  %4051 = vmatmul.bf16.gmra.mxu0 %v1877
  %v4052 = vpop.f32.mrf.mxu0
  %v4053 = vadd.f32 %v3884, %v4052
  %v4054 = vpop.f32.mrf.mxu0
  %v4055 = vadd.f32 %v3886, %v4054
  %4056 = vmatmul.bf16.gmra.mxu0 %v1880
  %v4057 = vpop.f32.mrf.mxu0
  %v4058 = vadd.f32 %v3889, %v4057
  %v4059 = vpop.f32.mrf.mxu0
  %v4060 = vadd.f32 %v3891, %v4059
  %4061 = vmatmul.bf16.gmra.mxu0 %v1883
  %v4062 = vpop.f32.mrf.mxu0
  %v4063 = vadd.f32 %v3894, %v4062
  %v4064 = vpop.f32.mrf.mxu0
  %v4065 = vadd.f32 %v3896, %v4064
  %4066 = vmatmul.bf16.gmra.mxu0 %v1886
  %v4067 = vpop.f32.mrf.mxu0
  %v4068 = vadd.f32 %v3899, %v4067
  %v4069 = vpop.f32.mrf.mxu0
  %v4070 = vadd.f32 %v3901, %v4069
  %4071 = vmatmul.bf16.gmra.mxu0 %v1889
  %v4072 = vpop.f32.mrf.mxu0
  %v4073 = vadd.f32 %v3904, %v4072
  %v4074 = vpop.f32.mrf.mxu0
  %v4075 = vadd.f32 %v3906, %v4074
  %4076 = vmatmul.bf16.gmra.mxu0 %v1892
  %v4077 = vpop.f32.mrf.mxu0
  %v4078 = vadd.f32 %v3909, %v4077
  %v4079 = vpop.f32.mrf.mxu0
  %v4080 = vadd.f32 %v3911, %v4079
  %4081 = vmatmul.bf16.gmra.mxu0 %v1895
  %v4082 = vpop.f32.mrf.mxu0
  %v4083 = vadd.f32 %v3914, %v4082
  %v4084 = vpop.f32.mrf.mxu0
  %v4085 = vadd.f32 %v3916, %v4084
  %4086 = vmatmul.bf16.gmra.mxu0 %v2022
  %v4087 = vpop.f32.mrf.mxu0
  %v4088 = vadd.f32 %v3919, %v4087
  %v4089 = vpop.f32.mrf.mxu0
  %v4090 = vadd.f32 %v3921, %v4089
  %4091 = vmatmul.bf16.gmra.mxu0 %v2074
  %v4092 = vpop.f32.mrf.mxu0
  %v4093 = vadd.f32 %v3924, %v4092
  %v4094 = vpop.f32.mrf.mxu0
  %v4095 = vadd.f32 %v3926, %v4094
  %4096 = vmatmul.bf16.gmra.mxu0 %v1904
  %v4097 = vpop.f32.mrf.mxu0
  %v4098 = vadd.f32 %v3929, %v4097
  %v4099 = vpop.f32.mrf.mxu0
  %v4100 = vadd.f32 %v3931, %v4099
  %4101 = vmatmul.bf16.gmra.mxu0 %v1907
  %v4102 = vpop.f32.mrf.mxu0
  %v4103 = vadd.f32 %v3934, %v4102
  %v4104 = vpop.f32.mrf.mxu0
  %v4105 = vadd.f32 %v3936, %v4104
  %4106 = vmatmul.bf16.gmra.mxu0 %v1910
  %v4107 = vpop.f32.mrf.mxu0
  %v4108 = vadd.f32 %v3939, %v4107
  %v4109 = vpop.f32.mrf.mxu0
  %v4110 = vadd.f32 %v3941, %v4109
  %4111 = vmatmul.bf16.gmra.mxu0 %v1913
  %v4112 = vpop.f32.mrf.mxu0
  %v4113 = vadd.f32 %v3944, %v4112
  %v4114 = vpop.f32.mrf.mxu0
  %v4115 = vadd.f32 %v3946, %v4114
  %4116 = vmatmul.bf16.gmra.mxu0 %v1916
  %v4117 = vpop.f32.mrf.mxu0
  %v4118 = vadd.f32 %v3949, %v4117
  %v4119 = vpop.f32.mrf.mxu0
  %v4120 = vadd.f32 %v3951, %v4119
  %4121 = vmatmul.bf16.gmra.mxu0 %v1919
  %v4122 = vpop.f32.mrf.mxu0
  %v4123 = vadd.f32 %v3954, %v4122
  %v4124 = vpop.f32.mrf.mxu0
  %v4125 = vadd.f32 %v3956, %v4124
  %4126 = vmatmul.bf16.gmra.mxu0 %v1922
  %v4127 = vpop.f32.mrf.mxu0
  %v4128 = vadd.f32 %v3959, %v4127
  %v4129 = vpop.f32.mrf.mxu0
  %v4130 = vadd.f32 %v3961, %v4129
  %4131 = vmatmul.bf16.gmra.mxu0 %v1925
  %v4132 = vpop.f32.mrf.mxu0
  %v4133 = vadd.f32 %v3964, %v4132
  %v4134 = vpop.f32.mrf.mxu0
  %v4135 = vadd.f32 %v3966, %v4134
  %4136 = vmatmul.bf16.gmra.mxu0 %v1928
  %v4137 = vpop.f32.mrf.mxu0
  %v4138 = vadd.f32 %v3969, %v4137
  %v4139 = vpop.f32.mrf.mxu0
  %v4140 = vadd.f32 %v3971, %v4139
  %4141 = vmatmul.bf16.gmra.mxu0 %v1931
  %v4142 = vpop.f32.mrf.mxu0
  %v4143 = vadd.f32 %v3974, %v4142
  %v4144 = vpop.f32.mrf.mxu0
  %v4145 = vadd.f32 %v3976, %v4144
  %4146 = vmatmul.bf16.gmra.mxu0 %v1934
  %v4147 = vpop.f32.mrf.mxu0
  %v4148 = vadd.f32 %v3979, %v4147
  %v4149 = vpop.f32.mrf.mxu0
  %v4150 = vadd.f32 %v3981, %v4149
  %4151 = vmatmul.bf16.gmra.mxu0 %v1937
  %v4152 = vpop.f32.mrf.mxu0
  %v4153 = vadd.f32 %v3984, %v4152
  %v4154 = vpop.f32.mrf.mxu0
  %v4155 = vadd.f32 %v3986, %v4154
  %4156 = vmatmul.bf16.gmra.mxu0 %v1940
  %v4157 = vpop.f32.mrf.mxu0
  %v4158 = vadd.f32 %v3989, %v4157
  %v4159 = vpop.f32.mrf.mxu0
  %v4160 = vadd.f32 %v3991, %v4159
  %4161 = vmatmul.bf16.gmra.mxu0 %v1943
  %v4162 = vpop.f32.mrf.mxu0
  %v4163 = vadd.f32 %v3994, %v4162
  %v4164 = vpop.f32.mrf.mxu0
  %v4165 = vadd.f32 %v3996, %v4164
  %4166 = vmatmul.bf16.gmra.mxu0 %v2025
  %v4167 = vpop.f32.mrf.mxu0
  %v4168 = vadd.f32 %v3999, %v4167
  %v4169 = vpop.f32.mrf.mxu0
  %v4170 = vadd.f32 %v4001, %v4169
  %4171 = vmatmul.bf16.gmra.mxu0 %v2077
  %v4172 = vpop.f32.mrf.mxu0
  %v4173 = vadd.f32 %v4004, %v4172
  %v4174 = vpop.f32.mrf.mxu0
  %v4175 = vadd.f32 %v4006, %v4174
  %4176 = vdwg.mxu0
  %v4177 = vld [vmem:[%s5] sm:$0x1]
  %v4179 = vperm.slane %v4177, 0
  %v4181 = vmul.f32 %v4018, %v4179
  %v4182 = vmul.f32 %v4020, %v4179
  %v4183 = vmul.f32 %v4023, %v4179
  %v4184 = vmul.f32 %v4025, %v4179
  %v4185 = vmul.f32 %v4028, %v4179
  %v4186 = vmul.f32 %v4030, %v4179
  %v4187 = vmul.f32 %v4033, %v4179
  %v4188 = vmul.f32 %v4035, %v4179
  %v4189 = vmul.f32 %v4038, %v4179
  %v4190 = vmul.f32 %v4040, %v4179
  %v4191 = vmul.f32 %v4043, %v4179
  %v4192 = vmul.f32 %v4045, %v4179
  %v4193 = vmul.f32 %v4048, %v4179
  %v4194 = vmul.f32 %v4050, %v4179
  %v4195 = vmul.f32 %v4053, %v4179
  %v4196 = vmul.f32 %v4055, %v4179
  %v4197 = vmul.f32 %v4058, %v4179
  %v4198 = vmul.f32 %v4060, %v4179
  %v4199 = vmul.f32 %v4063, %v4179
  %v4200 = vmul.f32 %v4065, %v4179
  %v4201 = vmul.f32 %v4068, %v4179
  %v4202 = vmul.f32 %v4070, %v4179
  %v4203 = vmul.f32 %v4073, %v4179
  %v4204 = vmul.f32 %v4075, %v4179
  %v4205 = vmul.f32 %v4078, %v4179
  %v4206 = vmul.f32 %v4080, %v4179
  %v4207 = vmul.f32 %v4083, %v4179
  %v4208 = vmul.f32 %v4085, %v4179
  %v4209 = vmul.f32 %v4088, %v4179
  %v4210 = vmul.f32 %v4090, %v4179
  %v4211 = vmul.f32 %v4093, %v4179
  %v4212 = vmul.f32 %v4095, %v4179
  %v4213 = vmul.f32 %v4098, %v4179
  %v4214 = vmul.f32 %v4100, %v4179
  %v4215 = vmul.f32 %v4103, %v4179
  %v4216 = vmul.f32 %v4105, %v4179
  %v4217 = vmul.f32 %v4108, %v4179
  %v4218 = vmul.f32 %v4110, %v4179
  %v4219 = vmul.f32 %v4113, %v4179
  %v4220 = vmul.f32 %v4115, %v4179
  %v4221 = vmul.f32 %v4118, %v4179
  %v4222 = vmul.f32 %v4120, %v4179
  %v4223 = vmul.f32 %v4123, %v4179
  %v4224 = vmul.f32 %v4125, %v4179
  %v4225 = vmul.f32 %v4128, %v4179
  %v4226 = vmul.f32 %v4130, %v4179
  %v4227 = vmul.f32 %v4133, %v4179
  %v4228 = vmul.f32 %v4135, %v4179
  %v4229 = vmul.f32 %v4138, %v4179
  %v4230 = vmul.f32 %v4140, %v4179
  %v4231 = vmul.f32 %v4143, %v4179
  %v4232 = vmul.f32 %v4145, %v4179
  %v4233 = vmul.f32 %v4148, %v4179
  %v4234 = vmul.f32 %v4150, %v4179
  %v4235 = vmul.f32 %v4153, %v4179
  %v4236 = vmul.f32 %v4155, %v4179
  %v4237 = vmul.f32 %v4158, %v4179
  %v4238 = vmul.f32 %v4160, %v4179
  %v4239 = vmul.f32 %v4163, %v4179
  %v4240 = vmul.f32 %v4165, %v4179
  %v4241 = vmul.f32 %v4168, %v4179
  %v4242 = vmul.f32 %v4170, %v4179
  %v4243 = vmul.f32 %v4173, %v4179
  %v4244 = vmul.f32 %v4175, %v4179
  %v4245 = vld [vmem:[%s6] sm:$0x1]
  %v4247 = vperm.slane %v4245, 0
  %v4249 = vadd.f32 %v4181, %v4247
  %v4250 = vadd.f32 %v4182, %v4247
  %v4251 = vadd.f32 %v4183, %v4247
  %v4252 = vadd.f32 %v4184, %v4247
  %v4253 = vadd.f32 %v4185, %v4247
  %v4254 = vadd.f32 %v4186, %v4247
  %v4255 = vadd.f32 %v4187, %v4247
  %v4256 = vadd.f32 %v4188, %v4247
  %v4257 = vadd.f32 %v4189, %v4247
  %v4258 = vadd.f32 %v4190, %v4247
  %v4259 = vadd.f32 %v4191, %v4247
  %v4260 = vadd.f32 %v4192, %v4247
  %v4261 = vadd.f32 %v4193, %v4247
  %v4262 = vadd.f32 %v4194, %v4247
  %v4263 = vadd.f32 %v4195, %v4247
  %v4264 = vadd.f32 %v4196, %v4247
  %v4265 = vadd.f32 %v4197, %v4247
  %v4266 = vadd.f32 %v4198, %v4247
  %v4267 = vadd.f32 %v4199, %v4247
  %v4268 = vadd.f32 %v4200, %v4247
  %v4269 = vadd.f32 %v4201, %v4247
  %v4270 = vadd.f32 %v4202, %v4247
  %v4271 = vadd.f32 %v4203, %v4247
  %v4272 = vadd.f32 %v4204, %v4247
  %v4273 = vadd.f32 %v4205, %v4247
  %v4274 = vadd.f32 %v4206, %v4247
  %v4275 = vadd.f32 %v4207, %v4247
  %v4276 = vadd.f32 %v4208, %v4247
  %v4277 = vadd.f32 %v4209, %v4247
  %v4278 = vadd.f32 %v4210, %v4247
  %v4279 = vadd.f32 %v4211, %v4247
  %v4280 = vadd.f32 %v4212, %v4247
  %v4281 = vadd.f32 %v4213, %v4247
  %v4282 = vadd.f32 %v4214, %v4247
  %v4283 = vadd.f32 %v4215, %v4247
  %v4284 = vadd.f32 %v4216, %v4247
  %v4285 = vadd.f32 %v4217, %v4247
  %v4286 = vadd.f32 %v4218, %v4247
  %v4287 = vadd.f32 %v4219, %v4247
  %v4288 = vadd.f32 %v4220, %v4247
  %v4289 = vadd.f32 %v4221, %v4247
  %v4290 = vadd.f32 %v4222, %v4247
  %v4291 = vadd.f32 %v4223, %v4247
  %v4292 = vadd.f32 %v4224, %v4247
  %v4293 = vadd.f32 %v4225, %v4247
  %v4294 = vadd.f32 %v4226, %v4247
  %v4295 = vadd.f32 %v4227, %v4247
  %v4296 = vadd.f32 %v4228, %v4247
  %v4297 = vadd.f32 %v4229, %v4247
  %v4298 = vadd.f32 %v4230, %v4247
  %v4299 = vadd.f32 %v4231, %v4247
  %v4300 = vadd.f32 %v4232, %v4247
  %v4301 = vadd.f32 %v4233, %v4247
  %v4302 = vadd.f32 %v4234, %v4247
  %v4303 = vadd.f32 %v4235, %v4247
  %v4304 = vadd.f32 %v4236, %v4247
  %v4305 = vadd.f32 %v4237, %v4247
  %v4306 = vadd.f32 %v4238, %v4247
  %v4307 = vadd.f32 %v4239, %v4247
  %v4308 = vadd.f32 %v4240, %v4247
  %v4309 = vadd.f32 %v4241, %v4247
  %v4310 = vadd.f32 %v4242, %v4247
  %v4311 = vadd.f32 %v4243, %v4247
  %v4312 = vadd.f32 %v4244, %v4247
  %v4313 = vld [vmem:[%s7] sm:$0xf]
  %v4314 = vld [vmem:[%s7 + $0x4] sm:$0xf]
  %v4315 = vld [vmem:[%s7 + $0x8] sm:$0xf]
  %v4316 = vld [vmem:[%s7 + $0xc] sm:$0xf]
  %v4317 = vld [vmem:[%s7 + $0x10] sm:$0xf]
  %v4318 = vld [vmem:[%s7 + $0x14] sm:$0xf]
  %v4319 = vld [vmem:[%s7 + $0x18] sm:$0xf]
  %v4320 = vld [vmem:[%s7 + $0x1c] sm:$0xf]
  %v4321 = vld [vmem:[%s7 + $0x20] sm:$0xf]
  %v4322 = vld [vmem:[%s7 + $0x24] sm:$0xf]
  %v4323 = vld [vmem:[%s7 + $0x28] sm:$0xf]
  %v4324 = vld [vmem:[%s7 + $0x2c] sm:$0xf]
  %v4325 = vld [vmem:[%s7 + $0x30] sm:$0xf]
  %v4326 = vld [vmem:[%s7 + $0x34] sm:$0xf]
  %v4327 = vld [vmem:[%s7 + $0x38] sm:$0xf]
  %v4328 = vld [vmem:[%s7 + $0x3c] sm:$0xf]
  %v4329 = vld [vmem:[%s7 + $0x40] sm:$0xf]
  %v4330 = vld [vmem:[%s7 + $0x44] sm:$0xf]
  %v4331 = vld [vmem:[%s7 + $0x48] sm:$0xf]
  %v4332 = vld [vmem:[%s7 + $0x4c] sm:$0xf]
  %v4333 = vld [vmem:[%s7 + $0x50] sm:$0xf]
  %v4334 = vld [vmem:[%s7 + $0x54] sm:$0xf]
  %v4335 = vld [vmem:[%s7 + $0x58] sm:$0xf]
  %v4336 = vld [vmem:[%s7 + $0x5c] sm:$0xf]
  %v4337 = vld [vmem:[%s7 + $0x60] sm:$0xf]
  %v4338 = vld [vmem:[%s7 + $0x64] sm:$0xf]
  %v4339 = vld [vmem:[%s7 + $0x68] sm:$0xf]
  %v4340 = vld [vmem:[%s7 + $0x6c] sm:$0xf]
  %v4341 = vld [vmem:[%s7 + $0x70] sm:$0xf]
  %v4342 = vld [vmem:[%s7 + $0x74] sm:$0xf]
  %v4343 = vld [vmem:[%s7 + $0x78] sm:$0xf]
  %v4344 = vld [vmem:[%s7 + $0x7c] sm:$0xf]
  %v4345 = vld [vmem:[%s7 + $0x80] sm:$0xf]
  %v4346 = vld [vmem:[%s7 + $0x84] sm:$0xf]
  %v4347 = vld [vmem:[%s7 + $0x88] sm:$0xf]
  %v4348 = vld [vmem:[%s7 + $0x8c] sm:$0xf]
  %v4349 = vld [vmem:[%s7 + $0x90] sm:$0xf]
  %v4350 = vld [vmem:[%s7 + $0x94] sm:$0xf]
  %v4351 = vld [vmem:[%s7 + $0x98] sm:$0xf]
  %v4352 = vld [vmem:[%s7 + $0x9c] sm:$0xf]
  %v4353 = vld [vmem:[%s7 + $0xa0] sm:$0xf]
  %v4354 = vld [vmem:[%s7 + $0xa4] sm:$0xf]
  %v4355 = vld [vmem:[%s7 + $0xa8] sm:$0xf]
  %v4356 = vld [vmem:[%s7 + $0xac] sm:$0xf]
  %v4357 = vld [vmem:[%s7 + $0xb0] sm:$0xf]
  %v4358 = vld [vmem:[%s7 + $0xb4] sm:$0xf]
  %v4359 = vld [vmem:[%s7 + $0xb8] sm:$0xf]
  %v4360 = vld [vmem:[%s7 + $0xbc] sm:$0xf]
  %v4361 = vld [vmem:[%s7 + $0xc0] sm:$0xf]
  %v4362 = vld [vmem:[%s7 + $0xc4] sm:$0xf]
  %v4363 = vld [vmem:[%s7 + $0xc8] sm:$0xf]
  %v4364 = vld [vmem:[%s7 + $0xcc] sm:$0xf]
  %v4365 = vld [vmem:[%s7 + $0xd0] sm:$0xf]
  %v4366 = vld [vmem:[%s7 + $0xd4] sm:$0xf]
  %v4367 = vld [vmem:[%s7 + $0xd8] sm:$0xf]
  %v4368 = vld [vmem:[%s7 + $0xdc] sm:$0xf]
  %v4369 = vld [vmem:[%s7 + $0xe0] sm:$0xf]
  %v4370 = vld [vmem:[%s7 + $0xe4] sm:$0xf]
  %v4371 = vld [vmem:[%s7 + $0xe8] sm:$0xf]
  %v4372 = vld [vmem:[%s7 + $0xec] sm:$0xf]
  %v4373 = vld [vmem:[%s7 + $0xf0] sm:$0xf]
  %v4374 = vld [vmem:[%s7 + $0xf4] sm:$0xf]
  %v4375 = vld [vmem:[%s7 + $0xf8] sm:$0xf]
  %v4376 = vld [vmem:[%s7 + $0xfc] sm:$0xf]
  %v4377 = vld [vmem:[%s8] sm:$0x3]
  %v4442 = vunpack.c.l.b16 %v4313
  %v4443 = vunpack.c.l.b16 %v4314
  %v4444 = vunpack.c.l.b16 %v4315
  %v4445 = vunpack.c.l.b16 %v4316
  %v4446 = vunpack.c.l.b16 %v4317
  %v4447 = vunpack.c.l.b16 %v4318
  %v4448 = vunpack.c.l.b16 %v4319
  %v4449 = vunpack.c.l.b16 %v4320
  %v4450 = vunpack.c.l.b16 %v4321
  %v4451 = vunpack.c.l.b16 %v4322
  %v4452 = vunpack.c.l.b16 %v4323
  %v4453 = vunpack.c.l.b16 %v4324
  %v4454 = vunpack.c.l.b16 %v4325
  %v4455 = vunpack.c.l.b16 %v4326
  %v4456 = vunpack.c.l.b16 %v4327
  %v4457 = vunpack.c.l.b16 %v4328
  %v4458 = vunpack.c.l.b16 %v4329
  %v4459 = vunpack.c.l.b16 %v4330
  %v4460 = vunpack.c.l.b16 %v4331
  %v4461 = vunpack.c.l.b16 %v4332
  %v4462 = vunpack.c.l.b16 %v4333
  %v4463 = vunpack.c.l.b16 %v4334
  %v4464 = vunpack.c.l.b16 %v4335
  %v4465 = vunpack.c.l.b16 %v4336
  %v4466 = vunpack.c.l.b16 %v4337
  %v4467 = vunpack.c.l.b16 %v4338
  %v4468 = vunpack.c.l.b16 %v4339
  %v4469 = vunpack.c.l.b16 %v4340
  %v4470 = vunpack.c.l.b16 %v4341
  %v4471 = vunpack.c.l.b16 %v4342
  %v4472 = vunpack.c.l.b16 %v4343
  %v4473 = vunpack.c.l.b16 %v4344
  %v4474 = vunpack.c.l.b16 %v4345
  %v4475 = vunpack.c.l.b16 %v4346
  %v4476 = vunpack.c.l.b16 %v4347
  %v4477 = vunpack.c.l.b16 %v4348
  %v4478 = vunpack.c.l.b16 %v4349
  %v4479 = vunpack.c.l.b16 %v4350
  %v4480 = vunpack.c.l.b16 %v4351
  %v4481 = vunpack.c.l.b16 %v4352
  %v4482 = vunpack.c.l.b16 %v4353
  %v4483 = vunpack.c.l.b16 %v4354
  %v4484 = vunpack.c.l.b16 %v4355
  %v4485 = vunpack.c.l.b16 %v4356
  %v4486 = vunpack.c.l.b16 %v4357
  %v4487 = vunpack.c.l.b16 %v4358
  %v4488 = vunpack.c.l.b16 %v4359
  %v4489 = vunpack.c.l.b16 %v4360
  %v4490 = vunpack.c.l.b16 %v4361
  %v4491 = vunpack.c.l.b16 %v4362
  %v4492 = vunpack.c.l.b16 %v4363
  %v4493 = vunpack.c.l.b16 %v4364
  %v4494 = vunpack.c.l.b16 %v4365
  %v4495 = vunpack.c.l.b16 %v4366
  %v4496 = vunpack.c.l.b16 %v4367
  %v4497 = vunpack.c.l.b16 %v4368
  %v4498 = vunpack.c.l.b16 %v4369
  %v4499 = vunpack.c.l.b16 %v4370
  %v4500 = vunpack.c.l.b16 %v4371
  %v4501 = vunpack.c.l.b16 %v4372
  %v4502 = vunpack.c.l.b16 %v4373
  %v4503 = vunpack.c.l.b16 %v4374
  %v4504 = vunpack.c.l.b16 %v4375
  %v4505 = vunpack.c.l.b16 %v4376
  %v4506 = vpack.c.b16 %v4443, %v4442
  %v4507 = vpack.c.b16 %v4445, %v4444
  %v4508 = vpack.c.b16 %v4447, %v4446
  %v4509 = vpack.c.b16 %v4449, %v4448
  %v4510 = vpack.c.b16 %v4451, %v4450
  %v4511 = vpack.c.b16 %v4453, %v4452
  %v4512 = vpack.c.b16 %v4455, %v4454
  %v4513 = vpack.c.b16 %v4457, %v4456
  %v4514 = vpack.c.b16 %v4459, %v4458
  %v4515 = vpack.c.b16 %v4461, %v4460
  %v4516 = vpack.c.b16 %v4463, %v4462
  %v4517 = vpack.c.b16 %v4465, %v4464
  %v4518 = vpack.c.b16 %v4467, %v4466
  %v4519 = vpack.c.b16 %v4469, %v4468
  %v4520 = vpack.c.b16 %v4471, %v4470
  %v4521 = vpack.c.b16 %v4473, %v4472
  %v4522 = vpack.c.b16 %v4475, %v4474
  %v4523 = vpack.c.b16 %v4477, %v4476
  %v4524 = vpack.c.b16 %v4479, %v4478
  %v4525 = vpack.c.b16 %v4481, %v4480
  %v4526 = vpack.c.b16 %v4483, %v4482
  %v4527 = vpack.c.b16 %v4485, %v4484
  %v4528 = vpack.c.b16 %v4487, %v4486
  %v4529 = vpack.c.b16 %v4489, %v4488
  %v4530 = vpack.c.b16 %v4491, %v4490
  %v4531 = vpack.c.b16 %v4493, %v4492
  %v4532 = vpack.c.b16 %v4495, %v4494
  %v4533 = vpack.c.b16 %v4497, %v4496
  %v4534 = vpack.c.b16 %v4499, %v4498
  %v4535 = vpack.c.b16 %v4501, %v4500
  %v4536 = vpack.c.b16 %v4503, %v4502
  %v4537 = vpack.c.b16 %v4505, %v4504
  %vm4538 = vcmask 31744
  %v4540 = vsel %vm4538, %v4506, 0
  %v4543 = vsel %vm4538, %v4507, 0
  %v4546 = vsel %vm4538, %v4508, 0
  %v4549 = vsel %vm4538, %v4509, 0
  %v4552 = vsel %vm4538, %v4510, 0
  %v4555 = vsel %vm4538, %v4511, 0
  %v4558 = vsel %vm4538, %v4512, 0
  %v4561 = vsel %vm4538, %v4513, 0
  %v4564 = vsel %vm4538, %v4514, 0
  %v4567 = vsel %vm4538, %v4515, 0
  %v4570 = vsel %vm4538, %v4516, 0
  %v4573 = vsel %vm4538, %v4517, 0
  %v4576 = vsel %vm4538, %v4518, 0
  %v4579 = vsel %vm4538, %v4519, 0
  %v4582 = vsel %vm4538, %v4520, 0
  %v4585 = vsel %vm4538, %v4521, 0
  %v4588 = vsel %vm4538, %v4522, 0
  %v4591 = vsel %vm4538, %v4523, 0
  %v4594 = vsel %vm4538, %v4524, 0
  %v4597 = vsel %vm4538, %v4525, 0
  %v4600 = vsel %vm4538, %v4526, 0
  %v4603 = vsel %vm4538, %v4527, 0
  %v4606 = vsel %vm4538, %v4528, 0
  %v4609 = vsel %vm4538, %v4529, 0
  %v4612 = vsel %vm4538, %v4530, 0
  %v4615 = vsel %vm4538, %v4531, 0
  %v4618 = vsel %vm4538, %v4532, 0
  %v4621 = vsel %vm4538, %v4533, 0
  %v4624 = vsel %vm4538, %v4534, 0
  %v4627 = vsel %vm4538, %v4535, 0
  %v4630 = vsel %vm4538, %v4536, 0
  %v4633 = vsel %vm4538, %v4537, 0
  %v4636 = vsel %vm380, %v4377, 0
  %4638 = vmatpush.bf16.msra.mxu0 0
  %4639 = vmatpush.bf16.msra.mxu0 0
  %4640 = vmatpush.bf16.msra.mxu0 0
  %4641 = vmatpush.bf16.msra.mxu0 0
  %4642 = vmatpush.bf16.msra.mxu0 0
  %4643 = vmatpush.bf16.msra.mxu0 0
  %4644 = vmatpush.bf16.msra.mxu0 0
  %4645 = vmatpush.bf16.msra.mxu0 %v4636
  %4646 = vmatmul.bf16.gmra.mxu0 %v4540
  %v4647 = vpop.f32.mrf.mxu0
  %v4648 = vadd.f32 0.0, %v4647
  %v4649 = vpop.f32.mrf.mxu0
  %v4650 = vadd.f32 0.0, %v4649
  %4651 = vmatmul.bf16.gmra.mxu0 %v4543
  %v4652 = vpop.f32.mrf.mxu0
  %v4653 = vadd.f32 0.0, %v4652
  %v4654 = vpop.f32.mrf.mxu0
  %v4655 = vadd.f32 0.0, %v4654
  %4656 = vmatmul.bf16.gmra.mxu0 %v4546
  %v4657 = vpop.f32.mrf.mxu0
  %v4658 = vadd.f32 0.0, %v4657
  %v4659 = vpop.f32.mrf.mxu0
  %v4660 = vadd.f32 0.0, %v4659
  %4661 = vmatmul.bf16.gmra.mxu0 %v4549
  %v4662 = vpop.f32.mrf.mxu0
  %v4663 = vadd.f32 0.0, %v4662
  %v4664 = vpop.f32.mrf.mxu0
  %v4665 = vadd.f32 0.0, %v4664
  %4666 = vmatmul.bf16.gmra.mxu0 %v4552
  %v4667 = vpop.f32.mrf.mxu0
  %v4668 = vadd.f32 0.0, %v4667
  %v4669 = vpop.f32.mrf.mxu0
  %v4670 = vadd.f32 0.0, %v4669
  %4671 = vmatmul.bf16.gmra.mxu0 %v4555
  %v4672 = vpop.f32.mrf.mxu0
  %v4673 = vadd.f32 0.0, %v4672
  %v4674 = vpop.f32.mrf.mxu0
  %v4675 = vadd.f32 0.0, %v4674
  %4676 = vmatmul.bf16.gmra.mxu0 %v4558
  %v4677 = vpop.f32.mrf.mxu0
  %v4678 = vadd.f32 0.0, %v4677
  %v4679 = vpop.f32.mrf.mxu0
  %v4680 = vadd.f32 0.0, %v4679
  %4681 = vmatmul.bf16.gmra.mxu0 %v4561
  %v4682 = vpop.f32.mrf.mxu0
  %v4683 = vadd.f32 0.0, %v4682
  %v4684 = vpop.f32.mrf.mxu0
  %v4685 = vadd.f32 0.0, %v4684
  %4686 = vmatmul.bf16.gmra.mxu0 %v4564
  %v4687 = vpop.f32.mrf.mxu0
  %v4688 = vadd.f32 0.0, %v4687
  %v4689 = vpop.f32.mrf.mxu0
  %v4690 = vadd.f32 0.0, %v4689
  %4691 = vmatmul.bf16.gmra.mxu0 %v4567
  %v4692 = vpop.f32.mrf.mxu0
  %v4693 = vadd.f32 0.0, %v4692
  %v4694 = vpop.f32.mrf.mxu0
  %v4695 = vadd.f32 0.0, %v4694
  %4696 = vmatmul.bf16.gmra.mxu0 %v4570
  %v4697 = vpop.f32.mrf.mxu0
  %v4698 = vadd.f32 0.0, %v4697
  %v4699 = vpop.f32.mrf.mxu0
  %v4700 = vadd.f32 0.0, %v4699
  %4701 = vmatmul.bf16.gmra.mxu0 %v4573
  %v4702 = vpop.f32.mrf.mxu0
  %v4703 = vadd.f32 0.0, %v4702
  %v4704 = vpop.f32.mrf.mxu0
  %v4705 = vadd.f32 0.0, %v4704
  %4706 = vmatmul.bf16.gmra.mxu0 %v4576
  %v4707 = vpop.f32.mrf.mxu0
  %v4708 = vadd.f32 0.0, %v4707
  %v4709 = vpop.f32.mrf.mxu0
  %v4710 = vadd.f32 0.0, %v4709
  %4711 = vmatmul.bf16.gmra.mxu0 %v4579
  %v4712 = vpop.f32.mrf.mxu0
  %v4713 = vadd.f32 0.0, %v4712
  %v4714 = vpop.f32.mrf.mxu0
  %v4715 = vadd.f32 0.0, %v4714
  %4716 = vmatmul.bf16.gmra.mxu0 %v4582
  %v4717 = vpop.f32.mrf.mxu0
  %v4718 = vadd.f32 0.0, %v4717
  %v4719 = vpop.f32.mrf.mxu0
  %v4720 = vadd.f32 0.0, %v4719
  %4721 = vmatmul.bf16.gmra.mxu0 %v4585
  %v4722 = vpop.f32.mrf.mxu0
  %v4723 = vadd.f32 0.0, %v4722
  %v4724 = vpop.f32.mrf.mxu0
  %v4725 = vadd.f32 0.0, %v4724
  %4726 = vmatmul.bf16.gmra.mxu0 %v4588
  %v4727 = vpop.f32.mrf.mxu0
  %v4728 = vadd.f32 0.0, %v4727
  %v4729 = vpop.f32.mrf.mxu0
  %v4730 = vadd.f32 0.0, %v4729
  %4731 = vmatmul.bf16.gmra.mxu0 %v4591
  %v4732 = vpop.f32.mrf.mxu0
  %v4733 = vadd.f32 0.0, %v4732
  %v4734 = vpop.f32.mrf.mxu0
  %v4735 = vadd.f32 0.0, %v4734
  %4736 = vmatmul.bf16.gmra.mxu0 %v4594
  %v4737 = vpop.f32.mrf.mxu0
  %v4738 = vadd.f32 0.0, %v4737
  %v4739 = vpop.f32.mrf.mxu0
  %v4740 = vadd.f32 0.0, %v4739
  %4741 = vmatmul.bf16.gmra.mxu0 %v4597
  %v4742 = vpop.f32.mrf.mxu0
  %v4743 = vadd.f32 0.0, %v4742
  %v4744 = vpop.f32.mrf.mxu0
  %v4745 = vadd.f32 0.0, %v4744
  %4746 = vmatmul.bf16.gmra.mxu0 %v4600
  %v4747 = vpop.f32.mrf.mxu0
  %v4748 = vadd.f32 0.0, %v4747
  %v4749 = vpop.f32.mrf.mxu0
  %v4750 = vadd.f32 0.0, %v4749
  %4751 = vmatmul.bf16.gmra.mxu0 %v4603
  %v4752 = vpop.f32.mrf.mxu0
  %v4753 = vadd.f32 0.0, %v4752
  %v4754 = vpop.f32.mrf.mxu0
  %v4755 = vadd.f32 0.0, %v4754
  %4756 = vmatmul.bf16.gmra.mxu0 %v4606
  %v4757 = vpop.f32.mrf.mxu0
  %v4758 = vadd.f32 0.0, %v4757
  %v4759 = vpop.f32.mrf.mxu0
  %v4760 = vadd.f32 0.0, %v4759
  %4761 = vmatmul.bf16.gmra.mxu0 %v4609
  %v4762 = vpop.f32.mrf.mxu0
  %v4763 = vadd.f32 0.0, %v4762
  %v4764 = vpop.f32.mrf.mxu0
  %v4765 = vadd.f32 0.0, %v4764
  %4766 = vmatmul.bf16.gmra.mxu0 %v4612
  %v4767 = vpop.f32.mrf.mxu0
  %v4768 = vadd.f32 0.0, %v4767
  %v4769 = vpop.f32.mrf.mxu0
  %v4770 = vadd.f32 0.0, %v4769
  %4771 = vmatmul.bf16.gmra.mxu0 %v4615
  %v4772 = vpop.f32.mrf.mxu0
  %v4773 = vadd.f32 0.0, %v4772
  %v4774 = vpop.f32.mrf.mxu0
  %v4775 = vadd.f32 0.0, %v4774
  %4776 = vmatmul.bf16.gmra.mxu0 %v4618
  %v4777 = vpop.f32.mrf.mxu0
  %v4778 = vadd.f32 0.0, %v4777
  %v4779 = vpop.f32.mrf.mxu0
  %v4780 = vadd.f32 0.0, %v4779
  %4781 = vmatmul.bf16.gmra.mxu0 %v4621
  %v4782 = vpop.f32.mrf.mxu0
  %v4783 = vadd.f32 0.0, %v4782
  %v4784 = vpop.f32.mrf.mxu0
  %v4785 = vadd.f32 0.0, %v4784
  %4786 = vmatmul.bf16.gmra.mxu0 %v4624
  %v4787 = vpop.f32.mrf.mxu0
  %v4788 = vadd.f32 0.0, %v4787
  %v4789 = vpop.f32.mrf.mxu0
  %v4790 = vadd.f32 0.0, %v4789
  %4791 = vmatmul.bf16.gmra.mxu0 %v4627
  %v4792 = vpop.f32.mrf.mxu0
  %v4793 = vadd.f32 0.0, %v4792
  %v4794 = vpop.f32.mrf.mxu0
  %v4795 = vadd.f32 0.0, %v4794
  %4796 = vmatmul.bf16.gmra.mxu0 %v4630
  %v4797 = vpop.f32.mrf.mxu0
  %v4798 = vadd.f32 0.0, %v4797
  %v4799 = vpop.f32.mrf.mxu0
  %v4800 = vadd.f32 0.0, %v4799
  %4801 = vmatmul.bf16.gmra.mxu0 %v4633
  %v4802 = vpop.f32.mrf.mxu0
  %v4803 = vadd.f32 0.0, %v4802
  %v4804 = vpop.f32.mrf.mxu0
  %v4805 = vadd.f32 0.0, %v4804
  %4806 = vdwg.mxu0
  %v4807 = vld [vmem:[%s9] sm:$0x1]
  %v4809 = vperm.slane %v4807, 0
  %v4811 = vmul.f32 %v4648, %v4809
  %v4812 = vmul.f32 %v4650, %v4809
  %v4813 = vmul.f32 %v4653, %v4809
  %v4814 = vmul.f32 %v4655, %v4809
  %v4815 = vmul.f32 %v4658, %v4809
  %v4816 = vmul.f32 %v4660, %v4809
  %v4817 = vmul.f32 %v4663, %v4809
  %v4818 = vmul.f32 %v4665, %v4809
  %v4819 = vmul.f32 %v4668, %v4809
  %v4820 = vmul.f32 %v4670, %v4809
  %v4821 = vmul.f32 %v4673, %v4809
  %v4822 = vmul.f32 %v4675, %v4809
  %v4823 = vmul.f32 %v4678, %v4809
  %v4824 = vmul.f32 %v4680, %v4809
  %v4825 = vmul.f32 %v4683, %v4809
  %v4826 = vmul.f32 %v4685, %v4809
  %v4827 = vmul.f32 %v4688, %v4809
  %v4828 = vmul.f32 %v4690, %v4809
  %v4829 = vmul.f32 %v4693, %v4809
  %v4830 = vmul.f32 %v4695, %v4809
  %v4831 = vmul.f32 %v4698, %v4809
  %v4832 = vmul.f32 %v4700, %v4809
  %v4833 = vmul.f32 %v4703, %v4809
  %v4834 = vmul.f32 %v4705, %v4809
  %v4835 = vmul.f32 %v4708, %v4809
  %v4836 = vmul.f32 %v4710, %v4809
  %v4837 = vmul.f32 %v4713, %v4809
  %v4838 = vmul.f32 %v4715, %v4809
  %v4839 = vmul.f32 %v4718, %v4809
  %v4840 = vmul.f32 %v4720, %v4809
  %v4841 = vmul.f32 %v4723, %v4809
  %v4842 = vmul.f32 %v4725, %v4809
  %v4843 = vmul.f32 %v4728, %v4809
  %v4844 = vmul.f32 %v4730, %v4809
  %v4845 = vmul.f32 %v4733, %v4809
  %v4846 = vmul.f32 %v4735, %v4809
  %v4847 = vmul.f32 %v4738, %v4809
  %v4848 = vmul.f32 %v4740, %v4809
  %v4849 = vmul.f32 %v4743, %v4809
  %v4850 = vmul.f32 %v4745, %v4809
  %v4851 = vmul.f32 %v4748, %v4809
  %v4852 = vmul.f32 %v4750, %v4809
  %v4853 = vmul.f32 %v4753, %v4809
  %v4854 = vmul.f32 %v4755, %v4809
  %v4855 = vmul.f32 %v4758, %v4809
  %v4856 = vmul.f32 %v4760, %v4809
  %v4857 = vmul.f32 %v4763, %v4809
  %v4858 = vmul.f32 %v4765, %v4809
  %v4859 = vmul.f32 %v4768, %v4809
  %v4860 = vmul.f32 %v4770, %v4809
  %v4861 = vmul.f32 %v4773, %v4809
  %v4862 = vmul.f32 %v4775, %v4809
  %v4863 = vmul.f32 %v4778, %v4809
  %v4864 = vmul.f32 %v4780, %v4809
  %v4865 = vmul.f32 %v4783, %v4809
  %v4866 = vmul.f32 %v4785, %v4809
  %v4867 = vmul.f32 %v4788, %v4809
  %v4868 = vmul.f32 %v4790, %v4809
  %v4869 = vmul.f32 %v4793, %v4809
  %v4870 = vmul.f32 %v4795, %v4809
  %v4871 = vmul.f32 %v4798, %v4809
  %v4872 = vmul.f32 %v4800, %v4809
  %v4873 = vmul.f32 %v4803, %v4809
  %v4874 = vmul.f32 %v4805, %v4809
  %v4875 = vld [vmem:[%s10] sm:$0x1]
  %v4877 = vperm.slane %v4875, 0
  %v4879 = vadd.f32 %v4811, %v4877
  %v4880 = vadd.f32 %v4812, %v4877
  %v4881 = vadd.f32 %v4813, %v4877
  %v4882 = vadd.f32 %v4814, %v4877
  %v4883 = vadd.f32 %v4815, %v4877
  %v4884 = vadd.f32 %v4816, %v4877
  %v4885 = vadd.f32 %v4817, %v4877
  %v4886 = vadd.f32 %v4818, %v4877
  %v4887 = vadd.f32 %v4819, %v4877
  %v4888 = vadd.f32 %v4820, %v4877
  %v4889 = vadd.f32 %v4821, %v4877
  %v4890 = vadd.f32 %v4822, %v4877
  %v4891 = vadd.f32 %v4823, %v4877
  %v4892 = vadd.f32 %v4824, %v4877
  %v4893 = vadd.f32 %v4825, %v4877
  %v4894 = vadd.f32 %v4826, %v4877
  %v4895 = vadd.f32 %v4827, %v4877
  %v4896 = vadd.f32 %v4828, %v4877
  %v4897 = vadd.f32 %v4829, %v4877
  %v4898 = vadd.f32 %v4830, %v4877
  %v4899 = vadd.f32 %v4831, %v4877
  %v4900 = vadd.f32 %v4832, %v4877
  %v4901 = vadd.f32 %v4833, %v4877
  %v4902 = vadd.f32 %v4834, %v4877
  %v4903 = vadd.f32 %v4835, %v4877
  %v4904 = vadd.f32 %v4836, %v4877
  %v4905 = vadd.f32 %v4837, %v4877
  %v4906 = vadd.f32 %v4838, %v4877
  %v4907 = vadd.f32 %v4839, %v4877
  %v4908 = vadd.f32 %v4840, %v4877
  %v4909 = vadd.f32 %v4841, %v4877
  %v4910 = vadd.f32 %v4842, %v4877
  %v4911 = vadd.f32 %v4843, %v4877
  %v4912 = vadd.f32 %v4844, %v4877
  %v4913 = vadd.f32 %v4845, %v4877
  %v4914 = vadd.f32 %v4846, %v4877
  %v4915 = vadd.f32 %v4847, %v4877
  %v4916 = vadd.f32 %v4848, %v4877
  %v4917 = vadd.f32 %v4849, %v4877
  %v4918 = vadd.f32 %v4850, %v4877
  %v4919 = vadd.f32 %v4851, %v4877
  %v4920 = vadd.f32 %v4852, %v4877
  %v4921 = vadd.f32 %v4853, %v4877
  %v4922 = vadd.f32 %v4854, %v4877
  %v4923 = vadd.f32 %v4855, %v4877
  %v4924 = vadd.f32 %v4856, %v4877
  %v4925 = vadd.f32 %v4857, %v4877
  %v4926 = vadd.f32 %v4858, %v4877
  %v4927 = vadd.f32 %v4859, %v4877
  %v4928 = vadd.f32 %v4860, %v4877
  %v4929 = vadd.f32 %v4861, %v4877
  %v4930 = vadd.f32 %v4862, %v4877
  %v4931 = vadd.f32 %v4863, %v4877
  %v4932 = vadd.f32 %v4864, %v4877
  %v4933 = vadd.f32 %v4865, %v4877
  %v4934 = vadd.f32 %v4866, %v4877
  %v4935 = vadd.f32 %v4867, %v4877
  %v4936 = vadd.f32 %v4868, %v4877
  %v4937 = vadd.f32 %v4869, %v4877
  %v4938 = vadd.f32 %v4870, %v4877
  %v4939 = vadd.f32 %v4871, %v4877
  %v4940 = vadd.f32 %v4872, %v4877
  %v4941 = vadd.f32 %v4873, %v4877
  %v4942 = vadd.f32 %v4874, %v4877
  %v4943 = vadd.f32 %v4249, %v4879
  %v4944 = vadd.f32 %v4250, %v4880
  %v4945 = vadd.f32 %v4251, %v4881
  %v4946 = vadd.f32 %v4252, %v4882
  %v4947 = vadd.f32 %v4253, %v4883
  %v4948 = vadd.f32 %v4254, %v4884
  %v4949 = vadd.f32 %v4255, %v4885
  %v4950 = vadd.f32 %v4256, %v4886
  %v4951 = vadd.f32 %v4257, %v4887
  %v4952 = vadd.f32 %v4258, %v4888
  %v4953 = vadd.f32 %v4259, %v4889
  %v4954 = vadd.f32 %v4260, %v4890
  %v4955 = vadd.f32 %v4261, %v4891
  %v4956 = vadd.f32 %v4262, %v4892
  %v4957 = vadd.f32 %v4263, %v4893
  %v4958 = vadd.f32 %v4264, %v4894
  %v4959 = vadd.f32 %v4265, %v4895
  %v4960 = vadd.f32 %v4266, %v4896
  %v4961 = vadd.f32 %v4267, %v4897
  %v4962 = vadd.f32 %v4268, %v4898
  %v4963 = vadd.f32 %v4269, %v4899
  %v4964 = vadd.f32 %v4270, %v4900
  %v4965 = vadd.f32 %v4271, %v4901
  %v4966 = vadd.f32 %v4272, %v4902
  %v4967 = vadd.f32 %v4273, %v4903
  %v4968 = vadd.f32 %v4274, %v4904
  %v4969 = vadd.f32 %v4275, %v4905
  %v4970 = vadd.f32 %v4276, %v4906
  %v4971 = vadd.f32 %v4277, %v4907
  %v4972 = vadd.f32 %v4278, %v4908
  %v4973 = vadd.f32 %v4279, %v4909
  %v4974 = vadd.f32 %v4280, %v4910
  %v4975 = vadd.f32 %v4281, %v4911
  %v4976 = vadd.f32 %v4282, %v4912
  %v4977 = vadd.f32 %v4283, %v4913
  %v4978 = vadd.f32 %v4284, %v4914
  %v4979 = vadd.f32 %v4285, %v4915
  %v4980 = vadd.f32 %v4286, %v4916
  %v4981 = vadd.f32 %v4287, %v4917
  %v4982 = vadd.f32 %v4288, %v4918
  %v4983 = vadd.f32 %v4289, %v4919
  %v4984 = vadd.f32 %v4290, %v4920
  %v4985 = vadd.f32 %v4291, %v4921
  %v4986 = vadd.f32 %v4292, %v4922
  %v4987 = vadd.f32 %v4293, %v4923
  %v4988 = vadd.f32 %v4294, %v4924
  %v4989 = vadd.f32 %v4295, %v4925
  %v4990 = vadd.f32 %v4296, %v4926
  %v4991 = vadd.f32 %v4297, %v4927
  %v4992 = vadd.f32 %v4298, %v4928
  %v4993 = vadd.f32 %v4299, %v4929
  %v4994 = vadd.f32 %v4300, %v4930
  %v4995 = vadd.f32 %v4301, %v4931
  %v4996 = vadd.f32 %v4302, %v4932
  %v4997 = vadd.f32 %v4303, %v4933
  %v4998 = vadd.f32 %v4304, %v4934
  %v4999 = vadd.f32 %v4305, %v4935
  %v5000 = vadd.f32 %v4306, %v4936
  %v5001 = vadd.f32 %v4307, %v4937
  %v5002 = vadd.f32 %v4308, %v4938
  %v5003 = vadd.f32 %v4309, %v4939
  %v5004 = vadd.f32 %v4310, %v4940
  %v5005 = vadd.f32 %v4311, %v4941
  %v5006 = vadd.f32 %v4312, %v4942
  %v5007 = vmax.f32 %v4943, 0.0
  %v5008 = vmax.f32 %v4944, 0.0
  %v5009 = vmax.f32 %v4945, 0.0
  %v5010 = vmax.f32 %v4946, 0.0
  %v5011 = vmax.f32 %v4947, 0.0
  %v5012 = vmax.f32 %v4948, 0.0
  %v5013 = vmax.f32 %v4949, 0.0
  %v5014 = vmax.f32 %v4950, 0.0
  %v5015 = vmax.f32 %v4951, 0.0
  %v5016 = vmax.f32 %v4952, 0.0
  %v5017 = vmax.f32 %v4953, 0.0
  %v5018 = vmax.f32 %v4954, 0.0
  %v5019 = vmax.f32 %v4955, 0.0
  %v5020 = vmax.f32 %v4956, 0.0
  %v5021 = vmax.f32 %v4957, 0.0
  %v5022 = vmax.f32 %v4958, 0.0
  %v5023 = vmax.f32 %v4959, 0.0
  %v5024 = vmax.f32 %v4960, 0.0
  %v5025 = vmax.f32 %v4961, 0.0
  %v5026 = vmax.f32 %v4962, 0.0
  %v5027 = vmax.f32 %v4963, 0.0
  %v5028 = vmax.f32 %v4964, 0.0
  %v5029 = vmax.f32 %v4965, 0.0
  %v5030 = vmax.f32 %v4966, 0.0
  %v5031 = vmax.f32 %v4967, 0.0
  %v5032 = vmax.f32 %v4968, 0.0
  %v5033 = vmax.f32 %v4969, 0.0
  %v5034 = vmax.f32 %v4970, 0.0
  %v5035 = vmax.f32 %v4971, 0.0
  %v5036 = vmax.f32 %v4972, 0.0
  %v5037 = vmax.f32 %v4973, 0.0
  %v5038 = vmax.f32 %v4974, 0.0
  %v5039 = vmax.f32 %v4975, 0.0
  %v5040 = vmax.f32 %v4976, 0.0
  %v5041 = vmax.f32 %v4977, 0.0
  %v5042 = vmax.f32 %v4978, 0.0
  %v5043 = vmax.f32 %v4979, 0.0
  %v5044 = vmax.f32 %v4980, 0.0
  %v5045 = vmax.f32 %v4981, 0.0
  %v5046 = vmax.f32 %v4982, 0.0
  %v5047 = vmax.f32 %v4983, 0.0
  %v5048 = vmax.f32 %v4984, 0.0
  %v5049 = vmax.f32 %v4985, 0.0
  %v5050 = vmax.f32 %v4986, 0.0
  %v5051 = vmax.f32 %v4987, 0.0
  %v5052 = vmax.f32 %v4988, 0.0
  %v5053 = vmax.f32 %v4989, 0.0
  %v5054 = vmax.f32 %v4990, 0.0
  %v5055 = vmax.f32 %v4991, 0.0
  %v5056 = vmax.f32 %v4992, 0.0
  %v5057 = vmax.f32 %v4993, 0.0
  %v5058 = vmax.f32 %v4994, 0.0
  %v5059 = vmax.f32 %v4995, 0.0
  %v5060 = vmax.f32 %v4996, 0.0
  %v5061 = vmax.f32 %v4997, 0.0
  %v5062 = vmax.f32 %v4998, 0.0
  %v5063 = vmax.f32 %v4999, 0.0
  %v5064 = vmax.f32 %v5000, 0.0
  %v5065 = vmax.f32 %v5001, 0.0
  %v5066 = vmax.f32 %v5002, 0.0
  %v5067 = vmax.f32 %v5003, 0.0
  %v5068 = vmax.f32 %v5004, 0.0
  %v5069 = vmax.f32 %v5005, 0.0
  %v5070 = vmax.f32 %v5006, 0.0
  %5071 = vst [vmem:[%s11] sm:$0xff] %v5007
  %5072 = vst [vmem:[%s11 + $0x8] sm:$0xff] %v5008
  %5073 = vst [vmem:[%s11 + $0x10] sm:$0xff] %v5009
  %5074 = vst [vmem:[%s11 + $0x18] sm:$0xff] %v5010
  %5075 = vst [vmem:[%s11 + $0x20] sm:$0xff] %v5011
  %5076 = vst [vmem:[%s11 + $0x28] sm:$0xff] %v5012
  %5077 = vst [vmem:[%s11 + $0x30] sm:$0xff] %v5013
  %5078 = vst [vmem:[%s11 + $0x38] sm:$0xff] %v5014
  %5079 = vst [vmem:[%s11 + $0x40] sm:$0xff] %v5015
  %5080 = vst [vmem:[%s11 + $0x48] sm:$0xff] %v5016
  %5081 = vst [vmem:[%s11 + $0x50] sm:$0xff] %v5017
  %5082 = vst [vmem:[%s11 + $0x58] sm:$0xff] %v5018
  %5083 = vst [vmem:[%s11 + $0x60] sm:$0xff] %v5019
  %5084 = vst [vmem:[%s11 + $0x68] sm:$0xff] %v5020
  %5085 = vst [vmem:[%s11 + $0x70] sm:$0xff] %v5021
  %5086 = vst [vmem:[%s11 + $0x78] sm:$0xff] %v5022
  %5087 = vst [vmem:[%s11 + $0x80] sm:$0xff] %v5023
  %5088 = vst [vmem:[%s11 + $0x88] sm:$0xff] %v5024
  %5089 = vst [vmem:[%s11 + $0x90] sm:$0xff] %v5025
  %5090 = vst [vmem:[%s11 + $0x98] sm:$0xff] %v5026
  %5091 = vst [vmem:[%s11 + $0xa0] sm:$0xff] %v5027
  %5092 = vst [vmem:[%s11 + $0xa8] sm:$0xff] %v5028
  %5093 = vst [vmem:[%s11 + $0xb0] sm:$0xff] %v5029
  %5094 = vst [vmem:[%s11 + $0xb8] sm:$0xff] %v5030
  %5095 = vst [vmem:[%s11 + $0xc0] sm:$0xff] %v5031
  %5096 = vst [vmem:[%s11 + $0xc8] sm:$0xff] %v5032
  %5097 = vst [vmem:[%s11 + $0xd0] sm:$0xff] %v5033
  %5098 = vst [vmem:[%s11 + $0xd8] sm:$0xff] %v5034
  %5099 = vst [vmem:[%s11 + $0xe0] sm:$0xff] %v5035
  %5100 = vst [vmem:[%s11 + $0xe8] sm:$0xff] %v5036
  %5101 = vst [vmem:[%s11 + $0xf0] sm:$0xff] %v5037
  %5102 = vst [vmem:[%s11 + $0xf8] sm:$0xff] %v5038
  %5103 = vst [vmem:[%s11 + $0x100] sm:$0xff] %v5039
  %5104 = vst [vmem:[%s11 + $0x108] sm:$0xff] %v5040
  %5105 = vst [vmem:[%s11 + $0x110] sm:$0xff] %v5041
  %5106 = vst [vmem:[%s11 + $0x118] sm:$0xff] %v5042
  %5107 = vst [vmem:[%s11 + $0x120] sm:$0xff] %v5043
  %5108 = vst [vmem:[%s11 + $0x128] sm:$0xff] %v5044
  %5109 = vst [vmem:[%s11 + $0x130] sm:$0xff] %v5045
  %5110 = vst [vmem:[%s11 + $0x138] sm:$0xff] %v5046
  %5111 = vst [vmem:[%s11 + $0x140] sm:$0xff] %v5047
  %5112 = vst [vmem:[%s11 + $0x148] sm:$0xff] %v5048
  %5113 = vst [vmem:[%s11 + $0x150] sm:$0xff] %v5049
  %5114 = vst [vmem:[%s11 + $0x158] sm:$0xff] %v5050
  %5115 = vst [vmem:[%s11 + $0x160] sm:$0xff] %v5051
  %5116 = vst [vmem:[%s11 + $0x168] sm:$0xff] %v5052
  %5117 = vst [vmem:[%s11 + $0x170] sm:$0xff] %v5053
  %5118 = vst [vmem:[%s11 + $0x178] sm:$0xff] %v5054
  %5119 = vst [vmem:[%s11 + $0x180] sm:$0xff] %v5055
  %5120 = vst [vmem:[%s11 + $0x188] sm:$0xff] %v5056
  %5121 = vst [vmem:[%s11 + $0x190] sm:$0xff] %v5057
  %5122 = vst [vmem:[%s11 + $0x198] sm:$0xff] %v5058
  %5123 = vst [vmem:[%s11 + $0x1a0] sm:$0xff] %v5059
  %5124 = vst [vmem:[%s11 + $0x1a8] sm:$0xff] %v5060
  %5125 = vst [vmem:[%s11 + $0x1b0] sm:$0xff] %v5061
  %5126 = vst [vmem:[%s11 + $0x1b8] sm:$0xff] %v5062
  %5127 = vst [vmem:[%s11 + $0x1c0] sm:$0xff] %v5063
  %5128 = vst [vmem:[%s11 + $0x1c8] sm:$0xff] %v5064
  %5129 = vst [vmem:[%s11 + $0x1d0] sm:$0xff] %v5065
  %5130 = vst [vmem:[%s11 + $0x1d8] sm:$0xff] %v5066
  %5131 = vst [vmem:[%s11 + $0x1e0] sm:$0xff] %v5067
  %5132 = vst [vmem:[%s11 + $0x1e8] sm:$0xff] %v5068
  %5133 = vst [vmem:[%s11 + $0x1f0] sm:$0xff] %v5069
  %5134 = vst [vmem:[%s11 + $0x1f8] sm:$0xff] %v5070
  // Predicated region
  $region46: #{resblock_pallas.1} parent=0 // pred_check
    _
  $region47: #{resblock_pallas.1} parent=0 // pred_check_branch
    %5136 = sbr.rel (0) target = $region49
  $region48: #{resblock_pallas.1} parent=0 // pred_region
    _
  $region49: #{resblock_pallas.1} parent=0 // pred_fallthru
    _
  // Predicated region
  $region50: #{resblock_pallas.1} parent=0 // pred_check
    _
  $region51: #{resblock_pallas.1} parent=0 // pred_check_branch
    %5138 = sbr.rel (0) target = $region53
  $region52: #{resblock_pallas.1} parent=0 // pred_region
    _
  $region53: #{resblock_pallas.1} parent=0 // pred_fallthru
    _

</llo_original>
